<compile_context>
chip_gen: v5e
topology: v5e:2x2
jax: 0.10.0
libtpu: 0.0.40
codegen_flags: <defaults>
</compile_context>

<pallas_src>
import functools

import jax
import jax.numpy as jnp
from jax.experimental import pallas as pl
from jax.experimental.pallas import tpu as pltpu

_LANE = 128


def _round_up(x, m):
    return (x + m - 1) // m * m


def _softplus(x):
    # numerically-stable softplus (matches torch.nn.Softplus, beta=1)
    return jax.nn.softplus(x)


def _pad2(a, rows, cols, dtype):
    """Zero-pad a 2-D array to (rows, cols) and cast to dtype."""
    r, c = a.shape
    out = jnp.zeros((rows, cols), dtype)
    return out.at[:r, :c].set(a.astype(dtype))


# ---------------------------------------------------------------------------
# Kernels
# ---------------------------------------------------------------------------
def _enc_dec_kernel(x_ref,
                    w1_ref, b1_ref, w2_ref, b2_ref, w3_ref, b3_ref,
                    w4_ref, b4_ref, w5_ref, b5_ref, w6_ref, b6_ref,
                    z_ref, y_ref, *, compute_dtype):
    """Full encoder + decoder for one batch tile (all weights resident in VMEM)."""
    x = x_ref[...]                                            # already compute_dtype
    # ---- encoder ----
    h = _softplus(jnp.dot(x, w1_ref[...],
                          preferred_element_type=jnp.float32) + b1_ref[...])
    h = _softplus(jnp.dot(h.astype(compute_dtype), w2_ref[...],
                          preferred_element_type=jnp.float32) + b2_ref[...])
    y = jnp.dot(h.astype(compute_dtype), w3_ref[...],
                preferred_element_type=jnp.float32) + b3_ref[...]
    # ---- decoder ----
    h = _softplus(jnp.dot(y.astype(compute_dtype), w4_ref[...],
                          preferred_element_type=jnp.float32) + b4_ref[...])
    h = _softplus(jnp.dot(h.astype(compute_dtype), w5_ref[...],
                          preferred_element_type=jnp.float32) + b5_ref[...])
    z = jnp.dot(h.astype(compute_dtype), w6_ref[...],
                preferred_element_type=jnp.float32) + b6_ref[...]

    z_ref[...] = z.astype(z_ref.dtype)
    y_ref[...] = y.astype(y_ref.dtype)


def _dec_kernel(x_ref,
                w4_ref, b4_ref, w5_ref, b5_ref, w6_ref, b6_ref,
                z_ref, *, compute_dtype):
    """Decoder-only path (input already in latent space)."""
    y = x_ref[...]
    h = _softplus(jnp.dot(y, w4_ref[...],
                          preferred_element_type=jnp.float32) + b4_ref[...])
    h = _softplus(jnp.dot(h.astype(compute_dtype), w5_ref[...],
                          preferred_element_type=jnp.float32) + b5_ref[...])
    z = jnp.dot(h.astype(compute_dtype), w6_ref[...],
                preferred_element_type=jnp.float32) + b6_ref[...]
    z_ref[...] = z.astype(z_ref.dtype)


# ---------------------------------------------------------------------------
# Wrapper
# ---------------------------------------------------------------------------
def _full_spec(shape):
    # weight / bias: the same full block for every batch-tile grid step
    return pl.BlockSpec(shape, lambda i: (0,) * len(shape))


def _nbytes(*arrays):
    return int(sum(a.size * a.dtype.itemsize for a in arrays))


def autoencoder_forward(x, params, *, latent_dim, tile_b=256,
                        compute_dtype=jnp.bfloat16, decode_only=None):
    """Mirrors AutoEncoder.forward (AE_Model == 1):
       returns (z, y) for image-dim input, or z alone for latent-dim input.
       `decode_only` can be set explicitly (safer than shape-based dispatch
       when im_dim == latent_dim)."""
    (w1, b1), (w2, b2), (w3, b3), (w4, b4), (w5, b5), (w6, b6) = params
    im_dim = w1.shape[0]
    h1, h2 = w1.shape[1], w2.shape[1]            # 256, 128
    B, in_dim = x.shape

    if decode_only is None:
        # original module's shape-based dispatch
        decode_only = (in_dim == latent_dim)

    im_pad = _round_up(im_dim, _LANE)            # lane-dense z / x
    lat_pad = _round_up(latent_dim, _LANE)       # lane-dense y / latent matmuls

    # batch tiling: big tiles, pad B up to a tile multiple, >= 2 steps when possible
    tile_b = _round_up(max(8, min(tile_b, _round_up(B, 8))), 8)
    B_pad = _round_up(B, tile_b)
    grid = (B_pad // tile_b,)

    cdt = compute_dtype

    # decoder weights (zero padding is exact: padded rows/cols contribute nothing)
    w4p = _pad2(w4, lat_pad, h2, cdt); b4p = _pad2(b4, 1, h2, jnp.float32)
    w5p = _pad2(w5, h2, h1, cdt);      b5p = _pad2(b5, 1, h1, jnp.float32)
    w6p = _pad2(w6, h1, im_pad, cdt);  b6p = _pad2(b6, 1, im_pad, jnp.float32)

    cparams = pltpu.CompilerParams(dimension_semantics=("parallel",))

    if decode_only:
        xp = _pad2(x, B_pad, lat_pad, cdt)
        flops = 2 * B_pad * (lat_pad * h2 + h2 * h1 + h1 * im_pad)
        trans = B_pad * (h2 + h1)
        bytes_acc = _nbytes(xp, w4p, b4p, w5p, b5p, w6p, b6p) + B_pad * im_pad * 4
        kernel = pl.pallas_call(
            functools.partial(_dec_kernel, compute_dtype=cdt),
            out_shape=jax.ShapeDtypeStruct((B_pad, im_pad), jnp.float32),
            grid=grid,
            in_specs=[
                pl.BlockSpec((tile_b, lat_pad), lambda i: (i, 0)),
                _full_spec(w4p.shape), _full_spec(b4p.shape),
                _full_spec(w5p.shape), _full_spec(b5p.shape),
                _full_spec(w6p.shape), _full_spec(b6p.shape),
            ],
            out_specs=pl.BlockSpec((tile_b, im_pad), lambda i: (i, 0)),
            compiler_params=cparams,
            cost_estimate=pl.CostEstimate(flops=int(flops), transcendentals=int(trans),
                                          bytes_accessed=bytes_acc),
        )
        zp = kernel(xp, w4p, b4p, w5p, b5p, w6p, b6p)
        return zp[:B, :im_dim]

    # encoder weights
    w1p = _pad2(w1, im_pad, h1, cdt);  b1p = _pad2(b1, 1, h1, jnp.float32)
    w2p = _pad2(w2, h1, h2, cdt);      b2p = _pad2(b2, 1, h2, jnp.float32)
    w3p = _pad2(w3, h2, lat_pad, cdt); b3p = _pad2(b3, 1, lat_pad, jnp.float32)

    xp = _pad2(x, B_pad, im_pad, cdt)
    flops = 2 * B_pad * (im_pad * h1 + h1 * h2 + h2 * lat_pad
                         + lat_pad * h2 + h2 * h1 + h1 * im_pad)
    trans = 2 * B_pad * (h1 + h2)
    bytes_acc = (_nbytes(xp, w1p, b1p, w2p, b2p, w3p, b3p,
                         w4p, b4p, w5p, b5p, w6p, b6p)
                 + B_pad * (im_pad + lat_pad) * 4)

    kernel = pl.pallas_call(
        functools.partial(_enc_dec_kernel, compute_dtype=cdt),
        out_shape=(
            jax.ShapeDtypeStruct((B_pad, im_pad), jnp.float32),   # z
            jax.ShapeDtypeStruct((B_pad, lat_pad), jnp.float32),  # y
        ),
        grid=grid,
        in_specs=[
            pl.BlockSpec((tile_b, im_pad), lambda i: (i, 0)),
            _full_spec(w1p.shape), _full_spec(b1p.shape),
            _full_spec(w2p.shape), _full_spec(b2p.shape),
            _full_spec(w3p.shape), _full_spec(b3p.shape),
            _full_spec(w4p.shape), _full_spec(b4p.shape),
            _full_spec(w5p.shape), _full_spec(b5p.shape),
            _full_spec(w6p.shape), _full_spec(b6p.shape),
        ],
        out_specs=(
            pl.BlockSpec((tile_b, im_pad), lambda i: (i, 0)),
            pl.BlockSpec((tile_b, lat_pad), lambda i: (i, 0)),
        ),
        compiler_params=cparams,
        cost_estimate=pl.CostEstimate(flops=int(flops), transcendentals=int(trans),
                                      bytes_accessed=bytes_acc),
    )
    zp, yp = kernel(xp, w1p, b1p, w2p, b2p, w3p, b3p, w4p, b4p, w5p, b5p, w6p, b6p)
    return zp[:B, :im_dim], yp[:B, :latent_dim]


# ---------------------------------------------------------------------------
# Deterministic parameter init (torch.nn.Linear-style uniform bounds),
# weights stored as (in, out) for x @ W.
# ---------------------------------------------------------------------------
def init_params(key, im_dim, latent_dim):
    dims = [
        (im_dim, 256), (256, 128), (128, latent_dim),   # encoder
        (latent_dim, 128), (128, 256), (256, im_dim),   # decoder
    ]
    params = []
    for (fan_in, fan_out) in dims:
        key, kw, kb = jax.random.split(key, 3)
        bound = 1.0 / jnp.sqrt(fan_in)
        w = jax.random.uniform(kw, (fan_in, fan_out), jnp.float32, -bound, bound)
        b = jax.random.uniform(kb, (1, fan_out), jnp.float32, -bound, bound)
        params.append((w, b))
    return params


# ---------------------------------------------------------------------------
# Plain-JAX references
# ---------------------------------------------------------------------------
def _reference(x, params):
    (w1, b1), (w2, b2), (w3, b3), (w4, b4), (w5, b5), (w6, b6) = params
    h = jax.nn.softplus(x @ w1 + b1)
    h = jax.nn.softplus(h @ w2 + b2)
    y = h @ w3 + b3
    h = jax.nn.softplus(y @ w4 + b4)
    h = jax.nn.softplus(h @ w5 + b5)
    z = h @ w6 + b6
    return z, y


def _reference_decoder(y, params):
    (_, _), (_, _), (_, _), (w4, b4), (w5, b5), (w6, b6) = params
    h = jax.nn.softplus(y @ w4 + b4)
    h = jax.nn.softplus(h @ w5 + b5)
    return h @ w6 + b6


# TODO(synk): AE_Model 2-5 (SiLU / SELU / PReLU) variants not implemented; only AE_Model==1.
if __name__ == "__main__":
    IM_DIM = 64       # hp.imDim
    LATENT_DIM = 16   # hp.latentDim
    BATCH = 384       # not a multiple of the 256-row tile -> exercises batch padding,
                      # padded grid = (2,) so v7x megacore gets both TensorCores

    key = jax.random.PRNGKey(0)
    key, kx = jax.random.split(key)
    x = jax.random.normal(kx, (BATCH, IM_DIM), jnp.float32)
    params = init_params(key, IM_DIM, LATENT_DIM)

    z_ref, y_ref = _reference(x, params)

    # f32 compute path (tight check vs plain-JAX reference)
    z32, y32 = autoencoder_forward(x, params, latent_dim=LATENT_DIM,
                                   tile_b=256, compute_dtype=jnp.float32)
    jax.block_until_ready((z32, y32))
    assert z32.shape == (BATCH, IM_DIM) and y32.shape == (BATCH, LATENT_DIM)
    assert jnp.allclose(z32, z_ref, atol=1e-3, rtol=1e-3)
    assert jnp.allclose(y32, y_ref, atol=1e-3, rtol=1e-3)

    # default bf16-matmul path (MXU-native on v6e / v7x), f32 accumulation
    z16, y16 = autoencoder_forward(x, params, latent_dim=LATENT_DIM, tile_b=256)
    jax.block_until_ready((z16, y16))
    assert jnp.allclose(z16, z_ref, atol=5e-2, rtol=5e-2)
    assert jnp.allclose(y16, y_ref, atol=5e-2, rtol=5e-2)

    # decoder-only branch (explicit flag; input already latent-sized)
    z_dec = autoencoder_forward(y32, params, latent_dim=LATENT_DIM,
                                tile_b=256, compute_dtype=jnp.float32,
                                decode_only=True)
    jax.block_until_ready(z_dec)
    z_dec_ref = _reference_decoder(y32, params)
    assert z_dec.shape == (BATCH, IM_DIM)
    assert jnp.allclose(z_dec, z_dec_ref, atol=1e-3, rtol=1e-3)

    print("KERNEL_OK")
</pallas_src>

<mosaic_0001>
module attributes {stable_mosaic.version = 11 : i64} {
  func.func @_enc_dec_kernel(%arg0: i32, %arg1: memref<256x128xf32, #tpu.memory_space<vmem>>, %arg2: memref<128x256xf32, #tpu.memory_space<vmem>>, %arg3: memref<1x256xf32, #tpu.memory_space<vmem>>, %arg4: memref<256x128xf32, #tpu.memory_space<vmem>>, %arg5: memref<1x128xf32, #tpu.memory_space<vmem>>, %arg6: memref<128x128xf32, #tpu.memory_space<vmem>>, %arg7: memref<1x128xf32, #tpu.memory_space<vmem>>, %arg8: memref<128x128xf32, #tpu.memory_space<vmem>>, %arg9: memref<1x128xf32, #tpu.memory_space<vmem>>, %arg10: memref<128x256xf32, #tpu.memory_space<vmem>>, %arg11: memref<1x256xf32, #tpu.memory_space<vmem>>, %arg12: memref<256x128xf32, #tpu.memory_space<vmem>>, %arg13: memref<1x128xf32, #tpu.memory_space<vmem>>, %arg14: memref<256x128xf32, #tpu.memory_space<vmem>>, %arg15: memref<256x128xf32, #tpu.memory_space<vmem>>) attributes {dimension_semantics = [#tpu.dimension_semantics<parallel>], iteration_bounds = array<i64: 2>, scalar_prefetch = 0 : i64, scratch_operands = 0 : i64, tpu.core_type = #tpu.core_type<tc>, window_params = [{transform_indices = @transform_0, window_bounds = array<i64: 256, 128>}, {pipeline_mode = #tpu.pipeline_mode<synchronous>, transform_indices = @transform_1, window_bounds = array<i64: 128, 256>}, {pipeline_mode = #tpu.pipeline_mode<synchronous>, transform_indices = @transform_2, window_bounds = array<i64: 1, 256>}, {pipeline_mode = #tpu.pipeline_mode<synchronous>, transform_indices = @transform_3, window_bounds = array<i64: 256, 128>}, {pipeline_mode = #tpu.pipeline_mode<synchronous>, transform_indices = @transform_4, window_bounds = array<i64: 1, 128>}, {pipeline_mode = #tpu.pipeline_mode<synchronous>, transform_indices = @transform_5, window_bounds = array<i64: 128, 128>}, {pipeline_mode = #tpu.pipeline_mode<synchronous>, transform_indices = @transform_6, window_bounds = array<i64: 1, 128>}, {pipeline_mode = #tpu.pipeline_mode<synchronous>, transform_indices = @transform_7, window_bounds = array<i64: 128, 128>}, {pipeline_mode = #tpu.pipeline_mode<synchronous>, transform_indices = @transform_8, window_bounds = array<i64: 1, 128>}, {pipeline_mode = #tpu.pipeline_mode<synchronous>, transform_indices = @transform_9, window_bounds = array<i64: 128, 256>}, {pipeline_mode = #tpu.pipeline_mode<synchronous>, transform_indices = @transform_10, window_bounds = array<i64: 1, 256>}, {pipeline_mode = #tpu.pipeline_mode<synchronous>, transform_indices = @transform_11, window_bounds = array<i64: 256, 128>}, {pipeline_mode = #tpu.pipeline_mode<synchronous>, transform_indices = @transform_12, window_bounds = array<i64: 1, 128>}, {transform_indices = @transform_13, window_bounds = array<i64: 256, 128>}, {transform_indices = @transform_14, window_bounds = array<i64: 256, 128>}]} {
    %c0 = arith.constant 0 : index
    %c0_0 = arith.constant 0 : index
    %0 = vector.load %arg1[%c0, %c0_0] : memref<256x128xf32, #tpu.memory_space<vmem>>, vector<256x128xf32>
    %c0_1 = arith.constant 0 : index
    %c0_2 = arith.constant 0 : index
    %1 = vector.load %arg2[%c0_1, %c0_2] : memref<128x256xf32, #tpu.memory_space<vmem>>, vector<128x256xf32>
    %cst = arith.constant dense<0.000000e+00> : vector<256x256xf32>
    %2 = tpu.matmul %0, %1, %cst {dimension_numbers = #tpu.dot_dimension_numbers<[1], [0], [0], [1], [0, 0, 1, 1], [], []>} : vector<256x128xf32>, vector<128x256xf32>, vector<256x256xf32> -> vector<256x256xf32>
    %c0_3 = arith.constant 0 : index
    %c0_4 = arith.constant 0 : index
    %3 = vector.load %arg3[%c0_3, %c0_4] : memref<1x256xf32, #tpu.memory_space<vmem>>, vector<1x256xf32>
    %4 = vector.broadcast %3 : vector<1x256xf32> to vector<256x256xf32>
    %5 = arith.addf %2, %4 : vector<256x256xf32>
    %cst_5 = arith.constant 0.000000e+00 : f32
    %6 = vector.broadcast %cst_5 : f32 to vector<256x256xf32>
    %7 = arith.maximumf %5, %6 : vector<256x256xf32>
    %8 = vector.broadcast %cst_5 : f32 to vector<256x256xf32>
    %9 = arith.subf %5, %8 : vector<256x256xf32>
    %10 = arith.cmpf one, %9, %9 : vector<256x256xf32>
    %11 = vector.broadcast %cst_5 : f32 to vector<256x256xf32>
    %12 = arith.addf %5, %11 : vector<256x256xf32>
    %13 = math.absf %9 : vector<256x256xf32>
    %cst_6 = arith.constant 0.000000e+00 : f32
    %14 = vector.broadcast %cst_6 : f32 to vector<256x256xf32>
    %15 = arith.subf %14, %13 : vector<256x256xf32>
    %16 = math.exp %15 : vector<256x256xf32>
    %17 = math.log1p %16 : vector<256x256xf32>
    %18 = arith.addf %7, %17 : vector<256x256xf32>
    %19 = arith.select %10, %12, %18 : vector<256x256xi1>, vector<256x256xf32>
    %c0_7 = arith.constant 0 : index
    %c0_8 = arith.constant 0 : index
    %20 = vector.load %arg4[%c0_7, %c0_8] : memref<256x128xf32, #tpu.memory_space<vmem>>, vector<256x128xf32>
    %cst_9 = arith.constant dense<0.000000e+00> : vector<256x128xf32>
    %21 = tpu.matmul %19, %20, %cst_9 {dimension_numbers = #tpu.dot_dimension_numbers<[1], [0], [0], [1], [0, 0, 1, 1], [], []>} : vector<256x256xf32>, vector<256x128xf32>, vector<256x128xf32> -> vector<256x128xf32>
    %c0_10 = arith.constant 0 : index
    %c0_11 = arith.constant 0 : index
    %22 = vector.load %arg5[%c0_10, %c0_11] : memref<1x128xf32, #tpu.memory_space<vmem>>, vector<1x128xf32>
    %23 = vector.broadcast %22 : vector<1x128xf32> to vector<256x128xf32>
    %24 = arith.addf %21, %23 : vector<256x128xf32>
    %cst_12 = arith.constant 0.000000e+00 : f32
    %25 = vector.broadcast %cst_12 : f32 to vector<256x128xf32>
    %26 = arith.maximumf %24, %25 : vector<256x128xf32>
    %27 = vector.broadcast %cst_12 : f32 to vector<256x128xf32>
    %28 = arith.subf %24, %27 : vector<256x128xf32>
    %29 = arith.cmpf one, %28, %28 : vector<256x128xf32>
    %30 = vector.broadcast %cst_12 : f32 to vector<256x128xf32>
    %31 = arith.addf %24, %30 : vector<256x128xf32>
    %32 = math.absf %28 : vector<256x128xf32>
    %cst_13 = arith.constant 0.000000e+00 : f32
    %33 = vector.broadcast %cst_13 : f32 to vector<256x128xf32>
    %34 = arith.subf %33, %32 : vector<256x128xf32>
    %35 = math.exp %34 : vector<256x128xf32>
    %36 = math.log1p %35 : vector<256x128xf32>
    %37 = arith.addf %26, %36 : vector<256x128xf32>
    %38 = arith.select %29, %31, %37 : vector<256x128xi1>, vector<256x128xf32>
    %c0_14 = arith.constant 0 : index
    %c0_15 = arith.constant 0 : index
    %39 = vector.load %arg6[%c0_14, %c0_15] : memref<128x128xf32, #tpu.memory_space<vmem>>, vector<128x128xf32>
    %cst_16 = arith.constant dense<0.000000e+00> : vector<256x128xf32>
    %40 = tpu.matmul %38, %39, %cst_16 {dimension_numbers = #tpu.dot_dimension_numbers<[1], [0], [0], [1], [0, 0, 1, 1], [], []>} : vector<256x128xf32>, vector<128x128xf32>, vector<256x128xf32> -> vector<256x128xf32>
    %c0_17 = arith.constant 0 : index
    %c0_18 = arith.constant 0 : index
    %41 = vector.load %arg7[%c0_17, %c0_18] : memref<1x128xf32, #tpu.memory_space<vmem>>, vector<1x128xf32>
    %42 = vector.broadcast %41 : vector<1x128xf32> to vector<256x128xf32>
    %43 = arith.addf %40, %42 : vector<256x128xf32>
    %c0_19 = arith.constant 0 : index
    %c0_20 = arith.constant 0 : index
    %44 = vector.load %arg8[%c0_19, %c0_20] : memref<128x128xf32, #tpu.memory_space<vmem>>, vector<128x128xf32>
    %cst_21 = arith.constant dense<0.000000e+00> : vector<256x128xf32>
    %45 = tpu.matmul %43, %44, %cst_21 {dimension_numbers = #tpu.dot_dimension_numbers<[1], [0], [0], [1], [0, 0, 1, 1], [], []>} : vector<256x128xf32>, vector<128x128xf32>, vector<256x128xf32> -> vector<256x128xf32>
    %c0_22 = arith.constant 0 : index
    %c0_23 = arith.constant 0 : index
    %46 = vector.load %arg9[%c0_22, %c0_23] : memref<1x128xf32, #tpu.memory_space<vmem>>, vector<1x128xf32>
    %47 = vector.broadcast %46 : vector<1x128xf32> to vector<256x128xf32>
    %48 = arith.addf %45, %47 : vector<256x128xf32>
    %cst_24 = arith.constant 0.000000e+00 : f32
    %49 = vector.broadcast %cst_24 : f32 to vector<256x128xf32>
    %50 = arith.maximumf %48, %49 : vector<256x128xf32>
    %51 = vector.broadcast %cst_24 : f32 to vector<256x128xf32>
    %52 = arith.subf %48, %51 : vector<256x128xf32>
    %53 = arith.cmpf one, %52, %52 : vector<256x128xf32>
    %54 = vector.broadcast %cst_24 : f32 to vector<256x128xf32>
    %55 = arith.addf %48, %54 : vector<256x128xf32>
    %56 = math.absf %52 : vector<256x128xf32>
    %cst_25 = arith.constant 0.000000e+00 : f32
    %57 = vector.broadcast %cst_25 : f32 to vector<256x128xf32>
    %58 = arith.subf %57, %56 : vector<256x128xf32>
    %59 = math.exp %58 : vector<256x128xf32>
    %60 = math.log1p %59 : vector<256x128xf32>
    %61 = arith.addf %50, %60 : vector<256x128xf32>
    %62 = arith.select %53, %55, %61 : vector<256x128xi1>, vector<256x128xf32>
    %c0_26 = arith.constant 0 : index
    %c0_27 = arith.constant 0 : index
    %63 = vector.load %arg10[%c0_26, %c0_27] : memref<128x256xf32, #tpu.memory_space<vmem>>, vector<128x256xf32>
    %cst_28 = arith.constant dense<0.000000e+00> : vector<256x256xf32>
    %64 = tpu.matmul %62, %63, %cst_28 {dimension_numbers = #tpu.dot_dimension_numbers<[1], [0], [0], [1], [0, 0, 1, 1], [], []>} : vector<256x128xf32>, vector<128x256xf32>, vector<256x256xf32> -> vector<256x256xf32>
    %c0_29 = arith.constant 0 : index
    %c0_30 = arith.constant 0 : index
    %65 = vector.load %arg11[%c0_29, %c0_30] : memref<1x256xf32, #tpu.memory_space<vmem>>, vector<1x256xf32>
    %66 = vector.broadcast %65 : vector<1x256xf32> to vector<256x256xf32>
    %67 = arith.addf %64, %66 : vector<256x256xf32>
    %cst_31 = arith.constant 0.000000e+00 : f32
    %68 = vector.broadcast %cst_31 : f32 to vector<256x256xf32>
    %69 = arith.maximumf %67, %68 : vector<256x256xf32>
    %70 = vector.broadcast %cst_31 : f32 to vector<256x256xf32>
    %71 = arith.subf %67, %70 : vector<256x256xf32>
    %72 = arith.cmpf one, %71, %71 : vector<256x256xf32>
    %73 = vector.broadcast %cst_31 : f32 to vector<256x256xf32>
    %74 = arith.addf %67, %73 : vector<256x256xf32>
    %75 = math.absf %71 : vector<256x256xf32>
    %cst_32 = arith.constant 0.000000e+00 : f32
    %76 = vector.broadcast %cst_32 : f32 to vector<256x256xf32>
    %77 = arith.subf %76, %75 : vector<256x256xf32>
    %78 = math.exp %77 : vector<256x256xf32>
    %79 = math.log1p %78 : vector<256x256xf32>
    %80 = arith.addf %69, %79 : vector<256x256xf32>
    %81 = arith.select %72, %74, %80 : vector<256x256xi1>, vector<256x256xf32>
    %c0_33 = arith.constant 0 : index
    %c0_34 = arith.constant 0 : index
    %82 = vector.load %arg12[%c0_33, %c0_34] : memref<256x128xf32, #tpu.memory_space<vmem>>, vector<256x128xf32>
    %cst_35 = arith.constant dense<0.000000e+00> : vector<256x128xf32>
    %83 = tpu.matmul %81, %82, %cst_35 {dimension_numbers = #tpu.dot_dimension_numbers<[1], [0], [0], [1], [0, 0, 1, 1], [], []>} : vector<256x256xf32>, vector<256x128xf32>, vector<256x128xf32> -> vector<256x128xf32>
    %c0_36 = arith.constant 0 : index
    %c0_37 = arith.constant 0 : index
    %84 = vector.load %arg13[%c0_36, %c0_37] : memref<1x128xf32, #tpu.memory_space<vmem>>, vector<1x128xf32>
    %85 = vector.broadcast %84 : vector<1x128xf32> to vector<256x128xf32>
    %86 = arith.addf %83, %85 : vector<256x128xf32>
    %c0_38 = arith.constant 0 : index
    %c0_39 = arith.constant 0 : index
    %87 = vector.load %arg14[%c0_38, %c0_39] : memref<256x128xf32, #tpu.memory_space<vmem>>, vector<256x128xf32>
    tpu.vector_store %arg14[%c0_38, %c0_39], %86 {strides = array<i32>} : memref<256x128xf32, #tpu.memory_space<vmem>>, vector<256x128xf32>,
    %c0_40 = arith.constant 0 : index
    %c0_41 = arith.constant 0 : index
    %88 = vector.load %arg15[%c0_40, %c0_41] : memref<256x128xf32, #tpu.memory_space<vmem>>, vector<256x128xf32>
    tpu.vector_store %arg15[%c0_40, %c0_41], %43 {strides = array<i32>} : memref<256x128xf32, #tpu.memory_space<vmem>>, vector<256x128xf32>,
    return
  }
  func.func @transform_0(%arg0: i32) -> (i32, i32) {
    %c0_i32 = arith.constant 0 : i32
    %c0_i32_0 = arith.constant 0 : i32
    return %arg0, %c0_i32 : i32, i32
  }
  func.func @transform_1(%arg0: i32) -> (i32, i32) {
    %c0_i32 = arith.constant 0 : i32
    %c0_i32_0 = arith.constant 0 : i32
    %c0_i32_1 = arith.constant 0 : i32
    return %c0_i32, %c0_i32_0 : i32, i32
  }
  func.func @transform_2(%arg0: i32) -> (i32, i32) {
    %c0_i32 = arith.constant 0 : i32
    %c0_i32_0 = arith.constant 0 : i32
    %c0_i32_1 = arith.constant 0 : i32
    return %c0_i32, %c0_i32_0 : i32, i32
  }
  func.func @transform_3(%arg0: i32) -> (i32, i32) {
    %c0_i32 = arith.constant 0 : i32
    %c0_i32_0 = arith.constant 0 : i32
    %c0_i32_1 = arith.constant 0 : i32
    return %c0_i32, %c0_i32_0 : i32, i32
  }
  func.func @transform_4(%arg0: i32) -> (i32, i32) {
    %c0_i32 = arith.constant 0 : i32
    %c0_i32_0 = arith.constant 0 : i32
    %c0_i32_1 = arith.constant 0 : i32
    return %c0_i32, %c0_i32_0 : i32, i32
  }
  func.func @transform_5(%arg0: i32) -> (i32, i32) {
    %c0_i32 = arith.constant 0 : i32
    %c0_i32_0 = arith.constant 0 : i32
    %c0_i32_1 = arith.constant 0 : i32
    return %c0_i32, %c0_i32_0 : i32, i32
  }
  func.func @transform_6(%arg0: i32) -> (i32, i32) {
    %c0_i32 = arith.constant 0 : i32
    %c0_i32_0 = arith.constant 0 : i32
    %c0_i32_1 = arith.constant 0 : i32
    return %c0_i32, %c0_i32_0 : i32, i32
  }
  func.func @transform_7(%arg0: i32) -> (i32, i32) {
    %c0_i32 = arith.constant 0 : i32
    %c0_i32_0 = arith.constant 0 : i32
    %c0_i32_1 = arith.constant 0 : i32
    return %c0_i32, %c0_i32_0 : i32, i32
  }
  func.func @transform_8(%arg0: i32) -> (i32, i32) {
    %c0_i32 = arith.constant 0 : i32
    %c0_i32_0 = arith.constant 0 : i32
    %c0_i32_1 = arith.constant 0 : i32
    return %c0_i32, %c0_i32_0 : i32, i32
  }
  func.func @transform_9(%arg0: i32) -> (i32, i32) {
    %c0_i32 = arith.constant 0 : i32
    %c0_i32_0 = arith.constant 0 : i32
    %c0_i32_1 = arith.constant 0 : i32
    return %c0_i32, %c0_i32_0 : i32, i32
  }
  func.func @transform_10(%arg0: i32) -> (i32, i32) {
    %c0_i32 = arith.constant 0 : i32
    %c0_i32_0 = arith.constant 0 : i32
    %c0_i32_1 = arith.constant 0 : i32
    return %c0_i32, %c0_i32_0 : i32, i32
  }
  func.func @transform_11(%arg0: i32) -> (i32, i32) {
    %c0_i32 = arith.constant 0 : i32
    %c0_i32_0 = arith.constant 0 : i32
    %c0_i32_1 = arith.constant 0 : i32
    return %c0_i32, %c0_i32_0 : i32, i32
  }
  func.func @transform_12(%arg0: i32) -> (i32, i32) {
    %c0_i32 = arith.constant 0 : i32
    %c0_i32_0 = arith.constant 0 : i32
    %c0_i32_1 = arith.constant 0 : i32
    return %c0_i32, %c0_i32_0 : i32, i32
  }
  func.func @transform_13(%arg0: i32) -> (i32, i32) {
    %c0_i32 = arith.constant 0 : i32
    %c0_i32_0 = arith.constant 0 : i32
    return %arg0, %c0_i32 : i32, i32
  }
  func.func @transform_14(%arg0: i32) -> (i32, i32) {
    %c0_i32 = arith.constant 0 : i32
    %c0_i32_0 = arith.constant 0 : i32
    return %arg0, %c0_i32 : i32, i32
  }
}

</mosaic_0001>

<llo_original>
// kernel: tpu_custom_call.1
$region0: #{tpu_custom_call.1}
  #allocation0 [shape = 'u32[]', space=smem, size = 0x4, offset = 0x4, fixed_abs, tag = 'smem constant byte address 0x4 - core index']
  #allocation1 [shape = 'u32[72,128]{1,0:T(1,128)}', space=vmem, size = 0x9000, scoped, tag = 'internal scratch']
  %s0 = inlined_call_operand.hbm [shape: f32[512,128], index: 0, kind: input, shape index: {}]
  %s1 = inlined_call_operand.hbm [shape: f32[128,256], index: 1, kind: input, shape index: {}]
  %s2 = inlined_call_operand.hbm [shape: f32[1,256], index: 2, kind: input, shape index: {}]
  %s3 = inlined_call_operand.hbm [shape: f32[256,128], index: 3, kind: input, shape index: {}]
  %s4 = inlined_call_operand.vmem [shape: f32[1,128], index: 4, kind: input, shape index: {}]
  %s5 = inlined_call_operand.hbm [shape: f32[128,128], index: 5, kind: input, shape index: {}]
  %s6 = inlined_call_operand.vmem [shape: f32[1,128], index: 6, kind: input, shape index: {}]
  %s7 = inlined_call_operand.hbm [shape: f32[128,128], index: 7, kind: input, shape index: {}]
  %s8 = inlined_call_operand.vmem [shape: f32[1,128], index: 8, kind: input, shape index: {}]
  %s9 = inlined_call_operand.hbm [shape: f32[128,256], index: 9, kind: input, shape index: {}]
  %s10 = inlined_call_operand.vmem [shape: f32[1,256], index: 10, kind: input, shape index: {}]
  %s11 = inlined_call_operand.hbm [shape: f32[256,128], index: 11, kind: input, shape index: {}]
  %s12 = inlined_call_operand.vmem [shape: f32[1,128], index: 12, kind: input, shape index: {}]
  %s13 = inlined_call_operand.hbm [shape: f32[512,128], index: 13, kind: output, shape index: {0}]
  %s14 = inlined_call_operand.hbm [shape: f32[512,128], index: 14, kind: output, shape index: {1}]
  %15 = xla_tuple %s13, %s14
  %s16 = sld [smem:[#allocation0]]
  $region125: #{tpu_custom_call.1} parent=0
    _
  %s18 = ssub.s32 1, %s16
  %s19 = scalar_select 0, %s18, %s16
  $region1: #{tpu_custom_call.1} parent=0
    #allocation2 [shape = 'u8[262144]{0}', space=vmem, size = 0x40000, scoped, tag = 'input window, operand 0']
    #allocation3 [shape = 's32[2]{0}', space=sflag, size = 0x8, scoped, tag = 'scoped memory for tpu_custom_call.1']
    #allocation4 [shape = 's32[2]{0}', space=sflag, size = 0x8, scoped, tag = 'scoped memory for tpu_custom_call.1']
    #allocation5 [shape = 'u8[131072]{0}', space=vmem, size = 0x20000, scoped, tag = 'input window, operand 1, single buffered']
    #allocation6 [shape = 's32[1]{0}', space=sflag, size = 0x4, scoped, tag = 'scoped memory for tpu_custom_call.1']
    #allocation7 [shape = 'u8[1024]{0}', space=vmem, size = 0x400, scoped, tag = 'input window, operand 2, single buffered']
    #allocation8 [shape = 'u8[131072]{0}', space=vmem, size = 0x20000, scoped, tag = 'input window, operand 3, single buffered']
    #allocation9 [shape = 's32[1]{0}', space=sflag, size = 0x4, scoped, tag = 'scoped memory for tpu_custom_call.1']
    #allocation10 [shape = 'u8[65536]{0}', space=vmem, size = 0x10000, scoped, tag = 'input window, operand 5, single buffered']
    #allocation11 [shape = 'u8[65536]{0}', space=vmem, size = 0x10000, scoped, tag = 'input window, operand 7, single buffered']
    #allocation12 [shape = 's32[1]{0}', space=sflag, size = 0x4, scoped, tag = 'scoped memory for tpu_custom_call.1']
    #allocation13 [shape = 'u8[131072]{0}', space=vmem, size = 0x20000, scoped, tag = 'input window, operand 9, single buffered']
    #allocation14 [shape = 'u8[131072]{0}', space=vmem, size = 0x20000, scoped, tag = 'input window, operand 11, single buffered']
    #allocation15 [shape = 's32[1]{0}', space=sflag, size = 0x4, scoped, tag = 'scoped memory for tpu_custom_call.1']
    #allocation16 [shape = 'u8[262144]{0}', space=vmem, size = 0x40000, scoped, tag = 'output window, operand 0']
    #allocation17 [shape = 'u8[262144]{0}', space=vmem, size = 0x40000, scoped, tag = 'output window, operand 1']
    #allocation18 [shape = 's32[2]{0}', space=sflag, size = 0x8, scoped, tag = 'scoped memory for tpu_custom_call.1']
    %20 = vsyncpa [#allocation3], 0
    %s21 = scalar_lea.sflag [#allocation3], 1
    %22 = vsyncpa %s21, 0
    %23 = vsyncpa [#allocation6], 0
    %24 = vsyncpa [#allocation9], 0
    %25 = vsyncpa [#allocation12], 0
    %26 = vsyncpa [#allocation15], 0
    %27 = vsyncpa [#allocation4], 0
    %s28 = scalar_lea.sflag [#allocation4], 1
    %29 = vsyncpa %s28, 0
    %30 = vsyncpa [#allocation18], 0
    %s31 = scalar_lea.sflag [#allocation18], 1
    %32 = vsyncpa %s31, 0
    loop: start=0, step=1, limit=4
    $region2: #{tpu_custom_call.1} parent=1 // loop_pre_header
      _
    $region3: #{tpu_custom_call.1} parent=1 // loop_header
      %s34 = sphi 0, %s38
      %p35 = scmp.ge.s32.totalorder %s34, 4
      %s44 = sphi 0, %s46
      %s47 = sphi 0, %s44
      %s48 = sphi 0, %s47
      %s64 = sphi 0, %s48
      %s68 = sphi 0, %s68
      %s70 = sphi 0, %s68
      %s71 = sphi 0, %s70
      %s85 = sphi 0, %s71
      %s89 = sphi 0, %s89
      %s91 = sphi 0, %s89
      %s92 = sphi 0, %s91
      %s106 = sphi 0, %s92
      %s110 = sphi 0, %s110
      %s112 = sphi 0, %s110
      %s113 = sphi 0, %s112
      %s127 = sphi 0, %s113
      %s131 = sphi 0, %s131
      %s133 = sphi 0, %s131
      %s134 = sphi 0, %s133
      %s148 = sphi 0, %s134
      %s152 = sphi 0, %s152
      %s154 = sphi 0, %s152
      %s155 = sphi 0, %s154
      %s169 = sphi 0, %s155
      %s173 = sphi 0, %s173
      %s175 = sphi 0, %s173
      %s176 = sphi 0, %s175
      %s190 = sphi 0, %s176
      %s194 = sphi 0, %s194
      %s196 = sphi 0, %s194
      %s197 = sphi 0, %s196
      %s211 = sphi 0, %s197
      %s215 = sphi 0, %s215
      %s217 = sphi 0, %s215
      %s218 = sphi 0, %s217
      %s232 = sphi 0, %s218
      %s236 = sphi 0, %s236
      %s238 = sphi 0, %s236
      %s239 = sphi 0, %s238
      %s253 = sphi 0, %s239
      %s257 = sphi 0, %s257
      %s259 = sphi 0, %s257
      %s260 = sphi 0, %s259
      %s274 = sphi 0, %s260
      %s278 = sphi 0, %s278
      %s280 = sphi 0, %s278
      %s281 = sphi 0, %s280
      %s295 = sphi 0, %s281
      %s299 = sphi 0, %s299
      %s301 = sphi 0, %s299
      %s302 = sphi 0, %s301
      %s316 = sphi 0, %s302
      %s322 = sphi 0, %s324
      %s325 = sphi 0, %s322
      %s326 = sphi 0, %s325
      %s342 = sphi 0, %s326
      %s348 = sphi 0, %s350
      %s351 = sphi 0, %s348
      %s352 = sphi 0, %s351
      %s368 = sphi 0, %s352
    $region4: #{tpu_custom_call.1} parent=1 // loop_header_branch
      %37 = sbr.rel (%p35) target = $region8
    $region5: #{tpu_custom_call.1} parent=1 // loop_body
      %s39 = ssub.s32 %s34, 1
      %s40 = ssub.s32 %s34, 2
      %s41 = sadd.s32 %s34, 1
      %s42 = ssub.s32 %s34, %s41
      %p43 = scmp.eq.s32.totalorder %s42, 0
      %s45 = sadd.s32 %s44, 1
      %s46 = scalar_select %p43, %s44, %s45
      %p49 = pneg %p43
      %p50 = scmp.eq.s32.totalorder %s34, 1
      %p51 = por %p49, %p50
      %p52 = scmp.ne.s32.totalorder %s44, %s47
      %p53 = scmp.eq.s32.totalorder %s34, 0
      %p54 = por %p52, %p53
      %p55 = scmp.ne.s32.totalorder %s44, %s47
      %p56 = scmp.eq.s32.totalorder %s39, 1
      %p57 = por %p55, %p56
      %p58 = scmp.ne.s32.totalorder %s47, %s48
      %p59 = scmp.eq.s32.totalorder %s39, 0
      %p60 = por %p58, %p59
      %p61 = scmp.ne.s32.totalorder %s47, %s48
      %p62 = scmp.eq.s32.totalorder %s40, 1
      %p63 = por %p61, %p62
      %p65 = scmp.ne.s32.totalorder %s48, %s64
      %p66 = scmp.eq.s32.totalorder %s40, 0
      %p67 = por %p65, %p66
      %s69 = sadd.s32 %s68, 1
      %p72 = scmp.eq.s32.totalorder %s34, 1
      %p73 = scmp.ne.s32.totalorder %s68, %s70
      %p74 = scmp.eq.s32.totalorder %s34, 0
      %p75 = por %p73, %p74
      %p76 = scmp.ne.s32.totalorder %s68, %s70
      %p77 = scmp.eq.s32.totalorder %s39, 1
      %p78 = por %p76, %p77
      %p79 = scmp.ne.s32.totalorder %s70, %s71
      %p80 = scmp.eq.s32.totalorder %s39, 0
      %p81 = por %p79, %p80
      %p82 = scmp.ne.s32.totalorder %s70, %s71
      %p83 = scmp.eq.s32.totalorder %s40, 1
      %p84 = por %p82, %p83
      %p86 = scmp.ne.s32.totalorder %s71, %s85
      %p87 = scmp.eq.s32.totalorder %s40, 0
      %p88 = por %p86, %p87
      %s90 = sadd.s32 %s89, 1
      %p93 = scmp.eq.s32.totalorder %s34, 1
      %p94 = scmp.ne.s32.totalorder %s89, %s91
      %p95 = scmp.eq.s32.totalorder %s34, 0
      %p96 = por %p94, %p95
      %p97 = scmp.ne.s32.totalorder %s89, %s91
      %p98 = scmp.eq.s32.totalorder %s39, 1
      %p99 = por %p97, %p98
      %p100 = scmp.ne.s32.totalorder %s91, %s92
      %p101 = scmp.eq.s32.totalorder %s39, 0
      %p102 = por %p100, %p101
      %p103 = scmp.ne.s32.totalorder %s91, %s92
      %p104 = scmp.eq.s32.totalorder %s40, 1
      %p105 = por %p103, %p104
      %p107 = scmp.ne.s32.totalorder %s92, %s106
      %p108 = scmp.eq.s32.totalorder %s40, 0
      %p109 = por %p107, %p108
      %s111 = sadd.s32 %s110, 1
      %p114 = scmp.eq.s32.totalorder %s34, 1
      %p115 = scmp.ne.s32.totalorder %s110, %s112
      %p116 = scmp.eq.s32.totalorder %s34, 0
      %p117 = por %p115, %p116
      %p118 = scmp.ne.s32.totalorder %s110, %s112
      %p119 = scmp.eq.s32.totalorder %s39, 1
      %p120 = por %p118, %p119
      %p121 = scmp.ne.s32.totalorder %s112, %s113
      %p122 = scmp.eq.s32.totalorder %s39, 0
      %p123 = por %p121, %p122
      %p124 = scmp.ne.s32.totalorder %s112, %s113
      %p125 = scmp.eq.s32.totalorder %s40, 1
      %p126 = por %p124, %p125
      %p128 = scmp.ne.s32.totalorder %s113, %s127
      %p129 = scmp.eq.s32.totalorder %s40, 0
      %p130 = por %p128, %p129
      %s132 = sadd.s32 %s131, 1
      %p135 = scmp.eq.s32.totalorder %s34, 1
      %p136 = scmp.ne.s32.totalorder %s131, %s133
      %p137 = scmp.eq.s32.totalorder %s34, 0
      %p138 = por %p136, %p137
      %p139 = scmp.ne.s32.totalorder %s131, %s133
      %p140 = scmp.eq.s32.totalorder %s39, 1
      %p141 = por %p139, %p140
      %p142 = scmp.ne.s32.totalorder %s133, %s134
      %p143 = scmp.eq.s32.totalorder %s39, 0
      %p144 = por %p142, %p143
      %p145 = scmp.ne.s32.totalorder %s133, %s134
      %p146 = scmp.eq.s32.totalorder %s40, 1
      %p147 = por %p145, %p146
      %p149 = scmp.ne.s32.totalorder %s134, %s148
      %p150 = scmp.eq.s32.totalorder %s40, 0
      %p151 = por %p149, %p150
      %s153 = sadd.s32 %s152, 1
      %p156 = scmp.eq.s32.totalorder %s34, 1
      %p157 = scmp.ne.s32.totalorder %s152, %s154
      %p158 = scmp.eq.s32.totalorder %s34, 0
      %p159 = por %p157, %p158
      %p160 = scmp.ne.s32.totalorder %s152, %s154
      %p161 = scmp.eq.s32.totalorder %s39, 1
      %p162 = por %p160, %p161
      %p163 = scmp.ne.s32.totalorder %s154, %s155
      %p164 = scmp.eq.s32.totalorder %s39, 0
      %p165 = por %p163, %p164
      %p166 = scmp.ne.s32.totalorder %s154, %s155
      %p167 = scmp.eq.s32.totalorder %s40, 1
      %p168 = por %p166, %p167
      %p170 = scmp.ne.s32.totalorder %s155, %s169
      %p171 = scmp.eq.s32.totalorder %s40, 0
      %p172 = por %p170, %p171
      %s174 = sadd.s32 %s173, 1
      %p177 = scmp.eq.s32.totalorder %s34, 1
      %p178 = scmp.ne.s32.totalorder %s173, %s175
      %p179 = scmp.eq.s32.totalorder %s34, 0
      %p180 = por %p178, %p179
      %p181 = scmp.ne.s32.totalorder %s173, %s175
      %p182 = scmp.eq.s32.totalorder %s39, 1
      %p183 = por %p181, %p182
      %p184 = scmp.ne.s32.totalorder %s175, %s176
      %p185 = scmp.eq.s32.totalorder %s39, 0
      %p186 = por %p184, %p185
      %p187 = scmp.ne.s32.totalorder %s175, %s176
      %p188 = scmp.eq.s32.totalorder %s40, 1
      %p189 = por %p187, %p188
      %p191 = scmp.ne.s32.totalorder %s176, %s190
      %p192 = scmp.eq.s32.totalorder %s40, 0
      %p193 = por %p191, %p192
      %s195 = sadd.s32 %s194, 1
      %p198 = scmp.eq.s32.totalorder %s34, 1
      %p199 = scmp.ne.s32.totalorder %s194, %s196
      %p200 = scmp.eq.s32.totalorder %s34, 0
      %p201 = por %p199, %p200
      %p202 = scmp.ne.s32.totalorder %s194, %s196
      %p203 = scmp.eq.s32.totalorder %s39, 1
      %p204 = por %p202, %p203
      %p205 = scmp.ne.s32.totalorder %s196, %s197
      %p206 = scmp.eq.s32.totalorder %s39, 0
      %p207 = por %p205, %p206
      %p208 = scmp.ne.s32.totalorder %s196, %s197
      %p209 = scmp.eq.s32.totalorder %s40, 1
      %p210 = por %p208, %p209
      %p212 = scmp.ne.s32.totalorder %s197, %s211
      %p213 = scmp.eq.s32.totalorder %s40, 0
      %p214 = por %p212, %p213
      %s216 = sadd.s32 %s215, 1
      %p219 = scmp.eq.s32.totalorder %s34, 1
      %p220 = scmp.ne.s32.totalorder %s215, %s217
      %p221 = scmp.eq.s32.totalorder %s34, 0
      %p222 = por %p220, %p221
      %p223 = scmp.ne.s32.totalorder %s215, %s217
      %p224 = scmp.eq.s32.totalorder %s39, 1
      %p225 = por %p223, %p224
      %p226 = scmp.ne.s32.totalorder %s217, %s218
      %p227 = scmp.eq.s32.totalorder %s39, 0
      %p228 = por %p226, %p227
      %p229 = scmp.ne.s32.totalorder %s217, %s218
      %p230 = scmp.eq.s32.totalorder %s40, 1
      %p231 = por %p229, %p230
      %p233 = scmp.ne.s32.totalorder %s218, %s232
      %p234 = scmp.eq.s32.totalorder %s40, 0
      %p235 = por %p233, %p234
      %s237 = sadd.s32 %s236, 1
      %p240 = scmp.eq.s32.totalorder %s34, 1
      %p241 = scmp.ne.s32.totalorder %s236, %s238
      %p242 = scmp.eq.s32.totalorder %s34, 0
      %p243 = por %p241, %p242
      %p244 = scmp.ne.s32.totalorder %s236, %s238
      %p245 = scmp.eq.s32.totalorder %s39, 1
      %p246 = por %p244, %p245
      %p247 = scmp.ne.s32.totalorder %s238, %s239
      %p248 = scmp.eq.s32.totalorder %s39, 0
      %p249 = por %p247, %p248
      %p250 = scmp.ne.s32.totalorder %s238, %s239
      %p251 = scmp.eq.s32.totalorder %s40, 1
      %p252 = por %p250, %p251
      %p254 = scmp.ne.s32.totalorder %s239, %s253
      %p255 = scmp.eq.s32.totalorder %s40, 0
      %p256 = por %p254, %p255
      %s258 = sadd.s32 %s257, 1
      %p261 = scmp.eq.s32.totalorder %s34, 1
      %p262 = scmp.ne.s32.totalorder %s257, %s259
      %p263 = scmp.eq.s32.totalorder %s34, 0
      %p264 = por %p262, %p263
      %p265 = scmp.ne.s32.totalorder %s257, %s259
      %p266 = scmp.eq.s32.totalorder %s39, 1
      %p267 = por %p265, %p266
      %p268 = scmp.ne.s32.totalorder %s259, %s260
      %p269 = scmp.eq.s32.totalorder %s39, 0
      %p270 = por %p268, %p269
      %p271 = scmp.ne.s32.totalorder %s259, %s260
      %p272 = scmp.eq.s32.totalorder %s40, 1
      %p273 = por %p271, %p272
      %p275 = scmp.ne.s32.totalorder %s260, %s274
      %p276 = scmp.eq.s32.totalorder %s40, 0
      %p277 = por %p275, %p276
      %s279 = sadd.s32 %s278, 1
      %p282 = scmp.eq.s32.totalorder %s34, 1
      %p283 = scmp.ne.s32.totalorder %s278, %s280
      %p284 = scmp.eq.s32.totalorder %s34, 0
      %p285 = por %p283, %p284
      %p286 = scmp.ne.s32.totalorder %s278, %s280
      %p287 = scmp.eq.s32.totalorder %s39, 1
      %p288 = por %p286, %p287
      %p289 = scmp.ne.s32.totalorder %s280, %s281
      %p290 = scmp.eq.s32.totalorder %s39, 0
      %p291 = por %p289, %p290
      %p292 = scmp.ne.s32.totalorder %s280, %s281
      %p293 = scmp.eq.s32.totalorder %s40, 1
      %p294 = por %p292, %p293
      %p296 = scmp.ne.s32.totalorder %s281, %s295
      %p297 = scmp.eq.s32.totalorder %s40, 0
      %p298 = por %p296, %p297
      %s300 = sadd.s32 %s299, 1
      %p303 = scmp.eq.s32.totalorder %s34, 1
      %p304 = scmp.ne.s32.totalorder %s299, %s301
      %p305 = scmp.eq.s32.totalorder %s34, 0
      %p306 = por %p304, %p305
      %p307 = scmp.ne.s32.totalorder %s299, %s301
      %p308 = scmp.eq.s32.totalorder %s39, 1
      %p309 = por %p307, %p308
      %p310 = scmp.ne.s32.totalorder %s301, %s302
      %p311 = scmp.eq.s32.totalorder %s39, 0
      %p312 = por %p310, %p311
      %p313 = scmp.ne.s32.totalorder %s301, %s302
      %p314 = scmp.eq.s32.totalorder %s40, 1
      %p315 = por %p313, %p314
      %p317 = scmp.ne.s32.totalorder %s302, %s316
      %p318 = scmp.eq.s32.totalorder %s40, 0
      %p319 = por %p317, %p318
      %s320 = ssub.s32 %s34, %s41
      %p321 = scmp.eq.s32.totalorder %s320, 0
      %s323 = sadd.s32 %s322, 1
      %s324 = scalar_select %p321, %s322, %s323
      %p327 = pneg %p321
      %p328 = scmp.eq.s32.totalorder %s34, 1
      %p329 = por %p327, %p328
      %p330 = scmp.ne.s32.totalorder %s322, %s325
      %p331 = scmp.eq.s32.totalorder %s34, 0
      %p332 = por %p330, %p331
      %p333 = scmp.ne.s32.totalorder %s322, %s325
      %p334 = scmp.eq.s32.totalorder %s39, 1
      %p335 = por %p333, %p334
      %p336 = scmp.ne.s32.totalorder %s325, %s326
      %p337 = scmp.eq.s32.totalorder %s39, 0
      %p338 = por %p336, %p337
      %p339 = scmp.ne.s32.totalorder %s325, %s326
      %p340 = scmp.eq.s32.totalorder %s40, 1
      %p341 = por %p339, %p340
      %p343 = scmp.ne.s32.totalorder %s326, %s342
      %p344 = scmp.eq.s32.totalorder %s40, 0
      %p345 = por %p343, %p344
      %s346 = ssub.s32 %s34, %s41
      %p347 = scmp.eq.s32.totalorder %s346, 0
      %s349 = sadd.s32 %s348, 1
      %s350 = scalar_select %p347, %s348, %s349
      %p353 = pneg %p347
      %p354 = scmp.eq.s32.totalorder %s34, 1
      %p355 = por %p353, %p354
      %p356 = scmp.ne.s32.totalorder %s348, %s351
      %p357 = scmp.eq.s32.totalorder %s34, 0
      %p358 = por %p356, %p357
      %p359 = scmp.ne.s32.totalorder %s348, %s351
      %p360 = scmp.eq.s32.totalorder %s39, 1
      %p361 = por %p359, %p360
      %p362 = scmp.ne.s32.totalorder %s351, %s352
      %p363 = scmp.eq.s32.totalorder %s39, 0
      %p364 = por %p362, %p363
      %p365 = scmp.ne.s32.totalorder %s351, %s352
      %p366 = scmp.eq.s32.totalorder %s40, 1
      %p367 = por %p365, %p366
      %p369 = scmp.ne.s32.totalorder %s352, %s368
      %p370 = scmp.eq.s32.totalorder %s40, 0
      %p371 = por %p369, %p370
      %p372 = scmp.le.s32.totalorder 1, %s34
      %p373 = scmp.lt.s32.totalorder %s34, 3
      %p374 = pnand %p372, %p373
      %p375 = pneg %p374
      // Predicated region
      $region9: #{tpu_custom_call.1} parent=5 // pred_check
        _
      $region10: #{tpu_custom_call.1} parent=5 // pred_check_branch
        %377 = sbr.rel (%p374) target = $region12
      $region11: #{tpu_custom_call.1} parent=5 // pred_region
        %s378 = ssub.s32 %s34, 1
        // Predicated region
        $region13: #{tpu_custom_call.1} parent=11 // pred_check
          %p379 = pneg %p81
        $region14: #{tpu_custom_call.1} parent=11 // pred_check_branch
          %381 = sbr.rel (%p379) target = $region16
        $region15: #{tpu_custom_call.1} parent=11 // pred_region
          %383 = vsyncadd [#allocation6], 0
          %s384 = sshll.u32 %s1, 4
          %s385 = int_to_ptr.hbm [resolvable:$true] %s384
          %s386 = sshll.u32 [#allocation5], 4
          %s387 = int_to_ptr.vmem [resolvable:$true] %s386
          %392 = dma.hbm_to_vmem [thread:$0]  %s385, 4096, %s387, [#allocation6], 256, 256, 16
        $region16: #{tpu_custom_call.1} parent=11 // pred_fallthru
          _
        // Predicated region
        $region17: #{tpu_custom_call.1} parent=11 // pred_check
          %p393 = pneg %p102
        $region18: #{tpu_custom_call.1} parent=11 // pred_check_branch
          %395 = sbr.rel (%p393) target = $region20
        $region19: #{tpu_custom_call.1} parent=11 // pred_region
          %397 = vsyncadd [#allocation6], 0
          %s399 = sshll.u32 %s2, 4
          %s400 = int_to_ptr.hbm [resolvable:$true] %s399
          %s401 = sshll.u32 [#allocation7], 4
          %s402 = int_to_ptr.vmem [resolvable:$true] %s401
          %404 = dma.hbm_to_vmem [thread:$0]  %s400, 32, %s402, [#allocation6]
        $region20: #{tpu_custom_call.1} parent=11 // pred_fallthru
          _
        // Predicated region
        $region21: #{tpu_custom_call.1} parent=11 // pred_check
          %p405 = pneg %p123
        $region22: #{tpu_custom_call.1} parent=11 // pred_check_branch
          %407 = sbr.rel (%p405) target = $region24
        $region23: #{tpu_custom_call.1} parent=11 // pred_region
          %409 = vsyncadd [#allocation9], 0
          %s410 = sshll.u32 %s3, 4
          %s411 = int_to_ptr.hbm [resolvable:$true] %s410
          %s412 = sshll.u32 [#allocation8], 4
          %s413 = int_to_ptr.vmem [resolvable:$true] %s412
          %418 = dma.hbm_to_vmem [thread:$0]  %s411, 4096, %s413, [#allocation9], 128, 128, 8
        $region24: #{tpu_custom_call.1} parent=11 // pred_fallthru
          _
        // Predicated region
        $region25: #{tpu_custom_call.1} parent=11 // pred_check
          %p419 = pneg %p144
        $region26: #{tpu_custom_call.1} parent=11 // pred_check_branch
          %421 = sbr.rel (%p419) target = $region28
        $region27: #{tpu_custom_call.1} parent=11 // pred_region
          _
        $region28: #{tpu_custom_call.1} parent=11 // pred_fallthru
          _
        // Predicated region
        $region29: #{tpu_custom_call.1} parent=11 // pred_check
          %p422 = pneg %p165
        $region30: #{tpu_custom_call.1} parent=11 // pred_check_branch
          %424 = sbr.rel (%p422) target = $region32
        $region31: #{tpu_custom_call.1} parent=11 // pred_region
          %426 = vsyncadd [#allocation9], 0
          %s427 = sshll.u32 %s5, 4
          %s428 = int_to_ptr.hbm [resolvable:$true] %s427
          %s429 = sshll.u32 [#allocation10], 4
          %s430 = int_to_ptr.vmem [resolvable:$true] %s429
          %435 = dma.hbm_to_vmem [thread:$0]  %s428, 2048, %s430, [#allocation9], 128, 128, 8
        $region32: #{tpu_custom_call.1} parent=11 // pred_fallthru
          _
        // Predicated region
        $region33: #{tpu_custom_call.1} parent=11 // pred_check
          %p436 = pneg %p186
        $region34: #{tpu_custom_call.1} parent=11 // pred_check_branch
          %438 = sbr.rel (%p436) target = $region36
        $region35: #{tpu_custom_call.1} parent=11 // pred_region
          _
        $region36: #{tpu_custom_call.1} parent=11 // pred_fallthru
          _
        // Predicated region
        $region37: #{tpu_custom_call.1} parent=11 // pred_check
          %p439 = pneg %p207
        $region38: #{tpu_custom_call.1} parent=11 // pred_check_branch
          %441 = sbr.rel (%p439) target = $region40
        $region39: #{tpu_custom_call.1} parent=11 // pred_region
          %443 = vsyncadd [#allocation12], 0
          %s444 = sshll.u32 %s7, 4
          %s445 = int_to_ptr.hbm [resolvable:$true] %s444
          %s446 = sshll.u32 [#allocation11], 4
          %s447 = int_to_ptr.vmem [resolvable:$true] %s446
          %452 = dma.hbm_to_vmem [thread:$0]  %s445, 2048, %s447, [#allocation12], 128, 128, 8
        $region40: #{tpu_custom_call.1} parent=11 // pred_fallthru
          _
        // Predicated region
        $region41: #{tpu_custom_call.1} parent=11 // pred_check
          %p453 = pneg %p228
        $region42: #{tpu_custom_call.1} parent=11 // pred_check_branch
          %455 = sbr.rel (%p453) target = $region44
        $region43: #{tpu_custom_call.1} parent=11 // pred_region
          _
        $region44: #{tpu_custom_call.1} parent=11 // pred_fallthru
          _
        // Predicated region
        $region45: #{tpu_custom_call.1} parent=11 // pred_check
          %p456 = pneg %p249
        $region46: #{tpu_custom_call.1} parent=11 // pred_check_branch
          %458 = sbr.rel (%p456) target = $region48
        $region47: #{tpu_custom_call.1} parent=11 // pred_region
          %460 = vsyncadd [#allocation12], 0
          %s461 = sshll.u32 %s9, 4
          %s462 = int_to_ptr.hbm [resolvable:$true] %s461
          %s463 = sshll.u32 [#allocation13], 4
          %s464 = int_to_ptr.vmem [resolvable:$true] %s463
          %469 = dma.hbm_to_vmem [thread:$0]  %s462, 4096, %s464, [#allocation12], 256, 256, 16
        $region48: #{tpu_custom_call.1} parent=11 // pred_fallthru
          _
        // Predicated region
        $region49: #{tpu_custom_call.1} parent=11 // pred_check
          %p470 = pneg %p270
        $region50: #{tpu_custom_call.1} parent=11 // pred_check_branch
          %472 = sbr.rel (%p470) target = $region52
        $region51: #{tpu_custom_call.1} parent=11 // pred_region
          _
        $region52: #{tpu_custom_call.1} parent=11 // pred_fallthru
          _
        // Predicated region
        $region53: #{tpu_custom_call.1} parent=11 // pred_check
          %p473 = pneg %p291
        $region54: #{tpu_custom_call.1} parent=11 // pred_check_branch
          %475 = sbr.rel (%p473) target = $region56
        $region55: #{tpu_custom_call.1} parent=11 // pred_region
          %477 = vsyncadd [#allocation15], 0
          %s478 = sshll.u32 %s11, 4
          %s479 = int_to_ptr.hbm [resolvable:$true] %s478
          %s480 = sshll.u32 [#allocation14], 4
          %s481 = int_to_ptr.vmem [resolvable:$true] %s480
          %486 = dma.hbm_to_vmem [thread:$0]  %s479, 4096, %s481, [#allocation15], 128, 128, 8
        $region56: #{tpu_custom_call.1} parent=11 // pred_fallthru
          _
        // Predicated region
        $region57: #{tpu_custom_call.1} parent=11 // pred_check
          %p487 = pneg %p312
        $region58: #{tpu_custom_call.1} parent=11 // pred_check_branch
          %489 = sbr.rel (%p487) target = $region60
        $region59: #{tpu_custom_call.1} parent=11 // pred_region
          _
        $region60: #{tpu_custom_call.1} parent=11 // pred_fallthru
          _
      $region12: #{tpu_custom_call.1} parent=5 // pred_fallthru
        _
      %p490 = scmp.lt.s32.totalorder %s34, 2
      // Predicated region
      $region61: #{tpu_custom_call.1} parent=5 // pred_check
        %p491 = pneg %p490
      $region62: #{tpu_custom_call.1} parent=5 // pred_check_branch
        %493 = sbr.rel (%p491) target = $region64
      $region63: #{tpu_custom_call.1} parent=5 // pred_region
        // Predicated region
        $region65: #{tpu_custom_call.1} parent=63 // pred_check
          %p494 = pneg %p54
        $region66: #{tpu_custom_call.1} parent=63 // pred_check_branch
          %496 = sbr.rel (%p494) target = $region68
        $region67: #{tpu_custom_call.1} parent=63 // pred_region
          %s497 = sand.u32 %s44, 1
          %s498 = scalar_lea.sflag [#allocation3], %s497
          %s499 = sand.u32 %s44, 1
          %s500 = smul.addr %s499, 256
          %s501 = scalar_lea.vmem [#allocation2], %s500
          %s502 = smul.u32 32, %s34
          %504 = vsyncadd %s498, 0
          %s505 = smul.addr %s502, 8
          %s506 = scalar_lea.hbm %s0, %s505
          %s507 = sshll.u32 %s506, 4
          %s508 = int_to_ptr.hbm [resolvable:$true] %s507
          %s509 = sshll.u32 %s501, 4
          %s510 = int_to_ptr.vmem [resolvable:$true] %s509
          %515 = dma.hbm_to_vmem [thread:$0]  %s508, 4096, %s510, %s498, 128, 128, 8
        $region68: #{tpu_custom_call.1} parent=63 // pred_fallthru
          _
      $region64: #{tpu_custom_call.1} parent=5 // pred_fallthru
        _
      %p516 = scmp.le.s32.totalorder 1, %s34
      %p517 = scmp.lt.s32.totalorder %s34, 3
      %p518 = pnand %p516, %p517
      %p519 = pneg %p518
      // Predicated region
      $region69: #{tpu_custom_call.1} parent=5 // pred_check
        _
      $region70: #{tpu_custom_call.1} parent=5 // pred_check_branch
        %521 = sbr.rel (%p518) target = $region72
      $region71: #{tpu_custom_call.1} parent=5 // pred_region
        %s522 = ssub.s32 %s34, 1
        %s523 = sand.u32 %s47, 1
        %s524 = scalar_lea.sflag [#allocation3], %s523
        %s525 = sand.u32 %s47, 1
        %s526 = smul.addr %s525, 256
        %s527 = scalar_lea.vmem [#allocation2], %s526
        // Predicated region
        $region73: #{tpu_custom_call.1} parent=71 // pred_check
          %p528 = pneg %p60
        $region74: #{tpu_custom_call.1} parent=71 // pred_check_branch
          %530 = sbr.rel (%p528) target = $region76
        $region75: #{tpu_custom_call.1} parent=71 // pred_region
          %532 = dma.done %s524, 4096
        $region76: #{tpu_custom_call.1} parent=71 // pred_fallthru
          _
        // Predicated region
        $region77: #{tpu_custom_call.1} parent=71 // pred_check
          %p533 = pneg %p81
        $region78: #{tpu_custom_call.1} parent=71 // pred_check_branch
          %535 = sbr.rel (%p533) target = $region80
        $region79: #{tpu_custom_call.1} parent=71 // pred_region
          %537 = dma.done [#allocation6], 4096
        $region80: #{tpu_custom_call.1} parent=71 // pred_fallthru
          _
        // Predicated region
        $region81: #{tpu_custom_call.1} parent=71 // pred_check
          %p538 = pneg %p102
        $region82: #{tpu_custom_call.1} parent=71 // pred_check_branch
          %540 = sbr.rel (%p538) target = $region84
        $region83: #{tpu_custom_call.1} parent=71 // pred_region
          %542 = dma.done [#allocation6], 32
        $region84: #{tpu_custom_call.1} parent=71 // pred_fallthru
          _
        // Predicated region
        $region85: #{tpu_custom_call.1} parent=71 // pred_check
          %p543 = pneg %p123
        $region86: #{tpu_custom_call.1} parent=71 // pred_check_branch
          %545 = sbr.rel (%p543) target = $region88
        $region87: #{tpu_custom_call.1} parent=71 // pred_region
          %547 = dma.done [#allocation9], 4096
        $region88: #{tpu_custom_call.1} parent=71 // pred_fallthru
          _
        // Predicated region
        $region89: #{tpu_custom_call.1} parent=71 // pred_check
          %p548 = pneg %p165
        $region90: #{tpu_custom_call.1} parent=71 // pred_check_branch
          %550 = sbr.rel (%p548) target = $region92
        $region91: #{tpu_custom_call.1} parent=71 // pred_region
          %552 = dma.done [#allocation9], 2048
        $region92: #{tpu_custom_call.1} parent=71 // pred_fallthru
          _
        // Predicated region
        $region93: #{tpu_custom_call.1} parent=71 // pred_check
          %p553 = pneg %p207
        $region94: #{tpu_custom_call.1} parent=71 // pred_check_branch
          %555 = sbr.rel (%p553) target = $region96
        $region95: #{tpu_custom_call.1} parent=71 // pred_region
          %557 = dma.done [#allocation12], 2048
        $region96: #{tpu_custom_call.1} parent=71 // pred_fallthru
          _
        // Predicated region
        $region97: #{tpu_custom_call.1} parent=71 // pred_check
          %p558 = pneg %p249
        $region98: #{tpu_custom_call.1} parent=71 // pred_check_branch
          %560 = sbr.rel (%p558) target = $region100
        $region99: #{tpu_custom_call.1} parent=71 // pred_region
          %562 = dma.done [#allocation12], 4096
        $region100: #{tpu_custom_call.1} parent=71 // pred_fallthru
          _
        // Predicated region
        $region101: #{tpu_custom_call.1} parent=71 // pred_check
          %p563 = pneg %p291
        $region102: #{tpu_custom_call.1} parent=71 // pred_check_branch
          %565 = sbr.rel (%p563) target = $region104
        $region103: #{tpu_custom_call.1} parent=71 // pred_region
          %567 = dma.done [#allocation15], 4096
        $region104: #{tpu_custom_call.1} parent=71 // pred_fallthru
          _
        %s568 = sand.u32 %s47, 1
        %s569 = scalar_lea.sflag [#allocation3], %s568
        %s570 = sand.u32 %s47, 1
        %s571 = smul.addr %s570, 256
        %s572 = scalar_lea.vmem [#allocation2], %s571
        %p573 = pneg %p60
        %p574 = pneg %p57
        %p575 = pneg %p81
        %p576 = pneg %p78
        %p577 = pneg %p102
        %p578 = pneg %p99
        %p579 = pneg %p123
        %p580 = pneg %p120
        %p581 = pneg %p144
        %p582 = pneg %p141
        %p583 = pneg %p165
        %p584 = pneg %p162
        %p585 = pneg %p186
        %p586 = pneg %p183
        %p587 = pneg %p207
        %p588 = pneg %p204
        %p589 = pneg %p228
        %p590 = pneg %p225
        %p591 = pneg %p249
        %p592 = pneg %p246
        %p593 = pneg %p270
        %p594 = pneg %p267
        %p595 = pneg %p291
        %p596 = pneg %p288
        %p597 = pneg %p312
        %p598 = pneg %p309
        %p599 = pneg %p338
        %p600 = pneg %p335
        %s601 = sand.u32 %s325, 1
        %s602 = scalar_lea.sflag [#allocation4], %s601
        %s603 = sand.u32 %s325, 1
        %s604 = smul.addr %s603, 256
        %s605 = scalar_lea.vmem [#allocation16], %s604
        %p606 = pneg %p364
        %p607 = pneg %p361
        %s608 = sand.u32 %s351, 1
        %s609 = scalar_lea.sflag [#allocation18], %s608
        %s610 = sand.u32 %s351, 1
        %s611 = smul.addr %s610, 256
        %s612 = scalar_lea.vmem [#allocation17], %s611
        %s613 = smul.u32 32, %s39
        %s614 = smul.u32 32, %s39
        %s615 = smul.u32 32, %s39
        %v616 = vld [vmem:[%s527] sm:$0xff]
        %v617 = vld [vmem:[%s527 + $0x8] sm:$0xff]
        %v618 = vld [vmem:[%s527 + $0x10] sm:$0xff]
        %v619 = vld [vmem:[%s527 + $0x18] sm:$0xff]
        %v620 = vld [vmem:[%s527 + $0x20] sm:$0xff]
        %v621 = vld [vmem:[%s527 + $0x28] sm:$0xff]
        %v622 = vld [vmem:[%s527 + $0x30] sm:$0xff]
        %v623 = vld [vmem:[%s527 + $0x38] sm:$0xff]
        %v624 = vld [vmem:[%s527 + $0x40] sm:$0xff]
        %v625 = vld [vmem:[%s527 + $0x48] sm:$0xff]
        %v626 = vld [vmem:[%s527 + $0x50] sm:$0xff]
        %v627 = vld [vmem:[%s527 + $0x58] sm:$0xff]
        %v628 = vld [vmem:[%s527 + $0x60] sm:$0xff]
        %v629 = vld [vmem:[%s527 + $0x68] sm:$0xff]
        %v630 = vld [vmem:[%s527 + $0x70] sm:$0xff]
        %v631 = vld [vmem:[%s527 + $0x78] sm:$0xff]
        %v632 = vld [vmem:[%s527 + $0x80] sm:$0xff]
        %v633 = vld [vmem:[%s527 + $0x88] sm:$0xff]
        %v634 = vld [vmem:[%s527 + $0x90] sm:$0xff]
        %v635 = vld [vmem:[%s527 + $0x98] sm:$0xff]
        %v636 = vld [vmem:[%s527 + $0xa0] sm:$0xff]
        %v637 = vld [vmem:[%s527 + $0xa8] sm:$0xff]
        %v638 = vld [vmem:[%s527 + $0xb0] sm:$0xff]
        %v639 = vld [vmem:[%s527 + $0xb8] sm:$0xff]
        %v640 = vld [vmem:[%s527 + $0xc0] sm:$0xff]
        %v641 = vld [vmem:[%s527 + $0xc8] sm:$0xff]
        %v642 = vld [vmem:[%s527 + $0xd0] sm:$0xff]
        %v643 = vld [vmem:[%s527 + $0xd8] sm:$0xff]
        %v644 = vld [vmem:[%s527 + $0xe0] sm:$0xff]
        %v645 = vld [vmem:[%s527 + $0xe8] sm:$0xff]
        %v646 = vld [vmem:[%s527 + $0xf0] sm:$0xff]
        %v647 = vld [vmem:[%s527 + $0xf8] sm:$0xff]
        %v648 = vld [vmem:[#allocation5] sm:$0xff]
        %v649 = vld [vmem:[#allocation5 + $0x8] sm:$0xff]
        %v650 = vld [vmem:[#allocation5 + $0x10] sm:$0xff]
        %v651 = vld [vmem:[#allocation5 + $0x18] sm:$0xff]
        %v652 = vld [vmem:[#allocation5 + $0x20] sm:$0xff]
        %v653 = vld [vmem:[#allocation5 + $0x28] sm:$0xff]
        %v654 = vld [vmem:[#allocation5 + $0x30] sm:$0xff]
        %v655 = vld [vmem:[#allocation5 + $0x38] sm:$0xff]
        %v656 = vld [vmem:[#allocation5 + $0x40] sm:$0xff]
        %v657 = vld [vmem:[#allocation5 + $0x48] sm:$0xff]
        %v658 = vld [vmem:[#allocation5 + $0x50] sm:$0xff]
        %v659 = vld [vmem:[#allocation5 + $0x58] sm:$0xff]
        %v660 = vld [vmem:[#allocation5 + $0x60] sm:$0xff]
        %v661 = vld [vmem:[#allocation5 + $0x68] sm:$0xff]
        %v662 = vld [vmem:[#allocation5 + $0x70] sm:$0xff]
        %v663 = vld [vmem:[#allocation5 + $0x78] sm:$0xff]
        %v664 = vld [vmem:[#allocation5 + $0x80] sm:$0xff]
        %v665 = vld [vmem:[#allocation5 + $0x88] sm:$0xff]
        %v666 = vld [vmem:[#allocation5 + $0x90] sm:$0xff]
        %v667 = vld [vmem:[#allocation5 + $0x98] sm:$0xff]
        %v668 = vld [vmem:[#allocation5 + $0xa0] sm:$0xff]
        %v669 = vld [vmem:[#allocation5 + $0xa8] sm:$0xff]
        %v670 = vld [vmem:[#allocation5 + $0xb0] sm:$0xff]
        %v671 = vld [vmem:[#allocation5 + $0xb8] sm:$0xff]
        %v672 = vld [vmem:[#allocation5 + $0xc0] sm:$0xff]
        %v673 = vld [vmem:[#allocation5 + $0xc8] sm:$0xff]
        %v674 = vld [vmem:[#allocation5 + $0xd0] sm:$0xff]
        %v675 = vld [vmem:[#allocation5 + $0xd8] sm:$0xff]
        %v676 = vld [vmem:[#allocation5 + $0xe0] sm:$0xff]
        %v677 = vld [vmem:[#allocation5 + $0xe8] sm:$0xff]
        %v678 = vld [vmem:[#allocation5 + $0xf0] sm:$0xff]
        %v679 = vld [vmem:[#allocation5 + $0xf8] sm:$0xff]
        %v680 = vld [vmem:[#allocation7] sm:$0x3]
        %v682 = vperm.slane %v680, 0
        %v683 = vperm.slane %v680, 1
        %686 = vmatpush.msra.mxu0 %v678
        %687 = vmatpush.msra.mxu0 %v676
        %688 = vmatpush.msra.mxu0 %v674
        %689 = vmatpush.msra.mxu0 %v672
        %690 = vmatpush.msra.mxu0 %v670
        %691 = vmatpush.msra.mxu0 %v668
        %692 = vmatpush.msra.mxu0 %v666
        %693 = vmatpush.msra.mxu0 %v664
        %694 = vmatpush.msra.mxu0 %v662
        %695 = vmatpush.msra.mxu0 %v660
        %696 = vmatpush.msra.mxu0 %v658
        %697 = vmatpush.msra.mxu0 %v656
        %698 = vmatpush.msra.mxu0 %v654
        %699 = vmatpush.msra.mxu0 %v652
        %700 = vmatpush.msra.mxu0 %v650
        %701 = vmatpush.msra.mxu0 %v648
        %702 = vmatmul.f32.gmra.mxu0 %v616
        %v703 = vpop.f32.mrf.mxu0
        %v704 = vadd.f32 %v682, %v703
        %705 = vmatmul.f32.gmra.mxu0 %v617
        %v706 = vpop.f32.mrf.mxu0
        %v707 = vadd.f32 %v682, %v706
        %708 = vmatmul.f32.gmra.mxu0 %v618
        %v709 = vpop.f32.mrf.mxu0
        %v710 = vadd.f32 %v682, %v709
        %711 = vmatmul.f32.gmra.mxu0 %v619
        %v712 = vpop.f32.mrf.mxu0
        %v713 = vadd.f32 %v682, %v712
        %714 = vmatmul.f32.gmra.mxu0 %v620
        %v715 = vpop.f32.mrf.mxu0
        %v716 = vadd.f32 %v682, %v715
        %717 = vmatmul.f32.gmra.mxu0 %v621
        %v718 = vpop.f32.mrf.mxu0
        %v719 = vadd.f32 %v682, %v718
        %720 = vmatmul.f32.gmra.mxu0 %v622
        %v721 = vpop.f32.mrf.mxu0
        %v722 = vadd.f32 %v682, %v721
        %723 = vmatmul.f32.gmra.mxu0 %v623
        %v724 = vpop.f32.mrf.mxu0
        %v725 = vadd.f32 %v682, %v724
        %726 = vmatmul.f32.gmra.mxu0 %v624
        %v727 = vpop.f32.mrf.mxu0
        %v728 = vadd.f32 %v682, %v727
        %729 = vmatmul.f32.gmra.mxu0 %v625
        %v730 = vpop.f32.mrf.mxu0
        %v731 = vadd.f32 %v682, %v730
        %732 = vmatmul.f32.gmra.mxu0 %v626
        %v733 = vpop.f32.mrf.mxu0
        %v734 = vadd.f32 %v682, %v733
        %735 = vmatmul.f32.gmra.mxu0 %v627
        %v736 = vpop.f32.mrf.mxu0
        %v737 = vadd.f32 %v682, %v736
        %738 = vmatmul.f32.gmra.mxu0 %v628
        %v739 = vpop.f32.mrf.mxu0
        %v740 = vadd.f32 %v682, %v739
        %741 = vmatmul.f32.gmra.mxu0 %v629
        %v742 = vpop.f32.mrf.mxu0
        %v743 = vadd.f32 %v682, %v742
        %744 = vmatmul.f32.gmra.mxu0 %v630
        %v745 = vpop.f32.mrf.mxu0
        %v746 = vadd.f32 %v682, %v745
        %747 = vmatmul.f32.gmra.mxu0 %v631
        %v748 = vpop.f32.mrf.mxu0
        %v749 = vadd.f32 %v682, %v748
        %750 = vmatmul.f32.gmra.mxu0 %v632
        %v751 = vpop.f32.mrf.mxu0
        %v752 = vadd.f32 %v682, %v751
        %753 = vmatmul.f32.gmra.mxu0 %v633
        %v754 = vpop.f32.mrf.mxu0
        %v755 = vadd.f32 %v682, %v754
        %756 = vmatmul.f32.gmra.mxu0 %v634
        %v757 = vpop.f32.mrf.mxu0
        %v758 = vadd.f32 %v682, %v757
        %759 = vmatmul.f32.gmra.mxu0 %v635
        %v760 = vpop.f32.mrf.mxu0
        %v761 = vadd.f32 %v682, %v760
        %762 = vmatmul.f32.gmra.mxu0 %v636
        %v763 = vpop.f32.mrf.mxu0
        %v764 = vadd.f32 %v682, %v763
        %765 = vmatmul.f32.gmra.mxu0 %v637
        %v766 = vpop.f32.mrf.mxu0
        %v767 = vadd.f32 %v682, %v766
        %768 = vmatmul.f32.gmra.mxu0 %v638
        %v769 = vpop.f32.mrf.mxu0
        %v770 = vadd.f32 %v682, %v769
        %771 = vmatmul.f32.gmra.mxu0 %v639
        %v772 = vpop.f32.mrf.mxu0
        %v773 = vadd.f32 %v682, %v772
        %774 = vmatmul.f32.gmra.mxu0 %v640
        %v775 = vpop.f32.mrf.mxu0
        %v776 = vadd.f32 %v682, %v775
        %777 = vmatmul.f32.gmra.mxu0 %v641
        %v778 = vpop.f32.mrf.mxu0
        %v779 = vadd.f32 %v682, %v778
        %780 = vmatmul.f32.gmra.mxu0 %v642
        %v781 = vpop.f32.mrf.mxu0
        %v782 = vadd.f32 %v682, %v781
        %783 = vmatmul.f32.gmra.mxu0 %v643
        %v784 = vpop.f32.mrf.mxu0
        %v785 = vadd.f32 %v682, %v784
        %786 = vmatmul.f32.gmra.mxu0 %v644
        %v787 = vpop.f32.mrf.mxu0
        %v788 = vadd.f32 %v682, %v787
        %789 = vmatmul.f32.gmra.mxu0 %v645
        %v790 = vpop.f32.mrf.mxu0
        %v791 = vadd.f32 %v682, %v790
        %792 = vmatmul.f32.gmra.mxu0 %v646
        %v793 = vpop.f32.mrf.mxu0
        %v794 = vadd.f32 %v682, %v793
        %795 = vmatmul.f32.gmra.mxu0 %v647
        %v796 = vpop.f32.mrf.mxu0
        %v797 = vadd.f32 %v682, %v796
        %798 = vdwg.mxu0
        %799 = vmatpush.msra.mxu0 %v679
        %800 = vmatpush.msra.mxu0 %v677
        %801 = vmatpush.msra.mxu0 %v675
        %802 = vmatpush.msra.mxu0 %v673
        %803 = vmatpush.msra.mxu0 %v671
        %804 = vmatpush.msra.mxu0 %v669
        %805 = vmatpush.msra.mxu0 %v667
        %806 = vmatpush.msra.mxu0 %v665
        %807 = vmatpush.msra.mxu0 %v663
        %808 = vmatpush.msra.mxu0 %v661
        %809 = vmatpush.msra.mxu0 %v659
        %810 = vmatpush.msra.mxu0 %v657
        %811 = vmatpush.msra.mxu0 %v655
        %812 = vmatpush.msra.mxu0 %v653
        %813 = vmatpush.msra.mxu0 %v651
        %814 = vmatpush.msra.mxu0 %v649
        %815 = vmatmul.f32.gmra.mxu0 %v616
        %v816 = vpop.f32.mrf.mxu0
        %v817 = vadd.f32 %v683, %v816
        %818 = vmatmul.f32.gmra.mxu0 %v617
        %v819 = vpop.f32.mrf.mxu0
        %v820 = vadd.f32 %v683, %v819
        %821 = vmatmul.f32.gmra.mxu0 %v618
        %v822 = vpop.f32.mrf.mxu0
        %v823 = vadd.f32 %v683, %v822
        %824 = vmatmul.f32.gmra.mxu0 %v619
        %v825 = vpop.f32.mrf.mxu0
        %v826 = vadd.f32 %v683, %v825
        %827 = vmatmul.f32.gmra.mxu0 %v620
        %v828 = vpop.f32.mrf.mxu0
        %v829 = vadd.f32 %v683, %v828
        %830 = vmatmul.f32.gmra.mxu0 %v621
        %v831 = vpop.f32.mrf.mxu0
        %v832 = vadd.f32 %v683, %v831
        %833 = vmatmul.f32.gmra.mxu0 %v622
        %v834 = vpop.f32.mrf.mxu0
        %v835 = vadd.f32 %v683, %v834
        %836 = vmatmul.f32.gmra.mxu0 %v623
        %v837 = vpop.f32.mrf.mxu0
        %v838 = vadd.f32 %v683, %v837
        %839 = vmatmul.f32.gmra.mxu0 %v624
        %v840 = vpop.f32.mrf.mxu0
        %v841 = vadd.f32 %v683, %v840
        %842 = vmatmul.f32.gmra.mxu0 %v625
        %v843 = vpop.f32.mrf.mxu0
        %v844 = vadd.f32 %v683, %v843
        %845 = vmatmul.f32.gmra.mxu0 %v626
        %v846 = vpop.f32.mrf.mxu0
        %v847 = vadd.f32 %v683, %v846
        %848 = vmatmul.f32.gmra.mxu0 %v627
        %v849 = vpop.f32.mrf.mxu0
        %v850 = vadd.f32 %v683, %v849
        %851 = vmatmul.f32.gmra.mxu0 %v628
        %v852 = vpop.f32.mrf.mxu0
        %v853 = vadd.f32 %v683, %v852
        %854 = vmatmul.f32.gmra.mxu0 %v629
        %v855 = vpop.f32.mrf.mxu0
        %v856 = vadd.f32 %v683, %v855
        %857 = vmatmul.f32.gmra.mxu0 %v630
        %v858 = vpop.f32.mrf.mxu0
        %v859 = vadd.f32 %v683, %v858
        %860 = vmatmul.f32.gmra.mxu0 %v631
        %v861 = vpop.f32.mrf.mxu0
        %v862 = vadd.f32 %v683, %v861
        %863 = vmatmul.f32.gmra.mxu0 %v632
        %v864 = vpop.f32.mrf.mxu0
        %v865 = vadd.f32 %v683, %v864
        %866 = vmatmul.f32.gmra.mxu0 %v633
        %v867 = vpop.f32.mrf.mxu0
        %v868 = vadd.f32 %v683, %v867
        %869 = vmatmul.f32.gmra.mxu0 %v634
        %v870 = vpop.f32.mrf.mxu0
        %v871 = vadd.f32 %v683, %v870
        %872 = vmatmul.f32.gmra.mxu0 %v635
        %v873 = vpop.f32.mrf.mxu0
        %v874 = vadd.f32 %v683, %v873
        %875 = vmatmul.f32.gmra.mxu0 %v636
        %v876 = vpop.f32.mrf.mxu0
        %v877 = vadd.f32 %v683, %v876
        %878 = vmatmul.f32.gmra.mxu0 %v637
        %v879 = vpop.f32.mrf.mxu0
        %v880 = vadd.f32 %v683, %v879
        %881 = vmatmul.f32.gmra.mxu0 %v638
        %v882 = vpop.f32.mrf.mxu0
        %v883 = vadd.f32 %v683, %v882
        %884 = vmatmul.f32.gmra.mxu0 %v639
        %v885 = vpop.f32.mrf.mxu0
        %v886 = vadd.f32 %v683, %v885
        %887 = vmatmul.f32.gmra.mxu0 %v640
        %v888 = vpop.f32.mrf.mxu0
        %v889 = vadd.f32 %v683, %v888
        %890 = vmatmul.f32.gmra.mxu0 %v641
        %v891 = vpop.f32.mrf.mxu0
        %v892 = vadd.f32 %v683, %v891
        %893 = vmatmul.f32.gmra.mxu0 %v642
        %v894 = vpop.f32.mrf.mxu0
        %v895 = vadd.f32 %v683, %v894
        %896 = vmatmul.f32.gmra.mxu0 %v643
        %v897 = vpop.f32.mrf.mxu0
        %v898 = vadd.f32 %v683, %v897
        %899 = vmatmul.f32.gmra.mxu0 %v644
        %v900 = vpop.f32.mrf.mxu0
        %v901 = vadd.f32 %v683, %v900
        %902 = vmatmul.f32.gmra.mxu0 %v645
        %v903 = vpop.f32.mrf.mxu0
        %v904 = vadd.f32 %v683, %v903
        %905 = vmatmul.f32.gmra.mxu0 %v646
        %v906 = vpop.f32.mrf.mxu0
        %v907 = vadd.f32 %v683, %v906
        %908 = vmatmul.f32.gmra.mxu0 %v647
        %v909 = vpop.f32.mrf.mxu0
        %v910 = vadd.f32 %v683, %v909
        %911 = vdwg.mxu0
        %v912 = vmax.f32 %v704, 0.0
        %v913 = vmax.f32 %v817, 0.0
        %v914 = vmax.f32 %v707, 0.0
        %v915 = vmax.f32 %v820, 0.0
        %v916 = vmax.f32 %v710, 0.0
        %v917 = vmax.f32 %v823, 0.0
        %v918 = vmax.f32 %v713, 0.0
        %v919 = vmax.f32 %v826, 0.0
        %v920 = vmax.f32 %v716, 0.0
        %v921 = vmax.f32 %v829, 0.0
        %v922 = vmax.f32 %v719, 0.0
        %v923 = vmax.f32 %v832, 0.0
        %v924 = vmax.f32 %v722, 0.0
        %v925 = vmax.f32 %v835, 0.0
        %v926 = vmax.f32 %v725, 0.0
        %v927 = vmax.f32 %v838, 0.0
        %v928 = vmax.f32 %v728, 0.0
        %v929 = vmax.f32 %v841, 0.0
        %v930 = vmax.f32 %v731, 0.0
        %v931 = vmax.f32 %v844, 0.0
        %v932 = vmax.f32 %v734, 0.0
        %v933 = vmax.f32 %v847, 0.0
        %v934 = vmax.f32 %v737, 0.0
        %v935 = vmax.f32 %v850, 0.0
        %v936 = vmax.f32 %v740, 0.0
        %v937 = vmax.f32 %v853, 0.0
        %v938 = vmax.f32 %v743, 0.0
        %v939 = vmax.f32 %v856, 0.0
        %v940 = vmax.f32 %v746, 0.0
        %v941 = vmax.f32 %v859, 0.0
        %v942 = vmax.f32 %v749, 0.0
        %v943 = vmax.f32 %v862, 0.0
        %v944 = vmax.f32 %v752, 0.0
        %v945 = vmax.f32 %v865, 0.0
        %v946 = vmax.f32 %v755, 0.0
        %v947 = vmax.f32 %v868, 0.0
        %v948 = vmax.f32 %v758, 0.0
        %v949 = vmax.f32 %v871, 0.0
        %v950 = vmax.f32 %v761, 0.0
        %v951 = vmax.f32 %v874, 0.0
        %v952 = vmax.f32 %v764, 0.0
        %v953 = vmax.f32 %v877, 0.0
        %v954 = vmax.f32 %v767, 0.0
        %v955 = vmax.f32 %v880, 0.0
        %v956 = vmax.f32 %v770, 0.0
        %v957 = vmax.f32 %v883, 0.0
        %v958 = vmax.f32 %v773, 0.0
        %v959 = vmax.f32 %v886, 0.0
        %v960 = vmax.f32 %v776, 0.0
        %v961 = vmax.f32 %v889, 0.0
        %v962 = vmax.f32 %v779, 0.0
        %v963 = vmax.f32 %v892, 0.0
        %v964 = vmax.f32 %v782, 0.0
        %v965 = vmax.f32 %v895, 0.0
        %v966 = vmax.f32 %v785, 0.0
        %v967 = vmax.f32 %v898, 0.0
        %v968 = vmax.f32 %v788, 0.0
        %v969 = vmax.f32 %v901, 0.0
        %v970 = vmax.f32 %v791, 0.0
        %v971 = vmax.f32 %v904, 0.0
        %v972 = vmax.f32 %v794, 0.0
        %v973 = vmax.f32 %v907, 0.0
        %v974 = vmax.f32 %v797, 0.0
        %v975 = vmax.f32 %v910, 0.0
        %vm976 = vcmp.ne.f32.partialorder %v704, %v704
        %vm977 = vcmp.ne.f32.partialorder %v817, %v817
        %vm978 = vcmp.ne.f32.partialorder %v707, %v707
        %vm979 = vcmp.ne.f32.partialorder %v820, %v820
        %vm980 = vcmp.ne.f32.partialorder %v710, %v710
        %vm981 = vcmp.ne.f32.partialorder %v823, %v823
        %vm982 = vcmp.ne.f32.partialorder %v713, %v713
        %vm983 = vcmp.ne.f32.partialorder %v826, %v826
        %vm984 = vcmp.ne.f32.partialorder %v716, %v716
        %vm985 = vcmp.ne.f32.partialorder %v829, %v829
        %vm986 = vcmp.ne.f32.partialorder %v719, %v719
        %vm987 = vcmp.ne.f32.partialorder %v832, %v832
        %vm988 = vcmp.ne.f32.partialorder %v722, %v722
        %vm989 = vcmp.ne.f32.partialorder %v835, %v835
        %vm990 = vcmp.ne.f32.partialorder %v725, %v725
        %vm991 = vcmp.ne.f32.partialorder %v838, %v838
        %vm992 = vcmp.ne.f32.partialorder %v728, %v728
        %vm993 = vcmp.ne.f32.partialorder %v841, %v841
        %vm994 = vcmp.ne.f32.partialorder %v731, %v731
        %vm995 = vcmp.ne.f32.partialorder %v844, %v844
        %vm996 = vcmp.ne.f32.partialorder %v734, %v734
        %vm997 = vcmp.ne.f32.partialorder %v847, %v847
        %vm998 = vcmp.ne.f32.partialorder %v737, %v737
        %vm999 = vcmp.ne.f32.partialorder %v850, %v850
        %vm1000 = vcmp.ne.f32.partialorder %v740, %v740
        %vm1001 = vcmp.ne.f32.partialorder %v853, %v853
        %vm1002 = vcmp.ne.f32.partialorder %v743, %v743
        %vm1003 = vcmp.ne.f32.partialorder %v856, %v856
        %vm1004 = vcmp.ne.f32.partialorder %v746, %v746
        %vm1005 = vcmp.ne.f32.partialorder %v859, %v859
        %vm1006 = vcmp.ne.f32.partialorder %v749, %v749
        %vm1007 = vcmp.ne.f32.partialorder %v862, %v862
        %vm1008 = vcmp.ne.f32.partialorder %v752, %v752
        %vm1009 = vcmp.ne.f32.partialorder %v865, %v865
        %vm1010 = vcmp.ne.f32.partialorder %v755, %v755
        %vm1011 = vcmp.ne.f32.partialorder %v868, %v868
        %vm1012 = vcmp.ne.f32.partialorder %v758, %v758
        %vm1013 = vcmp.ne.f32.partialorder %v871, %v871
        %vm1014 = vcmp.ne.f32.partialorder %v761, %v761
        %vm1015 = vcmp.ne.f32.partialorder %v874, %v874
        %vm1016 = vcmp.ne.f32.partialorder %v764, %v764
        %vm1017 = vcmp.ne.f32.partialorder %v877, %v877
        %vm1018 = vcmp.ne.f32.partialorder %v767, %v767
        %vm1019 = vcmp.ne.f32.partialorder %v880, %v880
        %vm1020 = vcmp.ne.f32.partialorder %v770, %v770
        %vm1021 = vcmp.ne.f32.partialorder %v883, %v883
        %vm1022 = vcmp.ne.f32.partialorder %v773, %v773
        %vm1023 = vcmp.ne.f32.partialorder %v886, %v886
        %vm1024 = vcmp.ne.f32.partialorder %v776, %v776
        %vm1025 = vcmp.ne.f32.partialorder %v889, %v889
        %vm1026 = vcmp.ne.f32.partialorder %v779, %v779
        %vm1027 = vcmp.ne.f32.partialorder %v892, %v892
        %vm1028 = vcmp.ne.f32.partialorder %v782, %v782
        %vm1029 = vcmp.ne.f32.partialorder %v895, %v895
        %vm1030 = vcmp.ne.f32.partialorder %v785, %v785
        %vm1031 = vcmp.ne.f32.partialorder %v898, %v898
        %vm1032 = vcmp.ne.f32.partialorder %v788, %v788
        %vm1033 = vcmp.ne.f32.partialorder %v901, %v901
        %vm1034 = vcmp.ne.f32.partialorder %v791, %v791
        %vm1035 = vcmp.ne.f32.partialorder %v904, %v904
        %vm1036 = vcmp.ne.f32.partialorder %v794, %v794
        %vm1037 = vcmp.ne.f32.partialorder %v907, %v907
        %vm1038 = vcmp.ne.f32.partialorder %v797, %v797
        %vm1039 = vcmp.ne.f32.partialorder %v910, %v910
        %v1040 = vadd.f32 %v704, 0.0
        %v1041 = vadd.f32 %v817, 0.0
        %v1042 = vadd.f32 %v707, 0.0
        %v1043 = vadd.f32 %v820, 0.0
        %v1044 = vadd.f32 %v710, 0.0
        %v1045 = vadd.f32 %v823, 0.0
        %v1046 = vadd.f32 %v713, 0.0
        %v1047 = vadd.f32 %v826, 0.0
        %v1048 = vadd.f32 %v716, 0.0
        %v1049 = vadd.f32 %v829, 0.0
        %v1050 = vadd.f32 %v719, 0.0
        %v1051 = vadd.f32 %v832, 0.0
        %v1052 = vadd.f32 %v722, 0.0
        %v1053 = vadd.f32 %v835, 0.0
        %v1054 = vadd.f32 %v725, 0.0
        %v1055 = vadd.f32 %v838, 0.0
        %v1056 = vadd.f32 %v728, 0.0
        %v1057 = vadd.f32 %v841, 0.0
        %v1058 = vadd.f32 %v731, 0.0
        %v1059 = vadd.f32 %v844, 0.0
        %v1060 = vadd.f32 %v734, 0.0
        %v1061 = vadd.f32 %v847, 0.0
        %v1062 = vadd.f32 %v737, 0.0
        %v1063 = vadd.f32 %v850, 0.0
        %v1064 = vadd.f32 %v740, 0.0
        %v1065 = vadd.f32 %v853, 0.0
        %v1066 = vadd.f32 %v743, 0.0
        %v1067 = vadd.f32 %v856, 0.0
        %v1068 = vadd.f32 %v746, 0.0
        %v1069 = vadd.f32 %v859, 0.0
        %v1070 = vadd.f32 %v749, 0.0
        %v1071 = vadd.f32 %v862, 0.0
        %v1072 = vadd.f32 %v752, 0.0
        %v1073 = vadd.f32 %v865, 0.0
        %v1074 = vadd.f32 %v755, 0.0
        %v1075 = vadd.f32 %v868, 0.0
        %v1076 = vadd.f32 %v758, 0.0
        %v1077 = vadd.f32 %v871, 0.0
        %v1078 = vadd.f32 %v761, 0.0
        %v1079 = vadd.f32 %v874, 0.0
        %v1080 = vadd.f32 %v764, 0.0
        %v1081 = vadd.f32 %v877, 0.0
        %v1082 = vadd.f32 %v767, 0.0
        %v1083 = vadd.f32 %v880, 0.0
        %v1084 = vadd.f32 %v770, 0.0
        %v1085 = vadd.f32 %v883, 0.0
        %v1086 = vadd.f32 %v773, 0.0
        %v1087 = vadd.f32 %v886, 0.0
        %v1088 = vadd.f32 %v776, 0.0
        %v1089 = vadd.f32 %v889, 0.0
        %v1090 = vadd.f32 %v779, 0.0
        %v1091 = vadd.f32 %v892, 0.0
        %v1092 = vadd.f32 %v782, 0.0
        %v1093 = vadd.f32 %v895, 0.0
        %v1094 = vadd.f32 %v785, 0.0
        %v1095 = vadd.f32 %v898, 0.0
        %v1096 = vadd.f32 %v788, 0.0
        %v1097 = vadd.f32 %v901, 0.0
        %v1098 = vadd.f32 %v791, 0.0
        %v1099 = vadd.f32 %v904, 0.0
        %v1100 = vadd.f32 %v794, 0.0
        %v1101 = vadd.f32 %v907, 0.0
        %v1102 = vadd.f32 %v797, 0.0
        %v1103 = vadd.f32 %v910, 0.0
        %v1104 = vand.u32 2147483647, %v704
        %v1105 = vand.u32 2147483647, %v817
        %v1106 = vand.u32 2147483647, %v707
        %v1107 = vand.u32 2147483647, %v820
        %v1108 = vand.u32 2147483647, %v710
        %v1109 = vand.u32 2147483647, %v823
        %v1110 = vand.u32 2147483647, %v713
        %v1111 = vand.u32 2147483647, %v826
        %v1112 = vand.u32 2147483647, %v716
        %v1113 = vand.u32 2147483647, %v829
        %v1114 = vand.u32 2147483647, %v719
        %v1115 = vand.u32 2147483647, %v832
        %v1116 = vand.u32 2147483647, %v722
        %v1117 = vand.u32 2147483647, %v835
        %v1118 = vand.u32 2147483647, %v725
        %v1119 = vand.u32 2147483647, %v838
        %v1120 = vand.u32 2147483647, %v728
        %v1121 = vand.u32 2147483647, %v841
        %v1122 = vand.u32 2147483647, %v731
        %v1123 = vand.u32 2147483647, %v844
        %v1124 = vand.u32 2147483647, %v734
        %v1125 = vand.u32 2147483647, %v847
        %v1126 = vand.u32 2147483647, %v737
        %v1127 = vand.u32 2147483647, %v850
        %v1128 = vand.u32 2147483647, %v740
        %v1129 = vand.u32 2147483647, %v853
        %v1130 = vand.u32 2147483647, %v743
        %v1131 = vand.u32 2147483647, %v856
        %v1132 = vand.u32 2147483647, %v746
        %v1133 = vand.u32 2147483647, %v859
        %v1134 = vand.u32 2147483647, %v749
        %v1135 = vand.u32 2147483647, %v862
        %v1136 = vand.u32 2147483647, %v752
        %v1137 = vand.u32 2147483647, %v865
        %v1138 = vand.u32 2147483647, %v755
        %v1139 = vand.u32 2147483647, %v868
        %v1140 = vand.u32 2147483647, %v758
        %v1141 = vand.u32 2147483647, %v871
        %v1142 = vand.u32 2147483647, %v761
        %v1143 = vand.u32 2147483647, %v874
        %v1144 = vand.u32 2147483647, %v764
        %v1145 = vand.u32 2147483647, %v877
        %v1146 = vand.u32 2147483647, %v767
        %v1147 = vand.u32 2147483647, %v880
        %v1148 = vand.u32 2147483647, %v770
        %v1149 = vand.u32 2147483647, %v883
        %v1150 = vand.u32 2147483647, %v773
        %v1151 = vand.u32 2147483647, %v886
        %v1152 = vand.u32 2147483647, %v776
        %v1153 = vand.u32 2147483647, %v889
        %v1154 = vand.u32 2147483647, %v779
        %v1155 = vand.u32 2147483647, %v892
        %v1156 = vand.u32 2147483647, %v782
        %v1157 = vand.u32 2147483647, %v895
        %v1158 = vand.u32 2147483647, %v785
        %v1159 = vand.u32 2147483647, %v898
        %v1160 = vand.u32 2147483647, %v788
        %v1161 = vand.u32 2147483647, %v901
        %v1162 = vand.u32 2147483647, %v791
        %v1163 = vand.u32 2147483647, %v904
        %v1164 = vand.u32 2147483647, %v794
        %v1165 = vand.u32 2147483647, %v907
        %v1166 = vand.u32 2147483647, %v797
        %v1167 = vand.u32 2147483647, %v910
        %v1168 = vsub.f32 0.0, %v1104
        %v1169 = vsub.f32 0.0, %v1105
        %v1170 = vsub.f32 0.0, %v1106
        %v1171 = vsub.f32 0.0, %v1107
        %v1172 = vsub.f32 0.0, %v1108
        %v1173 = vsub.f32 0.0, %v1109
        %v1174 = vsub.f32 0.0, %v1110
        %v1175 = vsub.f32 0.0, %v1111
        %v1176 = vsub.f32 0.0, %v1112
        %v1177 = vsub.f32 0.0, %v1113
        %v1178 = vsub.f32 0.0, %v1114
        %v1179 = vsub.f32 0.0, %v1115
        %v1180 = vsub.f32 0.0, %v1116
        %v1181 = vsub.f32 0.0, %v1117
        %v1182 = vsub.f32 0.0, %v1118
        %v1183 = vsub.f32 0.0, %v1119
        %v1184 = vsub.f32 0.0, %v1120
        %v1185 = vsub.f32 0.0, %v1121
        %v1186 = vsub.f32 0.0, %v1122
        %v1187 = vsub.f32 0.0, %v1123
        %v1188 = vsub.f32 0.0, %v1124
        %v1189 = vsub.f32 0.0, %v1125
        %v1190 = vsub.f32 0.0, %v1126
        %v1191 = vsub.f32 0.0, %v1127
        %v1192 = vsub.f32 0.0, %v1128
        %v1193 = vsub.f32 0.0, %v1129
        %v1194 = vsub.f32 0.0, %v1130
        %v1195 = vsub.f32 0.0, %v1131
        %v1196 = vsub.f32 0.0, %v1132
        %v1197 = vsub.f32 0.0, %v1133
        %v1198 = vsub.f32 0.0, %v1134
        %v1199 = vsub.f32 0.0, %v1135
        %v1200 = vsub.f32 0.0, %v1136
        %v1201 = vsub.f32 0.0, %v1137
        %v1202 = vsub.f32 0.0, %v1138
        %v1203 = vsub.f32 0.0, %v1139
        %v1204 = vsub.f32 0.0, %v1140
        %v1205 = vsub.f32 0.0, %v1141
        %v1206 = vsub.f32 0.0, %v1142
        %v1207 = vsub.f32 0.0, %v1143
        %v1208 = vsub.f32 0.0, %v1144
        %v1209 = vsub.f32 0.0, %v1145
        %v1210 = vsub.f32 0.0, %v1146
        %v1211 = vsub.f32 0.0, %v1147
        %v1212 = vsub.f32 0.0, %v1148
        %v1213 = vsub.f32 0.0, %v1149
        %v1214 = vsub.f32 0.0, %v1150
        %v1215 = vsub.f32 0.0, %v1151
        %v1216 = vsub.f32 0.0, %v1152
        %v1217 = vsub.f32 0.0, %v1153
        %v1218 = vsub.f32 0.0, %v1154
        %v1219 = vsub.f32 0.0, %v1155
        %v1220 = vsub.f32 0.0, %v1156
        %v1221 = vsub.f32 0.0, %v1157
        %v1222 = vsub.f32 0.0, %v1158
        %v1223 = vsub.f32 0.0, %v1159
        %v1224 = vsub.f32 0.0, %v1160
        %v1225 = vsub.f32 0.0, %v1161
        %v1226 = vsub.f32 0.0, %v1162
        %v1227 = vsub.f32 0.0, %v1163
        %v1228 = vsub.f32 0.0, %v1164
        %v1229 = vsub.f32 0.0, %v1165
        %v1230 = vsub.f32 0.0, %v1166
        %v1231 = vsub.f32 0.0, %v1167
        %v1232 = vmul.f32 %v1168, 1.442695
        %v1233 = vpow.pop %v1232
        %v1234 = vmul.f32 %v1169, 1.442695
        %v1235 = vpow.pop %v1234
        %v1236 = vmul.f32 %v1170, 1.442695
        %v1237 = vpow.pop %v1236
        %v1238 = vmul.f32 %v1171, 1.442695
        %v1239 = vpow.pop %v1238
        %v1240 = vmul.f32 %v1172, 1.442695
        %v1241 = vpow.pop %v1240
        %v1242 = vmul.f32 %v1173, 1.442695
        %v1243 = vpow.pop %v1242
        %v1244 = vmul.f32 %v1174, 1.442695
        %v1245 = vpow.pop %v1244
        %v1246 = vmul.f32 %v1175, 1.442695
        %v1247 = vpow.pop %v1246
        %v1248 = vmul.f32 %v1176, 1.442695
        %v1249 = vpow.pop %v1248
        %v1250 = vmul.f32 %v1177, 1.442695
        %v1251 = vpow.pop %v1250
        %v1252 = vmul.f32 %v1178, 1.442695
        %v1253 = vpow.pop %v1252
        %v1254 = vmul.f32 %v1179, 1.442695
        %v1255 = vpow.pop %v1254
        %v1256 = vmul.f32 %v1180, 1.442695
        %v1257 = vpow.pop %v1256
        %v1258 = vmul.f32 %v1181, 1.442695
        %v1259 = vpow.pop %v1258
        %v1260 = vmul.f32 %v1182, 1.442695
        %v1261 = vpow.pop %v1260
        %v1262 = vmul.f32 %v1183, 1.442695
        %v1263 = vpow.pop %v1262
        %v1264 = vmul.f32 %v1184, 1.442695
        %v1265 = vpow.pop %v1264
        %v1266 = vmul.f32 %v1185, 1.442695
        %v1267 = vpow.pop %v1266
        %v1268 = vmul.f32 %v1186, 1.442695
        %v1269 = vpow.pop %v1268
        %v1270 = vmul.f32 %v1187, 1.442695
        %v1271 = vpow.pop %v1270
        %v1272 = vmul.f32 %v1188, 1.442695
        %v1273 = vpow.pop %v1272
        %v1274 = vmul.f32 %v1189, 1.442695
        %v1275 = vpow.pop %v1274
        %v1276 = vmul.f32 %v1190, 1.442695
        %v1277 = vpow.pop %v1276
        %v1278 = vmul.f32 %v1191, 1.442695
        %v1279 = vpow.pop %v1278
        %v1280 = vmul.f32 %v1192, 1.442695
        %v1281 = vpow.pop %v1280
        %v1282 = vmul.f32 %v1193, 1.442695
        %v1283 = vpow.pop %v1282
        %v1284 = vmul.f32 %v1194, 1.442695
        %v1285 = vpow.pop %v1284
        %v1286 = vmul.f32 %v1195, 1.442695
        %v1287 = vpow.pop %v1286
        %v1288 = vmul.f32 %v1196, 1.442695
        %v1289 = vpow.pop %v1288
        %v1290 = vmul.f32 %v1197, 1.442695
        %v1291 = vpow.pop %v1290
        %v1292 = vmul.f32 %v1198, 1.442695
        %v1293 = vpow.pop %v1292
        %v1294 = vmul.f32 %v1199, 1.442695
        %v1295 = vpow.pop %v1294
        %v1296 = vmul.f32 %v1200, 1.442695
        %v1297 = vpow.pop %v1296
        %v1298 = vmul.f32 %v1201, 1.442695
        %v1299 = vpow.pop %v1298
        %v1300 = vmul.f32 %v1202, 1.442695
        %v1301 = vpow.pop %v1300
        %v1302 = vmul.f32 %v1203, 1.442695
        %v1303 = vpow.pop %v1302
        %v1304 = vmul.f32 %v1204, 1.442695
        %v1305 = vpow.pop %v1304
        %v1306 = vmul.f32 %v1205, 1.442695
        %v1307 = vpow.pop %v1306
        %v1308 = vmul.f32 %v1206, 1.442695
        %v1309 = vpow.pop %v1308
        %v1310 = vmul.f32 %v1207, 1.442695
        %v1311 = vpow.pop %v1310
        %v1312 = vmul.f32 %v1208, 1.442695
        %v1313 = vpow.pop %v1312
        %v1314 = vmul.f32 %v1209, 1.442695
        %v1315 = vpow.pop %v1314
        %v1316 = vmul.f32 %v1210, 1.442695
        %v1317 = vpow.pop %v1316
        %v1318 = vmul.f32 %v1211, 1.442695
        %v1319 = vpow.pop %v1318
        %v1320 = vmul.f32 %v1212, 1.442695
        %v1321 = vpow.pop %v1320
        %v1322 = vmul.f32 %v1213, 1.442695
        %v1323 = vpow.pop %v1322
        %v1324 = vmul.f32 %v1214, 1.442695
        %v1325 = vpow.pop %v1324
        %v1326 = vmul.f32 %v1215, 1.442695
        %v1327 = vpow.pop %v1326
        %v1328 = vmul.f32 %v1216, 1.442695
        %v1329 = vpow.pop %v1328
        %v1330 = vmul.f32 %v1217, 1.442695
        %v1331 = vpow.pop %v1330
        %v1332 = vmul.f32 %v1218, 1.442695
        %v1333 = vpow.pop %v1332
        %v1334 = vmul.f32 %v1219, 1.442695
        %v1335 = vpow.pop %v1334
        %v1336 = vmul.f32 %v1220, 1.442695
        %v1337 = vpow.pop %v1336
        %v1338 = vmul.f32 %v1221, 1.442695
        %v1339 = vpow.pop %v1338
        %v1340 = vmul.f32 %v1222, 1.442695
        %v1341 = vpow.pop %v1340
        %v1342 = vmul.f32 %v1223, 1.442695
        %v1343 = vpow.pop %v1342
        %v1344 = vmul.f32 %v1224, 1.442695
        %v1345 = vpow.pop %v1344
        %v1346 = vmul.f32 %v1225, 1.442695
        %v1347 = vpow.pop %v1346
        %v1348 = vmul.f32 %v1226, 1.442695
        %v1349 = vpow.pop %v1348
        %v1350 = vmul.f32 %v1227, 1.442695
        %v1351 = vpow.pop %v1350
        %v1352 = vmul.f32 %v1228, 1.442695
        %v1353 = vpow.pop %v1352
        %v1354 = vmul.f32 %v1229, 1.442695
        %v1355 = vpow.pop %v1354
        %v1356 = vmul.f32 %v1230, 1.442695
        %v1357 = vpow.pop %v1356
        %v1358 = vmul.f32 %v1231, 1.442695
        %v1359 = vpow.pop %v1358
        %v1360 = vadd.f32 %v1233, 1.0
        %v1361 = vlog2.pop %v1360
        %v1362 = vmul.f32 %v1361, 0.6931472
        %v1363 = vmul.f32 -0.5, %v1233
        %v1364 = vadd.f32 %v1363, 1.0
        %v1365 = vmul.f32 %v1364, %v1233
        %v1366 = vand.u32 2147483647, %v1233
        %vm1367 = vcmp.lt.f32.partialorder %v1366, 0.0004427343
        %v1368 = vsel %vm1367, %v1365, %v1362
        %v1369 = vadd.f32 %v1235, 1.0
        %v1370 = vlog2.pop %v1369
        %v1371 = vmul.f32 %v1370, 0.6931472
        %v1372 = vmul.f32 -0.5, %v1235
        %v1373 = vadd.f32 %v1372, 1.0
        %v1374 = vmul.f32 %v1373, %v1235
        %v1375 = vand.u32 2147483647, %v1235
        %vm1376 = vcmp.lt.f32.partialorder %v1375, 0.0004427343
        %v1377 = vsel %vm1376, %v1374, %v1371
        %v1378 = vadd.f32 %v1237, 1.0
        %v1379 = vlog2.pop %v1378
        %v1380 = vmul.f32 %v1379, 0.6931472
        %v1381 = vmul.f32 -0.5, %v1237
        %v1382 = vadd.f32 %v1381, 1.0
        %v1383 = vmul.f32 %v1382, %v1237
        %v1384 = vand.u32 2147483647, %v1237
        %vm1385 = vcmp.lt.f32.partialorder %v1384, 0.0004427343
        %v1386 = vsel %vm1385, %v1383, %v1380
        %v1387 = vadd.f32 %v1239, 1.0
        %v1388 = vlog2.pop %v1387
        %v1389 = vmul.f32 %v1388, 0.6931472
        %v1390 = vmul.f32 -0.5, %v1239
        %v1391 = vadd.f32 %v1390, 1.0
        %v1392 = vmul.f32 %v1391, %v1239
        %v1393 = vand.u32 2147483647, %v1239
        %vm1394 = vcmp.lt.f32.partialorder %v1393, 0.0004427343
        %v1395 = vsel %vm1394, %v1392, %v1389
        %v1396 = vadd.f32 %v1241, 1.0
        %v1397 = vlog2.pop %v1396
        %v1398 = vmul.f32 %v1397, 0.6931472
        %v1399 = vmul.f32 -0.5, %v1241
        %v1400 = vadd.f32 %v1399, 1.0
        %v1401 = vmul.f32 %v1400, %v1241
        %v1402 = vand.u32 2147483647, %v1241
        %vm1403 = vcmp.lt.f32.partialorder %v1402, 0.0004427343
        %v1404 = vsel %vm1403, %v1401, %v1398
        %v1405 = vadd.f32 %v1243, 1.0
        %v1406 = vlog2.pop %v1405
        %v1407 = vmul.f32 %v1406, 0.6931472
        %v1408 = vmul.f32 -0.5, %v1243
        %v1409 = vadd.f32 %v1408, 1.0
        %v1410 = vmul.f32 %v1409, %v1243
        %v1411 = vand.u32 2147483647, %v1243
        %vm1412 = vcmp.lt.f32.partialorder %v1411, 0.0004427343
        %v1413 = vsel %vm1412, %v1410, %v1407
        %v1414 = vadd.f32 %v1245, 1.0
        %v1415 = vlog2.pop %v1414
        %v1416 = vmul.f32 %v1415, 0.6931472
        %v1417 = vmul.f32 -0.5, %v1245
        %v1418 = vadd.f32 %v1417, 1.0
        %v1419 = vmul.f32 %v1418, %v1245
        %v1420 = vand.u32 2147483647, %v1245
        %vm1421 = vcmp.lt.f32.partialorder %v1420, 0.0004427343
        %v1422 = vsel %vm1421, %v1419, %v1416
        %v1423 = vadd.f32 %v1247, 1.0
        %v1424 = vlog2.pop %v1423
        %v1425 = vmul.f32 %v1424, 0.6931472
        %v1426 = vmul.f32 -0.5, %v1247
        %v1427 = vadd.f32 %v1426, 1.0
        %v1428 = vmul.f32 %v1427, %v1247
        %v1429 = vand.u32 2147483647, %v1247
        %vm1430 = vcmp.lt.f32.partialorder %v1429, 0.0004427343
        %v1431 = vsel %vm1430, %v1428, %v1425
        %v1432 = vadd.f32 %v1249, 1.0
        %v1433 = vlog2.pop %v1432
        %v1434 = vmul.f32 %v1433, 0.6931472
        %v1435 = vmul.f32 -0.5, %v1249
        %v1436 = vadd.f32 %v1435, 1.0
        %v1437 = vmul.f32 %v1436, %v1249
        %v1438 = vand.u32 2147483647, %v1249
        %vm1439 = vcmp.lt.f32.partialorder %v1438, 0.0004427343
        %v1440 = vsel %vm1439, %v1437, %v1434
        %v1441 = vadd.f32 %v1251, 1.0
        %v1442 = vlog2.pop %v1441
        %v1443 = vmul.f32 %v1442, 0.6931472
        %v1444 = vmul.f32 -0.5, %v1251
        %v1445 = vadd.f32 %v1444, 1.0
        %v1446 = vmul.f32 %v1445, %v1251
        %v1447 = vand.u32 2147483647, %v1251
        %vm1448 = vcmp.lt.f32.partialorder %v1447, 0.0004427343
        %v1449 = vsel %vm1448, %v1446, %v1443
        %v1450 = vadd.f32 %v1253, 1.0
        %v1451 = vlog2.pop %v1450
        %v1452 = vmul.f32 %v1451, 0.6931472
        %v1453 = vmul.f32 -0.5, %v1253
        %v1454 = vadd.f32 %v1453, 1.0
        %v1455 = vmul.f32 %v1454, %v1253
        %v1456 = vand.u32 2147483647, %v1253
        %vm1457 = vcmp.lt.f32.partialorder %v1456, 0.0004427343
        %v1458 = vsel %vm1457, %v1455, %v1452
        %v1459 = vadd.f32 %v1255, 1.0
        %v1460 = vlog2.pop %v1459
        %v1461 = vmul.f32 %v1460, 0.6931472
        %v1462 = vmul.f32 -0.5, %v1255
        %v1463 = vadd.f32 %v1462, 1.0
        %v1464 = vmul.f32 %v1463, %v1255
        %v1465 = vand.u32 2147483647, %v1255
        %vm1466 = vcmp.lt.f32.partialorder %v1465, 0.0004427343
        %v1467 = vsel %vm1466, %v1464, %v1461
        %v1468 = vadd.f32 %v1257, 1.0
        %v1469 = vlog2.pop %v1468
        %v1470 = vmul.f32 %v1469, 0.6931472
        %v1471 = vmul.f32 -0.5, %v1257
        %v1472 = vadd.f32 %v1471, 1.0
        %v1473 = vmul.f32 %v1472, %v1257
        %v1474 = vand.u32 2147483647, %v1257
        %vm1475 = vcmp.lt.f32.partialorder %v1474, 0.0004427343
        %v1476 = vsel %vm1475, %v1473, %v1470
        %v1477 = vadd.f32 %v1259, 1.0
        %v1478 = vlog2.pop %v1477
        %v1479 = vmul.f32 %v1478, 0.6931472
        %v1480 = vmul.f32 -0.5, %v1259
        %v1481 = vadd.f32 %v1480, 1.0
        %v1482 = vmul.f32 %v1481, %v1259
        %v1483 = vand.u32 2147483647, %v1259
        %vm1484 = vcmp.lt.f32.partialorder %v1483, 0.0004427343
        %v1485 = vsel %vm1484, %v1482, %v1479
        %v1486 = vadd.f32 %v1261, 1.0
        %v1487 = vlog2.pop %v1486
        %v1488 = vmul.f32 %v1487, 0.6931472
        %v1489 = vmul.f32 -0.5, %v1261
        %v1490 = vadd.f32 %v1489, 1.0
        %v1491 = vmul.f32 %v1490, %v1261
        %v1492 = vand.u32 2147483647, %v1261
        %vm1493 = vcmp.lt.f32.partialorder %v1492, 0.0004427343
        %v1494 = vsel %vm1493, %v1491, %v1488
        %v1495 = vadd.f32 %v1263, 1.0
        %v1496 = vlog2.pop %v1495
        %v1497 = vmul.f32 %v1496, 0.6931472
        %v1498 = vmul.f32 -0.5, %v1263
        %v1499 = vadd.f32 %v1498, 1.0
        %v1500 = vmul.f32 %v1499, %v1263
        %v1501 = vand.u32 2147483647, %v1263
        %vm1502 = vcmp.lt.f32.partialorder %v1501, 0.0004427343
        %v1503 = vsel %vm1502, %v1500, %v1497
        %v1504 = vadd.f32 %v1265, 1.0
        %v1505 = vlog2.pop %v1504
        %v1506 = vmul.f32 %v1505, 0.6931472
        %v1507 = vmul.f32 -0.5, %v1265
        %v1508 = vadd.f32 %v1507, 1.0
        %v1509 = vmul.f32 %v1508, %v1265
        %v1510 = vand.u32 2147483647, %v1265
        %vm1511 = vcmp.lt.f32.partialorder %v1510, 0.0004427343
        %v1512 = vsel %vm1511, %v1509, %v1506
        %v1513 = vadd.f32 %v1267, 1.0
        %v1514 = vlog2.pop %v1513
        %v1515 = vmul.f32 %v1514, 0.6931472
        %v1516 = vmul.f32 -0.5, %v1267
        %v1517 = vadd.f32 %v1516, 1.0
        %v1518 = vmul.f32 %v1517, %v1267
        %v1519 = vand.u32 2147483647, %v1267
        %vm1520 = vcmp.lt.f32.partialorder %v1519, 0.0004427343
        %v1521 = vsel %vm1520, %v1518, %v1515
        %v1522 = vadd.f32 %v1269, 1.0
        %v1523 = vlog2.pop %v1522
        %v1524 = vmul.f32 %v1523, 0.6931472
        %v1525 = vmul.f32 -0.5, %v1269
        %v1526 = vadd.f32 %v1525, 1.0
        %v1527 = vmul.f32 %v1526, %v1269
        %v1528 = vand.u32 2147483647, %v1269
        %vm1529 = vcmp.lt.f32.partialorder %v1528, 0.0004427343
        %v1530 = vsel %vm1529, %v1527, %v1524
        %v1531 = vadd.f32 %v1271, 1.0
        %v1532 = vlog2.pop %v1531
        %v1533 = vmul.f32 %v1532, 0.6931472
        %v1534 = vmul.f32 -0.5, %v1271
        %v1535 = vadd.f32 %v1534, 1.0
        %v1536 = vmul.f32 %v1535, %v1271
        %v1537 = vand.u32 2147483647, %v1271
        %vm1538 = vcmp.lt.f32.partialorder %v1537, 0.0004427343
        %v1539 = vsel %vm1538, %v1536, %v1533
        %v1540 = vadd.f32 %v1273, 1.0
        %v1541 = vlog2.pop %v1540
        %v1542 = vmul.f32 %v1541, 0.6931472
        %v1543 = vmul.f32 -0.5, %v1273
        %v1544 = vadd.f32 %v1543, 1.0
        %v1545 = vmul.f32 %v1544, %v1273
        %v1546 = vand.u32 2147483647, %v1273
        %vm1547 = vcmp.lt.f32.partialorder %v1546, 0.0004427343
        %v1548 = vsel %vm1547, %v1545, %v1542
        %v1549 = vadd.f32 %v1275, 1.0
        %v1550 = vlog2.pop %v1549
        %v1551 = vmul.f32 %v1550, 0.6931472
        %v1552 = vmul.f32 -0.5, %v1275
        %v1553 = vadd.f32 %v1552, 1.0
        %v1554 = vmul.f32 %v1553, %v1275
        %v1555 = vand.u32 2147483647, %v1275
        %vm1556 = vcmp.lt.f32.partialorder %v1555, 0.0004427343
        %v1557 = vsel %vm1556, %v1554, %v1551
        %v1558 = vadd.f32 %v1277, 1.0
        %v1559 = vlog2.pop %v1558
        %v1560 = vmul.f32 %v1559, 0.6931472
        %v1561 = vmul.f32 -0.5, %v1277
        %v1562 = vadd.f32 %v1561, 1.0
        %v1563 = vmul.f32 %v1562, %v1277
        %v1564 = vand.u32 2147483647, %v1277
        %vm1565 = vcmp.lt.f32.partialorder %v1564, 0.0004427343
        %v1566 = vsel %vm1565, %v1563, %v1560
        %v1567 = vadd.f32 %v1279, 1.0
        %v1568 = vlog2.pop %v1567
        %v1569 = vmul.f32 %v1568, 0.6931472
        %v1570 = vmul.f32 -0.5, %v1279
        %v1571 = vadd.f32 %v1570, 1.0
        %v1572 = vmul.f32 %v1571, %v1279
        %v1573 = vand.u32 2147483647, %v1279
        %vm1574 = vcmp.lt.f32.partialorder %v1573, 0.0004427343
        %v1575 = vsel %vm1574, %v1572, %v1569
        %v1576 = vadd.f32 %v1281, 1.0
        %v1577 = vlog2.pop %v1576
        %v1578 = vmul.f32 %v1577, 0.6931472
        %v1579 = vmul.f32 -0.5, %v1281
        %v1580 = vadd.f32 %v1579, 1.0
        %v1581 = vmul.f32 %v1580, %v1281
        %v1582 = vand.u32 2147483647, %v1281
        %vm1583 = vcmp.lt.f32.partialorder %v1582, 0.0004427343
        %v1584 = vsel %vm1583, %v1581, %v1578
        %v1585 = vadd.f32 %v1283, 1.0
        %v1586 = vlog2.pop %v1585
        %v1587 = vmul.f32 %v1586, 0.6931472
        %v1588 = vmul.f32 -0.5, %v1283
        %v1589 = vadd.f32 %v1588, 1.0
        %v1590 = vmul.f32 %v1589, %v1283
        %v1591 = vand.u32 2147483647, %v1283
        %vm1592 = vcmp.lt.f32.partialorder %v1591, 0.0004427343
        %v1593 = vsel %vm1592, %v1590, %v1587
        %v1594 = vadd.f32 %v1285, 1.0
        %v1595 = vlog2.pop %v1594
        %v1596 = vmul.f32 %v1595, 0.6931472
        %v1597 = vmul.f32 -0.5, %v1285
        %v1598 = vadd.f32 %v1597, 1.0
        %v1599 = vmul.f32 %v1598, %v1285
        %v1600 = vand.u32 2147483647, %v1285
        %vm1601 = vcmp.lt.f32.partialorder %v1600, 0.0004427343
        %v1602 = vsel %vm1601, %v1599, %v1596
        %v1603 = vadd.f32 %v1287, 1.0
        %v1604 = vlog2.pop %v1603
        %v1605 = vmul.f32 %v1604, 0.6931472
        %v1606 = vmul.f32 -0.5, %v1287
        %v1607 = vadd.f32 %v1606, 1.0
        %v1608 = vmul.f32 %v1607, %v1287
        %v1609 = vand.u32 2147483647, %v1287
        %vm1610 = vcmp.lt.f32.partialorder %v1609, 0.0004427343
        %v1611 = vsel %vm1610, %v1608, %v1605
        %v1612 = vadd.f32 %v1289, 1.0
        %v1613 = vlog2.pop %v1612
        %v1614 = vmul.f32 %v1613, 0.6931472
        %v1615 = vmul.f32 -0.5, %v1289
        %v1616 = vadd.f32 %v1615, 1.0
        %v1617 = vmul.f32 %v1616, %v1289
        %v1618 = vand.u32 2147483647, %v1289
        %vm1619 = vcmp.lt.f32.partialorder %v1618, 0.0004427343
        %v1620 = vsel %vm1619, %v1617, %v1614
        %v1621 = vadd.f32 %v1291, 1.0
        %v1622 = vlog2.pop %v1621
        %v1623 = vmul.f32 %v1622, 0.6931472
        %v1624 = vmul.f32 -0.5, %v1291
        %v1625 = vadd.f32 %v1624, 1.0
        %v1626 = vmul.f32 %v1625, %v1291
        %v1627 = vand.u32 2147483647, %v1291
        %vm1628 = vcmp.lt.f32.partialorder %v1627, 0.0004427343
        %v1629 = vsel %vm1628, %v1626, %v1623
        %v1630 = vadd.f32 %v1293, 1.0
        %v1631 = vlog2.pop %v1630
        %v1632 = vmul.f32 %v1631, 0.6931472
        %v1633 = vmul.f32 -0.5, %v1293
        %v1634 = vadd.f32 %v1633, 1.0
        %v1635 = vmul.f32 %v1634, %v1293
        %v1636 = vand.u32 2147483647, %v1293
        %vm1637 = vcmp.lt.f32.partialorder %v1636, 0.0004427343
        %v1638 = vsel %vm1637, %v1635, %v1632
        %v1639 = vadd.f32 %v1295, 1.0
        %v1640 = vlog2.pop %v1639
        %v1641 = vmul.f32 %v1640, 0.6931472
        %v1642 = vmul.f32 -0.5, %v1295
        %v1643 = vadd.f32 %v1642, 1.0
        %v1644 = vmul.f32 %v1643, %v1295
        %v1645 = vand.u32 2147483647, %v1295
        %vm1646 = vcmp.lt.f32.partialorder %v1645, 0.0004427343
        %v1647 = vsel %vm1646, %v1644, %v1641
        %v1648 = vadd.f32 %v1297, 1.0
        %v1649 = vlog2.pop %v1648
        %v1650 = vmul.f32 %v1649, 0.6931472
        %v1651 = vmul.f32 -0.5, %v1297
        %v1652 = vadd.f32 %v1651, 1.0
        %v1653 = vmul.f32 %v1652, %v1297
        %v1654 = vand.u32 2147483647, %v1297
        %vm1655 = vcmp.lt.f32.partialorder %v1654, 0.0004427343
        %v1656 = vsel %vm1655, %v1653, %v1650
        %v1657 = vadd.f32 %v1299, 1.0
        %v1658 = vlog2.pop %v1657
        %v1659 = vmul.f32 %v1658, 0.6931472
        %v1660 = vmul.f32 -0.5, %v1299
        %v1661 = vadd.f32 %v1660, 1.0
        %v1662 = vmul.f32 %v1661, %v1299
        %v1663 = vand.u32 2147483647, %v1299
        %vm1664 = vcmp.lt.f32.partialorder %v1663, 0.0004427343
        %v1665 = vsel %vm1664, %v1662, %v1659
        %v1666 = vadd.f32 %v1301, 1.0
        %v1667 = vlog2.pop %v1666
        %v1668 = vmul.f32 %v1667, 0.6931472
        %v1669 = vmul.f32 -0.5, %v1301
        %v1670 = vadd.f32 %v1669, 1.0
        %v1671 = vmul.f32 %v1670, %v1301
        %v1672 = vand.u32 2147483647, %v1301
        %vm1673 = vcmp.lt.f32.partialorder %v1672, 0.0004427343
        %v1674 = vsel %vm1673, %v1671, %v1668
        %v1675 = vadd.f32 %v1303, 1.0
        %v1676 = vlog2.pop %v1675
        %v1677 = vmul.f32 %v1676, 0.6931472
        %v1678 = vmul.f32 -0.5, %v1303
        %v1679 = vadd.f32 %v1678, 1.0
        %v1680 = vmul.f32 %v1679, %v1303
        %v1681 = vand.u32 2147483647, %v1303
        %vm1682 = vcmp.lt.f32.partialorder %v1681, 0.0004427343
        %v1683 = vsel %vm1682, %v1680, %v1677
        %v1684 = vadd.f32 %v1305, 1.0
        %v1685 = vlog2.pop %v1684
        %v1686 = vmul.f32 %v1685, 0.6931472
        %v1687 = vmul.f32 -0.5, %v1305
        %v1688 = vadd.f32 %v1687, 1.0
        %v1689 = vmul.f32 %v1688, %v1305
        %v1690 = vand.u32 2147483647, %v1305
        %vm1691 = vcmp.lt.f32.partialorder %v1690, 0.0004427343
        %v1692 = vsel %vm1691, %v1689, %v1686
        %v1693 = vadd.f32 %v1307, 1.0
        %v1694 = vlog2.pop %v1693
        %v1695 = vmul.f32 %v1694, 0.6931472
        %v1696 = vmul.f32 -0.5, %v1307
        %v1697 = vadd.f32 %v1696, 1.0
        %v1698 = vmul.f32 %v1697, %v1307
        %v1699 = vand.u32 2147483647, %v1307
        %vm1700 = vcmp.lt.f32.partialorder %v1699, 0.0004427343
        %v1701 = vsel %vm1700, %v1698, %v1695
        %v1702 = vadd.f32 %v1309, 1.0
        %v1703 = vlog2.pop %v1702
        %v1704 = vmul.f32 %v1703, 0.6931472
        %v1705 = vmul.f32 -0.5, %v1309
        %v1706 = vadd.f32 %v1705, 1.0
        %v1707 = vmul.f32 %v1706, %v1309
        %v1708 = vand.u32 2147483647, %v1309
        %vm1709 = vcmp.lt.f32.partialorder %v1708, 0.0004427343
        %v1710 = vsel %vm1709, %v1707, %v1704
        %v1711 = vadd.f32 %v1311, 1.0
        %v1712 = vlog2.pop %v1711
        %v1713 = vmul.f32 %v1712, 0.6931472
        %v1714 = vmul.f32 -0.5, %v1311
        %v1715 = vadd.f32 %v1714, 1.0
        %v1716 = vmul.f32 %v1715, %v1311
        %v1717 = vand.u32 2147483647, %v1311
        %vm1718 = vcmp.lt.f32.partialorder %v1717, 0.0004427343
        %v1719 = vsel %vm1718, %v1716, %v1713
        %v1720 = vadd.f32 %v1313, 1.0
        %v1721 = vlog2.pop %v1720
        %v1722 = vmul.f32 %v1721, 0.6931472
        %v1723 = vmul.f32 -0.5, %v1313
        %v1724 = vadd.f32 %v1723, 1.0
        %v1725 = vmul.f32 %v1724, %v1313
        %v1726 = vand.u32 2147483647, %v1313
        %vm1727 = vcmp.lt.f32.partialorder %v1726, 0.0004427343
        %v1728 = vsel %vm1727, %v1725, %v1722
        %v1729 = vadd.f32 %v1315, 1.0
        %v1730 = vlog2.pop %v1729
        %v1731 = vmul.f32 %v1730, 0.6931472
        %v1732 = vmul.f32 -0.5, %v1315
        %v1733 = vadd.f32 %v1732, 1.0
        %v1734 = vmul.f32 %v1733, %v1315
        %v1735 = vand.u32 2147483647, %v1315
        %vm1736 = vcmp.lt.f32.partialorder %v1735, 0.0004427343
        %v1737 = vsel %vm1736, %v1734, %v1731
        %v1738 = vadd.f32 %v1317, 1.0
        %v1739 = vlog2.pop %v1738
        %v1740 = vmul.f32 %v1739, 0.6931472
        %v1741 = vmul.f32 -0.5, %v1317
        %v1742 = vadd.f32 %v1741, 1.0
        %v1743 = vmul.f32 %v1742, %v1317
        %v1744 = vand.u32 2147483647, %v1317
        %vm1745 = vcmp.lt.f32.partialorder %v1744, 0.0004427343
        %v1746 = vsel %vm1745, %v1743, %v1740
        %v1747 = vadd.f32 %v1319, 1.0
        %v1748 = vlog2.pop %v1747
        %v1749 = vmul.f32 %v1748, 0.6931472
        %v1750 = vmul.f32 -0.5, %v1319
        %v1751 = vadd.f32 %v1750, 1.0
        %v1752 = vmul.f32 %v1751, %v1319
        %v1753 = vand.u32 2147483647, %v1319
        %vm1754 = vcmp.lt.f32.partialorder %v1753, 0.0004427343
        %v1755 = vsel %vm1754, %v1752, %v1749
        %v1756 = vadd.f32 %v1321, 1.0
        %v1757 = vlog2.pop %v1756
        %v1758 = vmul.f32 %v1757, 0.6931472
        %v1759 = vmul.f32 -0.5, %v1321
        %v1760 = vadd.f32 %v1759, 1.0
        %v1761 = vmul.f32 %v1760, %v1321
        %v1762 = vand.u32 2147483647, %v1321
        %vm1763 = vcmp.lt.f32.partialorder %v1762, 0.0004427343
        %v1764 = vsel %vm1763, %v1761, %v1758
        %v1765 = vadd.f32 %v1323, 1.0
        %v1766 = vlog2.pop %v1765
        %v1767 = vmul.f32 %v1766, 0.6931472
        %v1768 = vmul.f32 -0.5, %v1323
        %v1769 = vadd.f32 %v1768, 1.0
        %v1770 = vmul.f32 %v1769, %v1323
        %v1771 = vand.u32 2147483647, %v1323
        %vm1772 = vcmp.lt.f32.partialorder %v1771, 0.0004427343
        %v1773 = vsel %vm1772, %v1770, %v1767
        %v1774 = vadd.f32 %v1325, 1.0
        %v1775 = vlog2.pop %v1774
        %v1776 = vmul.f32 %v1775, 0.6931472
        %v1777 = vmul.f32 -0.5, %v1325
        %v1778 = vadd.f32 %v1777, 1.0
        %v1779 = vmul.f32 %v1778, %v1325
        %v1780 = vand.u32 2147483647, %v1325
        %vm1781 = vcmp.lt.f32.partialorder %v1780, 0.0004427343
        %v1782 = vsel %vm1781, %v1779, %v1776
        %v1783 = vadd.f32 %v1327, 1.0
        %v1784 = vlog2.pop %v1783
        %v1785 = vmul.f32 %v1784, 0.6931472
        %v1786 = vmul.f32 -0.5, %v1327
        %v1787 = vadd.f32 %v1786, 1.0
        %v1788 = vmul.f32 %v1787, %v1327
        %v1789 = vand.u32 2147483647, %v1327
        %vm1790 = vcmp.lt.f32.partialorder %v1789, 0.0004427343
        %v1791 = vsel %vm1790, %v1788, %v1785
        %v1792 = vadd.f32 %v1329, 1.0
        %v1793 = vlog2.pop %v1792
        %v1794 = vmul.f32 %v1793, 0.6931472
        %v1795 = vmul.f32 -0.5, %v1329
        %v1796 = vadd.f32 %v1795, 1.0
        %v1797 = vmul.f32 %v1796, %v1329
        %v1798 = vand.u32 2147483647, %v1329
        %vm1799 = vcmp.lt.f32.partialorder %v1798, 0.0004427343
        %v1800 = vsel %vm1799, %v1797, %v1794
        %v1801 = vadd.f32 %v1331, 1.0
        %v1802 = vlog2.pop %v1801
        %v1803 = vmul.f32 %v1802, 0.6931472
        %v1804 = vmul.f32 -0.5, %v1331
        %v1805 = vadd.f32 %v1804, 1.0
        %v1806 = vmul.f32 %v1805, %v1331
        %v1807 = vand.u32 2147483647, %v1331
        %vm1808 = vcmp.lt.f32.partialorder %v1807, 0.0004427343
        %v1809 = vsel %vm1808, %v1806, %v1803
        %v1810 = vadd.f32 %v1333, 1.0
        %v1811 = vlog2.pop %v1810
        %v1812 = vmul.f32 %v1811, 0.6931472
        %v1813 = vmul.f32 -0.5, %v1333
        %v1814 = vadd.f32 %v1813, 1.0
        %v1815 = vmul.f32 %v1814, %v1333
        %v1816 = vand.u32 2147483647, %v1333
        %vm1817 = vcmp.lt.f32.partialorder %v1816, 0.0004427343
        %v1818 = vsel %vm1817, %v1815, %v1812
        %v1819 = vadd.f32 %v1335, 1.0
        %v1820 = vlog2.pop %v1819
        %v1821 = vmul.f32 %v1820, 0.6931472
        %v1822 = vmul.f32 -0.5, %v1335
        %v1823 = vadd.f32 %v1822, 1.0
        %v1824 = vmul.f32 %v1823, %v1335
        %v1825 = vand.u32 2147483647, %v1335
        %vm1826 = vcmp.lt.f32.partialorder %v1825, 0.0004427343
        %v1827 = vsel %vm1826, %v1824, %v1821
        %v1828 = vadd.f32 %v1337, 1.0
        %v1829 = vlog2.pop %v1828
        %v1830 = vmul.f32 %v1829, 0.6931472
        %v1831 = vmul.f32 -0.5, %v1337
        %v1832 = vadd.f32 %v1831, 1.0
        %v1833 = vmul.f32 %v1832, %v1337
        %v1834 = vand.u32 2147483647, %v1337
        %vm1835 = vcmp.lt.f32.partialorder %v1834, 0.0004427343
        %v1836 = vsel %vm1835, %v1833, %v1830
        %v1837 = vadd.f32 %v1339, 1.0
        %v1838 = vlog2.pop %v1837
        %v1839 = vmul.f32 %v1838, 0.6931472
        %v1840 = vmul.f32 -0.5, %v1339
        %v1841 = vadd.f32 %v1840, 1.0
        %v1842 = vmul.f32 %v1841, %v1339
        %v1843 = vand.u32 2147483647, %v1339
        %vm1844 = vcmp.lt.f32.partialorder %v1843, 0.0004427343
        %v1845 = vsel %vm1844, %v1842, %v1839
        %v1846 = vadd.f32 %v1341, 1.0
        %v1847 = vlog2.pop %v1846
        %v1848 = vmul.f32 %v1847, 0.6931472
        %v1849 = vmul.f32 -0.5, %v1341
        %v1850 = vadd.f32 %v1849, 1.0
        %v1851 = vmul.f32 %v1850, %v1341
        %v1852 = vand.u32 2147483647, %v1341
        %vm1853 = vcmp.lt.f32.partialorder %v1852, 0.0004427343
        %v1854 = vsel %vm1853, %v1851, %v1848
        %v1855 = vadd.f32 %v1343, 1.0
        %v1856 = vlog2.pop %v1855
        %v1857 = vmul.f32 %v1856, 0.6931472
        %v1858 = vmul.f32 -0.5, %v1343
        %v1859 = vadd.f32 %v1858, 1.0
        %v1860 = vmul.f32 %v1859, %v1343
        %v1861 = vand.u32 2147483647, %v1343
        %vm1862 = vcmp.lt.f32.partialorder %v1861, 0.0004427343
        %v1863 = vsel %vm1862, %v1860, %v1857
        %v1864 = vadd.f32 %v1345, 1.0
        %v1865 = vlog2.pop %v1864
        %v1866 = vmul.f32 %v1865, 0.6931472
        %v1867 = vmul.f32 -0.5, %v1345
        %v1868 = vadd.f32 %v1867, 1.0
        %v1869 = vmul.f32 %v1868, %v1345
        %v1870 = vand.u32 2147483647, %v1345
        %vm1871 = vcmp.lt.f32.partialorder %v1870, 0.0004427343
        %v1872 = vsel %vm1871, %v1869, %v1866
        %v1873 = vadd.f32 %v1347, 1.0
        %v1874 = vlog2.pop %v1873
        %v1875 = vmul.f32 %v1874, 0.6931472
        %v1876 = vmul.f32 -0.5, %v1347
        %v1877 = vadd.f32 %v1876, 1.0
        %v1878 = vmul.f32 %v1877, %v1347
        %v1879 = vand.u32 2147483647, %v1347
        %vm1880 = vcmp.lt.f32.partialorder %v1879, 0.0004427343
        %v1881 = vsel %vm1880, %v1878, %v1875
        %v1882 = vadd.f32 %v1349, 1.0
        %v1883 = vlog2.pop %v1882
        %v1884 = vmul.f32 %v1883, 0.6931472
        %v1885 = vmul.f32 -0.5, %v1349
        %v1886 = vadd.f32 %v1885, 1.0
        %v1887 = vmul.f32 %v1886, %v1349
        %v1888 = vand.u32 2147483647, %v1349
        %vm1889 = vcmp.lt.f32.partialorder %v1888, 0.0004427343
        %v1890 = vsel %vm1889, %v1887, %v1884
        %v1891 = vadd.f32 %v1351, 1.0
        %v1892 = vlog2.pop %v1891
        %v1893 = vmul.f32 %v1892, 0.6931472
        %v1894 = vmul.f32 -0.5, %v1351
        %v1895 = vadd.f32 %v1894, 1.0
        %v1896 = vmul.f32 %v1895, %v1351
        %v1897 = vand.u32 2147483647, %v1351
        %vm1898 = vcmp.lt.f32.partialorder %v1897, 0.0004427343
        %v1899 = vsel %vm1898, %v1896, %v1893
        %v1900 = vadd.f32 %v1353, 1.0
        %v1901 = vlog2.pop %v1900
        %v1902 = vmul.f32 %v1901, 0.6931472
        %v1903 = vmul.f32 -0.5, %v1353
        %v1904 = vadd.f32 %v1903, 1.0
        %v1905 = vmul.f32 %v1904, %v1353
        %v1906 = vand.u32 2147483647, %v1353
        %vm1907 = vcmp.lt.f32.partialorder %v1906, 0.0004427343
        %v1908 = vsel %vm1907, %v1905, %v1902
        %v1909 = vadd.f32 %v1355, 1.0
        %v1910 = vlog2.pop %v1909
        %v1911 = vmul.f32 %v1910, 0.6931472
        %v1912 = vmul.f32 -0.5, %v1355
        %v1913 = vadd.f32 %v1912, 1.0
        %v1914 = vmul.f32 %v1913, %v1355
        %v1915 = vand.u32 2147483647, %v1355
        %vm1916 = vcmp.lt.f32.partialorder %v1915, 0.0004427343
        %v1917 = vsel %vm1916, %v1914, %v1911
        %v1918 = vadd.f32 %v1357, 1.0
        %v1919 = vlog2.pop %v1918
        %v1920 = vmul.f32 %v1919, 0.6931472
        %v1921 = vmul.f32 -0.5, %v1357
        %v1922 = vadd.f32 %v1921, 1.0
        %v1923 = vmul.f32 %v1922, %v1357
        %v1924 = vand.u32 2147483647, %v1357
        %vm1925 = vcmp.lt.f32.partialorder %v1924, 0.0004427343
        %v1926 = vsel %vm1925, %v1923, %v1920
        %v1927 = vadd.f32 %v1359, 1.0
        %v1928 = vlog2.pop %v1927
        %v1929 = vmul.f32 %v1928, 0.6931472
        %v1930 = vmul.f32 -0.5, %v1359
        %v1931 = vadd.f32 %v1930, 1.0
        %v1932 = vmul.f32 %v1931, %v1359
        %v1933 = vand.u32 2147483647, %v1359
        %vm1934 = vcmp.lt.f32.partialorder %v1933, 0.0004427343
        %v1935 = vsel %vm1934, %v1932, %v1929
        %v1936 = vadd.f32 %v912, %v1368
        %v1937 = vadd.f32 %v913, %v1377
        %v1938 = vadd.f32 %v914, %v1386
        %v1939 = vadd.f32 %v915, %v1395
        %v1940 = vadd.f32 %v916, %v1404
        %v1941 = vadd.f32 %v917, %v1413
        %v1942 = vadd.f32 %v918, %v1422
        %v1943 = vadd.f32 %v919, %v1431
        %v1944 = vadd.f32 %v920, %v1440
        %v1945 = vadd.f32 %v921, %v1449
        %v1946 = vadd.f32 %v922, %v1458
        %v1947 = vadd.f32 %v923, %v1467
        %v1948 = vadd.f32 %v924, %v1476
        %v1949 = vadd.f32 %v925, %v1485
        %v1950 = vadd.f32 %v926, %v1494
        %v1951 = vadd.f32 %v927, %v1503
        %v1952 = vadd.f32 %v928, %v1512
        %v1953 = vadd.f32 %v929, %v1521
        %v1954 = vadd.f32 %v930, %v1530
        %v1955 = vadd.f32 %v931, %v1539
        %v1956 = vadd.f32 %v932, %v1548
        %v1957 = vadd.f32 %v933, %v1557
        %v1958 = vadd.f32 %v934, %v1566
        %v1959 = vadd.f32 %v935, %v1575
        %v1960 = vadd.f32 %v936, %v1584
        %v1961 = vadd.f32 %v937, %v1593
        %v1962 = vadd.f32 %v938, %v1602
        %v1963 = vadd.f32 %v939, %v1611
        %v1964 = vadd.f32 %v940, %v1620
        %v1965 = vadd.f32 %v941, %v1629
        %v1966 = vadd.f32 %v942, %v1638
        %v1967 = vadd.f32 %v943, %v1647
        %v1968 = vadd.f32 %v944, %v1656
        %v1969 = vadd.f32 %v945, %v1665
        %v1970 = vadd.f32 %v946, %v1674
        %v1971 = vadd.f32 %v947, %v1683
        %v1972 = vadd.f32 %v948, %v1692
        %v1973 = vadd.f32 %v949, %v1701
        %v1974 = vadd.f32 %v950, %v1710
        %v1975 = vadd.f32 %v951, %v1719
        %v1976 = vadd.f32 %v952, %v1728
        %v1977 = vadd.f32 %v953, %v1737
        %v1978 = vadd.f32 %v954, %v1746
        %v1979 = vadd.f32 %v955, %v1755
        %v1980 = vadd.f32 %v956, %v1764
        %v1981 = vadd.f32 %v957, %v1773
        %v1982 = vadd.f32 %v958, %v1782
        %v1983 = vadd.f32 %v959, %v1791
        %v1984 = vadd.f32 %v960, %v1800
        %v1985 = vadd.f32 %v961, %v1809
        %v1986 = vadd.f32 %v962, %v1818
        %v1987 = vadd.f32 %v963, %v1827
        %v1988 = vadd.f32 %v964, %v1836
        %v1989 = vadd.f32 %v965, %v1845
        %v1990 = vadd.f32 %v966, %v1854
        %v1991 = vadd.f32 %v967, %v1863
        %v1992 = vadd.f32 %v968, %v1872
        %v1993 = vadd.f32 %v969, %v1881
        %v1994 = vadd.f32 %v970, %v1890
        %v1995 = vadd.f32 %v971, %v1899
        %v1996 = vadd.f32 %v972, %v1908
        %v1997 = vadd.f32 %v973, %v1917
        %v1998 = vadd.f32 %v974, %v1926
        %v1999 = vadd.f32 %v975, %v1935
        %v2000 = vsel %vm976, %v1040, %v1936
        %v2001 = vsel %vm977, %v1041, %v1937
        %v2002 = vsel %vm978, %v1042, %v1938
        %v2003 = vsel %vm979, %v1043, %v1939
        %v2004 = vsel %vm980, %v1044, %v1940
        %v2005 = vsel %vm981, %v1045, %v1941
        %v2006 = vsel %vm982, %v1046, %v1942
        %v2007 = vsel %vm983, %v1047, %v1943
        %v2008 = vsel %vm984, %v1048, %v1944
        %v2009 = vsel %vm985, %v1049, %v1945
        %v2010 = vsel %vm986, %v1050, %v1946
        %v2011 = vsel %vm987, %v1051, %v1947
        %v2012 = vsel %vm988, %v1052, %v1948
        %v2013 = vsel %vm989, %v1053, %v1949
        %v2014 = vsel %vm990, %v1054, %v1950
        %v2015 = vsel %vm991, %v1055, %v1951
        %v2016 = vsel %vm992, %v1056, %v1952
        %v2017 = vsel %vm993, %v1057, %v1953
        %v2018 = vsel %vm994, %v1058, %v1954
        %v2019 = vsel %vm995, %v1059, %v1955
        %v2020 = vsel %vm996, %v1060, %v1956
        %v2021 = vsel %vm997, %v1061, %v1957
        %v2022 = vsel %vm998, %v1062, %v1958
        %v2023 = vsel %vm999, %v1063, %v1959
        %v2024 = vsel %vm1000, %v1064, %v1960
        %v2025 = vsel %vm1001, %v1065, %v1961
        %v2026 = vsel %vm1002, %v1066, %v1962
        %v2027 = vsel %vm1003, %v1067, %v1963
        %v2028 = vsel %vm1004, %v1068, %v1964
        %v2029 = vsel %vm1005, %v1069, %v1965
        %v2030 = vsel %vm1006, %v1070, %v1966
        %v2031 = vsel %vm1007, %v1071, %v1967
        %v2032 = vsel %vm1008, %v1072, %v1968
        %v2033 = vsel %vm1009, %v1073, %v1969
        %v2034 = vsel %vm1010, %v1074, %v1970
        %v2035 = vsel %vm1011, %v1075, %v1971
        %v2036 = vsel %vm1012, %v1076, %v1972
        %v2037 = vsel %vm1013, %v1077, %v1973
        %v2038 = vsel %vm1014, %v1078, %v1974
        %v2039 = vsel %vm1015, %v1079, %v1975
        %v2040 = vsel %vm1016, %v1080, %v1976
        %v2041 = vsel %vm1017, %v1081, %v1977
        %v2042 = vsel %vm1018, %v1082, %v1978
        %v2043 = vsel %vm1019, %v1083, %v1979
        %v2044 = vsel %vm1020, %v1084, %v1980
        %v2045 = vsel %vm1021, %v1085, %v1981
        %v2046 = vsel %vm1022, %v1086, %v1982
        %v2047 = vsel %vm1023, %v1087, %v1983
        %v2048 = vsel %vm1024, %v1088, %v1984
        %v2049 = vsel %vm1025, %v1089, %v1985
        %v2050 = vsel %vm1026, %v1090, %v1986
        %v2051 = vsel %vm1027, %v1091, %v1987
        %v2052 = vsel %vm1028, %v1092, %v1988
        %v2053 = vsel %vm1029, %v1093, %v1989
        %v2054 = vsel %vm1030, %v1094, %v1990
        %v2055 = vsel %vm1031, %v1095, %v1991
        %v2056 = vsel %vm1032, %v1096, %v1992
        %v2057 = vsel %vm1033, %v1097, %v1993
        %v2058 = vsel %vm1034, %v1098, %v1994
        %v2059 = vsel %vm1035, %v1099, %v1995
        %v2060 = vsel %vm1036, %v1100, %v1996
        %v2061 = vsel %vm1037, %v1101, %v1997
        %v2062 = vsel %vm1038, %v1102, %v1998
        %v2063 = vsel %vm1039, %v1103, %v1999
        %v2064 = vld [vmem:[#allocation8] sm:$0xff]
        %v2065 = vld [vmem:[#allocation8 + $0x8] sm:$0xff]
        %v2066 = vld [vmem:[#allocation8 + $0x10] sm:$0xff]
        %v2067 = vld [vmem:[#allocation8 + $0x18] sm:$0xff]
        %v2068 = vld [vmem:[#allocation8 + $0x20] sm:$0xff]
        %v2069 = vld [vmem:[#allocation8 + $0x28] sm:$0xff]
        %v2070 = vld [vmem:[#allocation8 + $0x30] sm:$0xff]
        %v2071 = vld [vmem:[#allocation8 + $0x38] sm:$0xff]
        %v2072 = vld [vmem:[#allocation8 + $0x40] sm:$0xff]
        %v2073 = vld [vmem:[#allocation8 + $0x48] sm:$0xff]
        %v2074 = vld [vmem:[#allocation8 + $0x50] sm:$0xff]
        %v2075 = vld [vmem:[#allocation8 + $0x58] sm:$0xff]
        %v2076 = vld [vmem:[#allocation8 + $0x60] sm:$0xff]
        %v2077 = vld [vmem:[#allocation8 + $0x68] sm:$0xff]
        %v2078 = vld [vmem:[#allocation8 + $0x70] sm:$0xff]
        %v2079 = vld [vmem:[#allocation8 + $0x78] sm:$0xff]
        %v2080 = vld [vmem:[#allocation8 + $0x80] sm:$0xff]
        %v2081 = vld [vmem:[#allocation8 + $0x88] sm:$0xff]
        %v2082 = vld [vmem:[#allocation8 + $0x90] sm:$0xff]
        %v2083 = vld [vmem:[#allocation8 + $0x98] sm:$0xff]
        %v2084 = vld [vmem:[#allocation8 + $0xa0] sm:$0xff]
        %v2085 = vld [vmem:[#allocation8 + $0xa8] sm:$0xff]
        %v2086 = vld [vmem:[#allocation8 + $0xb0] sm:$0xff]
        %v2087 = vld [vmem:[#allocation8 + $0xb8] sm:$0xff]
        %v2088 = vld [vmem:[#allocation8 + $0xc0] sm:$0xff]
        %v2089 = vld [vmem:[#allocation8 + $0xc8] sm:$0xff]
        %v2090 = vld [vmem:[#allocation8 + $0xd0] sm:$0xff]
        %v2091 = vld [vmem:[#allocation8 + $0xd8] sm:$0xff]
        %v2092 = vld [vmem:[#allocation8 + $0xe0] sm:$0xff]
        %v2093 = vld [vmem:[#allocation8 + $0xe8] sm:$0xff]
        %v2094 = vld [vmem:[#allocation8 + $0xf0] sm:$0xff]
        %v2095 = vld [vmem:[#allocation8 + $0xf8] sm:$0xff]
        %v2096 = vld [vmem:[%s4] sm:$0x1]
        %v2098 = vperm.slane %v2096, 0
        %2100 = vmatpush.msra.mxu0 %v2079
        %2101 = vmatpush.msra.mxu0 %v2078
        %2102 = vmatpush.msra.mxu0 %v2077
        %2103 = vmatpush.msra.mxu0 %v2076
        %2104 = vmatpush.msra.mxu0 %v2075
        %2105 = vmatpush.msra.mxu0 %v2074
        %2106 = vmatpush.msra.mxu0 %v2073
        %2107 = vmatpush.msra.mxu0 %v2072
        %2108 = vmatpush.msra.mxu0 %v2071
        %2109 = vmatpush.msra.mxu0 %v2070
        %2110 = vmatpush.msra.mxu0 %v2069
        %2111 = vmatpush.msra.mxu0 %v2068
        %2112 = vmatpush.msra.mxu0 %v2067
        %2113 = vmatpush.msra.mxu0 %v2066
        %2114 = vmatpush.msra.mxu0 %v2065
        %2115 = vmatpush.msra.mxu0 %v2064
        %2116 = vmatmul.f32.gmra.mxu0 %v2000
        %v2117 = vpop.f32.mrf.mxu0
        %v2118 = vadd.f32 %v2098, %v2117
        %2119 = vmatmul.f32.gmra.mxu0 %v2002
        %v2120 = vpop.f32.mrf.mxu0
        %v2121 = vadd.f32 %v2098, %v2120
        %2122 = vmatmul.f32.gmra.mxu0 %v2004
        %v2123 = vpop.f32.mrf.mxu0
        %v2124 = vadd.f32 %v2098, %v2123
        %2125 = vmatmul.f32.gmra.mxu0 %v2006
        %v2126 = vpop.f32.mrf.mxu0
        %v2127 = vadd.f32 %v2098, %v2126
        %2128 = vmatmul.f32.gmra.mxu0 %v2008
        %v2129 = vpop.f32.mrf.mxu0
        %v2130 = vadd.f32 %v2098, %v2129
        %2131 = vmatmul.f32.gmra.mxu0 %v2010
        %v2132 = vpop.f32.mrf.mxu0
        %v2133 = vadd.f32 %v2098, %v2132
        %2134 = vmatmul.f32.gmra.mxu0 %v2012
        %v2135 = vpop.f32.mrf.mxu0
        %v2136 = vadd.f32 %v2098, %v2135
        %2137 = vmatmul.f32.gmra.mxu0 %v2014
        %v2138 = vpop.f32.mrf.mxu0
        %v2139 = vadd.f32 %v2098, %v2138
        %2140 = vmatmul.f32.gmra.mxu0 %v2016
        %v2141 = vpop.f32.mrf.mxu0
        %v2142 = vadd.f32 %v2098, %v2141
        %2143 = vmatmul.f32.gmra.mxu0 %v2018
        %v2144 = vpop.f32.mrf.mxu0
        %v2145 = vadd.f32 %v2098, %v2144
        %2146 = vmatmul.f32.gmra.mxu0 %v2020
        %v2147 = vpop.f32.mrf.mxu0
        %v2148 = vadd.f32 %v2098, %v2147
        %2149 = vmatmul.f32.gmra.mxu0 %v2022
        %v2150 = vpop.f32.mrf.mxu0
        %v2151 = vadd.f32 %v2098, %v2150
        %2152 = vmatmul.f32.gmra.mxu0 %v2024
        %v2153 = vpop.f32.mrf.mxu0
        %v2154 = vadd.f32 %v2098, %v2153
        %2155 = vmatmul.f32.gmra.mxu0 %v2026
        %v2156 = vpop.f32.mrf.mxu0
        %v2157 = vadd.f32 %v2098, %v2156
        %2158 = vmatmul.f32.gmra.mxu0 %v2028
        %v2159 = vpop.f32.mrf.mxu0
        %v2160 = vadd.f32 %v2098, %v2159
        %2161 = vmatmul.f32.gmra.mxu0 %v2030
        %v2162 = vpop.f32.mrf.mxu0
        %v2163 = vadd.f32 %v2098, %v2162
        %2164 = vmatmul.f32.gmra.mxu0 %v2032
        %v2165 = vpop.f32.mrf.mxu0
        %v2166 = vadd.f32 %v2098, %v2165
        %2167 = vmatmul.f32.gmra.mxu0 %v2034
        %v2168 = vpop.f32.mrf.mxu0
        %v2169 = vadd.f32 %v2098, %v2168
        %2170 = vmatmul.f32.gmra.mxu0 %v2036
        %v2171 = vpop.f32.mrf.mxu0
        %v2172 = vadd.f32 %v2098, %v2171
        %2173 = vmatmul.f32.gmra.mxu0 %v2038
        %v2174 = vpop.f32.mrf.mxu0
        %v2175 = vadd.f32 %v2098, %v2174
        %2176 = vmatmul.f32.gmra.mxu0 %v2040
        %v2177 = vpop.f32.mrf.mxu0
        %v2178 = vadd.f32 %v2098, %v2177
        %2179 = vmatmul.f32.gmra.mxu0 %v2042
        %v2180 = vpop.f32.mrf.mxu0
        %v2181 = vadd.f32 %v2098, %v2180
        %2182 = vmatmul.f32.gmra.mxu0 %v2044
        %v2183 = vpop.f32.mrf.mxu0
        %v2184 = vadd.f32 %v2098, %v2183
        %2185 = vmatmul.f32.gmra.mxu0 %v2046
        %v2186 = vpop.f32.mrf.mxu0
        %v2187 = vadd.f32 %v2098, %v2186
        %2188 = vmatmul.f32.gmra.mxu0 %v2048
        %v2189 = vpop.f32.mrf.mxu0
        %v2190 = vadd.f32 %v2098, %v2189
        %2191 = vmatmul.f32.gmra.mxu0 %v2050
        %v2192 = vpop.f32.mrf.mxu0
        %v2193 = vadd.f32 %v2098, %v2192
        %2194 = vmatmul.f32.gmra.mxu0 %v2052
        %v2195 = vpop.f32.mrf.mxu0
        %v2196 = vadd.f32 %v2098, %v2195
        %2197 = vmatmul.f32.gmra.mxu0 %v2054
        %v2198 = vpop.f32.mrf.mxu0
        %v2199 = vadd.f32 %v2098, %v2198
        %2200 = vmatmul.f32.gmra.mxu0 %v2056
        %v2201 = vpop.f32.mrf.mxu0
        %v2202 = vadd.f32 %v2098, %v2201
        %2203 = vmatmul.f32.gmra.mxu0 %v2058
        %v2204 = vpop.f32.mrf.mxu0
        %v2205 = vadd.f32 %v2098, %v2204
        %2206 = vmatmul.f32.gmra.mxu0 %v2060
        %v2207 = vpop.f32.mrf.mxu0
        %v2208 = vadd.f32 %v2098, %v2207
        %2209 = vmatmul.f32.gmra.mxu0 %v2062
        %v2210 = vpop.f32.mrf.mxu0
        %v2211 = vadd.f32 %v2098, %v2210
        %2212 = vdwg.mxu0
        %2213 = vmatpush.msra.mxu0 %v2095
        %2214 = vmatpush.msra.mxu0 %v2094
        %2215 = vmatpush.msra.mxu0 %v2093
        %2216 = vmatpush.msra.mxu0 %v2092
        %2217 = vmatpush.msra.mxu0 %v2091
        %2218 = vmatpush.msra.mxu0 %v2090
        %2219 = vmatpush.msra.mxu0 %v2089
        %2220 = vmatpush.msra.mxu0 %v2088
        %2221 = vmatpush.msra.mxu0 %v2087
        %2222 = vmatpush.msra.mxu0 %v2086
        %2223 = vmatpush.msra.mxu0 %v2085
        %2224 = vmatpush.msra.mxu0 %v2084
        %2225 = vmatpush.msra.mxu0 %v2083
        %2226 = vmatpush.msra.mxu0 %v2082
        %2227 = vmatpush.msra.mxu0 %v2081
        %2228 = vmatpush.msra.mxu0 %v2080
        %2229 = vmatmul.f32.gmra.mxu0 %v2001
        %v2230 = vpop.f32.mrf.mxu0
        %v2231 = vadd.f32 %v2118, %v2230
        %2232 = vmatmul.f32.gmra.mxu0 %v2003
        %v2233 = vpop.f32.mrf.mxu0
        %v2234 = vadd.f32 %v2121, %v2233
        %2235 = vmatmul.f32.gmra.mxu0 %v2005
        %v2236 = vpop.f32.mrf.mxu0
        %v2237 = vadd.f32 %v2124, %v2236
        %2238 = vmatmul.f32.gmra.mxu0 %v2007
        %v2239 = vpop.f32.mrf.mxu0
        %v2240 = vadd.f32 %v2127, %v2239
        %2241 = vmatmul.f32.gmra.mxu0 %v2009
        %v2242 = vpop.f32.mrf.mxu0
        %v2243 = vadd.f32 %v2130, %v2242
        %2244 = vmatmul.f32.gmra.mxu0 %v2011
        %v2245 = vpop.f32.mrf.mxu0
        %v2246 = vadd.f32 %v2133, %v2245
        %2247 = vmatmul.f32.gmra.mxu0 %v2013
        %v2248 = vpop.f32.mrf.mxu0
        %v2249 = vadd.f32 %v2136, %v2248
        %2250 = vmatmul.f32.gmra.mxu0 %v2015
        %v2251 = vpop.f32.mrf.mxu0
        %v2252 = vadd.f32 %v2139, %v2251
        %2253 = vmatmul.f32.gmra.mxu0 %v2017
        %v2254 = vpop.f32.mrf.mxu0
        %v2255 = vadd.f32 %v2142, %v2254
        %2256 = vmatmul.f32.gmra.mxu0 %v2019
        %v2257 = vpop.f32.mrf.mxu0
        %v2258 = vadd.f32 %v2145, %v2257
        %2259 = vmatmul.f32.gmra.mxu0 %v2021
        %v2260 = vpop.f32.mrf.mxu0
        %v2261 = vadd.f32 %v2148, %v2260
        %2262 = vmatmul.f32.gmra.mxu0 %v2023
        %v2263 = vpop.f32.mrf.mxu0
        %v2264 = vadd.f32 %v2151, %v2263
        %2265 = vmatmul.f32.gmra.mxu0 %v2025
        %v2266 = vpop.f32.mrf.mxu0
        %v2267 = vadd.f32 %v2154, %v2266
        %2268 = vmatmul.f32.gmra.mxu0 %v2027
        %v2269 = vpop.f32.mrf.mxu0
        %v2270 = vadd.f32 %v2157, %v2269
        %2271 = vmatmul.f32.gmra.mxu0 %v2029
        %v2272 = vpop.f32.mrf.mxu0
        %v2273 = vadd.f32 %v2160, %v2272
        %2274 = vmatmul.f32.gmra.mxu0 %v2031
        %v2275 = vpop.f32.mrf.mxu0
        %v2276 = vadd.f32 %v2163, %v2275
        %2277 = vmatmul.f32.gmra.mxu0 %v2033
        %v2278 = vpop.f32.mrf.mxu0
        %v2279 = vadd.f32 %v2166, %v2278
        %2280 = vmatmul.f32.gmra.mxu0 %v2035
        %v2281 = vpop.f32.mrf.mxu0
        %v2282 = vadd.f32 %v2169, %v2281
        %2283 = vmatmul.f32.gmra.mxu0 %v2037
        %v2284 = vpop.f32.mrf.mxu0
        %v2285 = vadd.f32 %v2172, %v2284
        %2286 = vmatmul.f32.gmra.mxu0 %v2039
        %v2287 = vpop.f32.mrf.mxu0
        %v2288 = vadd.f32 %v2175, %v2287
        %2289 = vmatmul.f32.gmra.mxu0 %v2041
        %v2290 = vpop.f32.mrf.mxu0
        %v2291 = vadd.f32 %v2178, %v2290
        %2292 = vmatmul.f32.gmra.mxu0 %v2043
        %v2293 = vpop.f32.mrf.mxu0
        %v2294 = vadd.f32 %v2181, %v2293
        %2295 = vmatmul.f32.gmra.mxu0 %v2045
        %v2296 = vpop.f32.mrf.mxu0
        %v2297 = vadd.f32 %v2184, %v2296
        %2298 = vmatmul.f32.gmra.mxu0 %v2047
        %v2299 = vpop.f32.mrf.mxu0
        %v2300 = vadd.f32 %v2187, %v2299
        %2301 = vmatmul.f32.gmra.mxu0 %v2049
        %v2302 = vpop.f32.mrf.mxu0
        %v2303 = vadd.f32 %v2190, %v2302
        %2304 = vmatmul.f32.gmra.mxu0 %v2051
        %v2305 = vpop.f32.mrf.mxu0
        %v2306 = vadd.f32 %v2193, %v2305
        %2307 = vmatmul.f32.gmra.mxu0 %v2053
        %v2308 = vpop.f32.mrf.mxu0
        %v2309 = vadd.f32 %v2196, %v2308
        %2310 = vmatmul.f32.gmra.mxu0 %v2055
        %v2311 = vpop.f32.mrf.mxu0
        %v2312 = vadd.f32 %v2199, %v2311
        %2313 = vmatmul.f32.gmra.mxu0 %v2057
        %v2314 = vpop.f32.mrf.mxu0
        %v2315 = vadd.f32 %v2202, %v2314
        %2316 = vmatmul.f32.gmra.mxu0 %v2059
        %v2317 = vpop.f32.mrf.mxu0
        %v2318 = vadd.f32 %v2205, %v2317
        %2319 = vmatmul.f32.gmra.mxu0 %v2061
        %v2320 = vpop.f32.mrf.mxu0
        %v2321 = vadd.f32 %v2208, %v2320
        %2322 = vmatmul.f32.gmra.mxu0 %v2063
        %v2323 = vpop.f32.mrf.mxu0
        %v2324 = vadd.f32 %v2211, %v2323
        %2325 = vdwg.mxu0
        %v2326 = vmax.f32 %v2231, 0.0
        %v2327 = vmax.f32 %v2234, 0.0
        %v2328 = vmax.f32 %v2237, 0.0
        %v2329 = vmax.f32 %v2240, 0.0
        %v2330 = vmax.f32 %v2243, 0.0
        %v2331 = vmax.f32 %v2246, 0.0
        %v2332 = vmax.f32 %v2249, 0.0
        %v2333 = vmax.f32 %v2252, 0.0
        %v2334 = vmax.f32 %v2255, 0.0
        %v2335 = vmax.f32 %v2258, 0.0
        %v2336 = vmax.f32 %v2261, 0.0
        %v2337 = vmax.f32 %v2264, 0.0
        %v2338 = vmax.f32 %v2267, 0.0
        %v2339 = vmax.f32 %v2270, 0.0
        %v2340 = vmax.f32 %v2273, 0.0
        %v2341 = vmax.f32 %v2276, 0.0
        %v2342 = vmax.f32 %v2279, 0.0
        %v2343 = vmax.f32 %v2282, 0.0
        %v2344 = vmax.f32 %v2285, 0.0
        %v2345 = vmax.f32 %v2288, 0.0
        %v2346 = vmax.f32 %v2291, 0.0
        %v2347 = vmax.f32 %v2294, 0.0
        %v2348 = vmax.f32 %v2297, 0.0
        %v2349 = vmax.f32 %v2300, 0.0
        %v2350 = vmax.f32 %v2303, 0.0
        %v2351 = vmax.f32 %v2306, 0.0
        %v2352 = vmax.f32 %v2309, 0.0
        %v2353 = vmax.f32 %v2312, 0.0
        %v2354 = vmax.f32 %v2315, 0.0
        %v2355 = vmax.f32 %v2318, 0.0
        %v2356 = vmax.f32 %v2321, 0.0
        %v2357 = vmax.f32 %v2324, 0.0
        %vm2358 = vcmp.ne.f32.partialorder %v2231, %v2231
        %vm2359 = vcmp.ne.f32.partialorder %v2234, %v2234
        %vm2360 = vcmp.ne.f32.partialorder %v2237, %v2237
        %vm2361 = vcmp.ne.f32.partialorder %v2240, %v2240
        %vm2362 = vcmp.ne.f32.partialorder %v2243, %v2243
        %vm2363 = vcmp.ne.f32.partialorder %v2246, %v2246
        %vm2364 = vcmp.ne.f32.partialorder %v2249, %v2249
        %vm2365 = vcmp.ne.f32.partialorder %v2252, %v2252
        %vm2366 = vcmp.ne.f32.partialorder %v2255, %v2255
        %vm2367 = vcmp.ne.f32.partialorder %v2258, %v2258
        %vm2368 = vcmp.ne.f32.partialorder %v2261, %v2261
        %vm2369 = vcmp.ne.f32.partialorder %v2264, %v2264
        %vm2370 = vcmp.ne.f32.partialorder %v2267, %v2267
        %vm2371 = vcmp.ne.f32.partialorder %v2270, %v2270
        %vm2372 = vcmp.ne.f32.partialorder %v2273, %v2273
        %vm2373 = vcmp.ne.f32.partialorder %v2276, %v2276
        %vm2374 = vcmp.ne.f32.partialorder %v2279, %v2279
        %vm2375 = vcmp.ne.f32.partialorder %v2282, %v2282
        %vm2376 = vcmp.ne.f32.partialorder %v2285, %v2285
        %vm2377 = vcmp.ne.f32.partialorder %v2288, %v2288
        %vm2378 = vcmp.ne.f32.partialorder %v2291, %v2291
        %vm2379 = vcmp.ne.f32.partialorder %v2294, %v2294
        %vm2380 = vcmp.ne.f32.partialorder %v2297, %v2297
        %vm2381 = vcmp.ne.f32.partialorder %v2300, %v2300
        %vm2382 = vcmp.ne.f32.partialorder %v2303, %v2303
        %vm2383 = vcmp.ne.f32.partialorder %v2306, %v2306
        %vm2384 = vcmp.ne.f32.partialorder %v2309, %v2309
        %vm2385 = vcmp.ne.f32.partialorder %v2312, %v2312
        %vm2386 = vcmp.ne.f32.partialorder %v2315, %v2315
        %vm2387 = vcmp.ne.f32.partialorder %v2318, %v2318
        %vm2388 = vcmp.ne.f32.partialorder %v2321, %v2321
        %vm2389 = vcmp.ne.f32.partialorder %v2324, %v2324
        %v2390 = vadd.f32 %v2231, 0.0
        %v2391 = vadd.f32 %v2234, 0.0
        %v2392 = vadd.f32 %v2237, 0.0
        %v2393 = vadd.f32 %v2240, 0.0
        %v2394 = vadd.f32 %v2243, 0.0
        %v2395 = vadd.f32 %v2246, 0.0
        %v2396 = vadd.f32 %v2249, 0.0
        %v2397 = vadd.f32 %v2252, 0.0
        %v2398 = vadd.f32 %v2255, 0.0
        %v2399 = vadd.f32 %v2258, 0.0
        %v2400 = vadd.f32 %v2261, 0.0
        %v2401 = vadd.f32 %v2264, 0.0
        %v2402 = vadd.f32 %v2267, 0.0
        %v2403 = vadd.f32 %v2270, 0.0
        %v2404 = vadd.f32 %v2273, 0.0
        %v2405 = vadd.f32 %v2276, 0.0
        %v2406 = vadd.f32 %v2279, 0.0
        %v2407 = vadd.f32 %v2282, 0.0
        %v2408 = vadd.f32 %v2285, 0.0
        %v2409 = vadd.f32 %v2288, 0.0
        %v2410 = vadd.f32 %v2291, 0.0
        %v2411 = vadd.f32 %v2294, 0.0
        %v2412 = vadd.f32 %v2297, 0.0
        %v2413 = vadd.f32 %v2300, 0.0
        %v2414 = vadd.f32 %v2303, 0.0
        %v2415 = vadd.f32 %v2306, 0.0
        %v2416 = vadd.f32 %v2309, 0.0
        %v2417 = vadd.f32 %v2312, 0.0
        %v2418 = vadd.f32 %v2315, 0.0
        %v2419 = vadd.f32 %v2318, 0.0
        %v2420 = vadd.f32 %v2321, 0.0
        %v2421 = vadd.f32 %v2324, 0.0
        %v2422 = vand.u32 2147483647, %v2231
        %v2423 = vand.u32 2147483647, %v2234
        %v2424 = vand.u32 2147483647, %v2237
        %v2425 = vand.u32 2147483647, %v2240
        %v2426 = vand.u32 2147483647, %v2243
        %v2427 = vand.u32 2147483647, %v2246
        %v2428 = vand.u32 2147483647, %v2249
        %v2429 = vand.u32 2147483647, %v2252
        %v2430 = vand.u32 2147483647, %v2255
        %v2431 = vand.u32 2147483647, %v2258
        %v2432 = vand.u32 2147483647, %v2261
        %v2433 = vand.u32 2147483647, %v2264
        %v2434 = vand.u32 2147483647, %v2267
        %v2435 = vand.u32 2147483647, %v2270
        %v2436 = vand.u32 2147483647, %v2273
        %v2437 = vand.u32 2147483647, %v2276
        %v2438 = vand.u32 2147483647, %v2279
        %v2439 = vand.u32 2147483647, %v2282
        %v2440 = vand.u32 2147483647, %v2285
        %v2441 = vand.u32 2147483647, %v2288
        %v2442 = vand.u32 2147483647, %v2291
        %v2443 = vand.u32 2147483647, %v2294
        %v2444 = vand.u32 2147483647, %v2297
        %v2445 = vand.u32 2147483647, %v2300
        %v2446 = vand.u32 2147483647, %v2303
        %v2447 = vand.u32 2147483647, %v2306
        %v2448 = vand.u32 2147483647, %v2309
        %v2449 = vand.u32 2147483647, %v2312
        %v2450 = vand.u32 2147483647, %v2315
        %v2451 = vand.u32 2147483647, %v2318
        %v2452 = vand.u32 2147483647, %v2321
        %v2453 = vand.u32 2147483647, %v2324
        %v2454 = vsub.f32 0.0, %v2422
        %v2455 = vsub.f32 0.0, %v2423
        %v2456 = vsub.f32 0.0, %v2424
        %v2457 = vsub.f32 0.0, %v2425
        %v2458 = vsub.f32 0.0, %v2426
        %v2459 = vsub.f32 0.0, %v2427
        %v2460 = vsub.f32 0.0, %v2428
        %v2461 = vsub.f32 0.0, %v2429
        %v2462 = vsub.f32 0.0, %v2430
        %v2463 = vsub.f32 0.0, %v2431
        %v2464 = vsub.f32 0.0, %v2432
        %v2465 = vsub.f32 0.0, %v2433
        %v2466 = vsub.f32 0.0, %v2434
        %v2467 = vsub.f32 0.0, %v2435
        %v2468 = vsub.f32 0.0, %v2436
        %v2469 = vsub.f32 0.0, %v2437
        %v2470 = vsub.f32 0.0, %v2438
        %v2471 = vsub.f32 0.0, %v2439
        %v2472 = vsub.f32 0.0, %v2440
        %v2473 = vsub.f32 0.0, %v2441
        %v2474 = vsub.f32 0.0, %v2442
        %v2475 = vsub.f32 0.0, %v2443
        %v2476 = vsub.f32 0.0, %v2444
        %v2477 = vsub.f32 0.0, %v2445
        %v2478 = vsub.f32 0.0, %v2446
        %v2479 = vsub.f32 0.0, %v2447
        %v2480 = vsub.f32 0.0, %v2448
        %v2481 = vsub.f32 0.0, %v2449
        %v2482 = vsub.f32 0.0, %v2450
        %v2483 = vsub.f32 0.0, %v2451
        %v2484 = vsub.f32 0.0, %v2452
        %v2485 = vsub.f32 0.0, %v2453
        %v2486 = vmul.f32 %v2454, 1.442695
        %v2487 = vpow.pop %v2486
        %v2488 = vmul.f32 %v2455, 1.442695
        %v2489 = vpow.pop %v2488
        %v2490 = vmul.f32 %v2456, 1.442695
        %v2491 = vpow.pop %v2490
        %v2492 = vmul.f32 %v2457, 1.442695
        %v2493 = vpow.pop %v2492
        %v2494 = vmul.f32 %v2458, 1.442695
        %v2495 = vpow.pop %v2494
        %v2496 = vmul.f32 %v2459, 1.442695
        %v2497 = vpow.pop %v2496
        %v2498 = vmul.f32 %v2460, 1.442695
        %v2499 = vpow.pop %v2498
        %v2500 = vmul.f32 %v2461, 1.442695
        %v2501 = vpow.pop %v2500
        %v2502 = vmul.f32 %v2462, 1.442695
        %v2503 = vpow.pop %v2502
        %v2504 = vmul.f32 %v2463, 1.442695
        %v2505 = vpow.pop %v2504
        %v2506 = vmul.f32 %v2464, 1.442695
        %v2507 = vpow.pop %v2506
        %v2508 = vmul.f32 %v2465, 1.442695
        %v2509 = vpow.pop %v2508
        %v2510 = vmul.f32 %v2466, 1.442695
        %v2511 = vpow.pop %v2510
        %v2512 = vmul.f32 %v2467, 1.442695
        %v2513 = vpow.pop %v2512
        %v2514 = vmul.f32 %v2468, 1.442695
        %v2515 = vpow.pop %v2514
        %v2516 = vmul.f32 %v2469, 1.442695
        %v2517 = vpow.pop %v2516
        %v2518 = vmul.f32 %v2470, 1.442695
        %v2519 = vpow.pop %v2518
        %v2520 = vmul.f32 %v2471, 1.442695
        %v2521 = vpow.pop %v2520
        %v2522 = vmul.f32 %v2472, 1.442695
        %v2523 = vpow.pop %v2522
        %v2524 = vmul.f32 %v2473, 1.442695
        %v2525 = vpow.pop %v2524
        %v2526 = vmul.f32 %v2474, 1.442695
        %v2527 = vpow.pop %v2526
        %v2528 = vmul.f32 %v2475, 1.442695
        %v2529 = vpow.pop %v2528
        %v2530 = vmul.f32 %v2476, 1.442695
        %v2531 = vpow.pop %v2530
        %v2532 = vmul.f32 %v2477, 1.442695
        %v2533 = vpow.pop %v2532
        %v2534 = vmul.f32 %v2478, 1.442695
        %v2535 = vpow.pop %v2534
        %v2536 = vmul.f32 %v2479, 1.442695
        %v2537 = vpow.pop %v2536
        %v2538 = vmul.f32 %v2480, 1.442695
        %v2539 = vpow.pop %v2538
        %v2540 = vmul.f32 %v2481, 1.442695
        %v2541 = vpow.pop %v2540
        %v2542 = vmul.f32 %v2482, 1.442695
        %v2543 = vpow.pop %v2542
        %v2544 = vmul.f32 %v2483, 1.442695
        %v2545 = vpow.pop %v2544
        %v2546 = vmul.f32 %v2484, 1.442695
        %v2547 = vpow.pop %v2546
        %v2548 = vmul.f32 %v2485, 1.442695
        %v2549 = vpow.pop %v2548
        %v2550 = vadd.f32 %v2487, 1.0
        %v2551 = vlog2.pop %v2550
        %v2552 = vmul.f32 %v2551, 0.6931472
        %v2553 = vmul.f32 -0.5, %v2487
        %v2554 = vadd.f32 %v2553, 1.0
        %v2555 = vmul.f32 %v2554, %v2487
        %v2556 = vand.u32 2147483647, %v2487
        %vm2557 = vcmp.lt.f32.partialorder %v2556, 0.0004427343
        %v2558 = vsel %vm2557, %v2555, %v2552
        %v2559 = vadd.f32 %v2489, 1.0
        %v2560 = vlog2.pop %v2559
        %v2561 = vmul.f32 %v2560, 0.6931472
        %v2562 = vmul.f32 -0.5, %v2489
        %v2563 = vadd.f32 %v2562, 1.0
        %v2564 = vmul.f32 %v2563, %v2489
        %v2565 = vand.u32 2147483647, %v2489
        %vm2566 = vcmp.lt.f32.partialorder %v2565, 0.0004427343
        %v2567 = vsel %vm2566, %v2564, %v2561
        %v2568 = vadd.f32 %v2491, 1.0
        %v2569 = vlog2.pop %v2568
        %v2570 = vmul.f32 %v2569, 0.6931472
        %v2571 = vmul.f32 -0.5, %v2491
        %v2572 = vadd.f32 %v2571, 1.0
        %v2573 = vmul.f32 %v2572, %v2491
        %v2574 = vand.u32 2147483647, %v2491
        %vm2575 = vcmp.lt.f32.partialorder %v2574, 0.0004427343
        %v2576 = vsel %vm2575, %v2573, %v2570
        %v2577 = vadd.f32 %v2493, 1.0
        %v2578 = vlog2.pop %v2577
        %v2579 = vmul.f32 %v2578, 0.6931472
        %v2580 = vmul.f32 -0.5, %v2493
        %v2581 = vadd.f32 %v2580, 1.0
        %v2582 = vmul.f32 %v2581, %v2493
        %v2583 = vand.u32 2147483647, %v2493
        %vm2584 = vcmp.lt.f32.partialorder %v2583, 0.0004427343
        %v2585 = vsel %vm2584, %v2582, %v2579
        %v2586 = vadd.f32 %v2495, 1.0
        %v2587 = vlog2.pop %v2586
        %v2588 = vmul.f32 %v2587, 0.6931472
        %v2589 = vmul.f32 -0.5, %v2495
        %v2590 = vadd.f32 %v2589, 1.0
        %v2591 = vmul.f32 %v2590, %v2495
        %v2592 = vand.u32 2147483647, %v2495
        %vm2593 = vcmp.lt.f32.partialorder %v2592, 0.0004427343
        %v2594 = vsel %vm2593, %v2591, %v2588
        %v2595 = vadd.f32 %v2497, 1.0
        %v2596 = vlog2.pop %v2595
        %v2597 = vmul.f32 %v2596, 0.6931472
        %v2598 = vmul.f32 -0.5, %v2497
        %v2599 = vadd.f32 %v2598, 1.0
        %v2600 = vmul.f32 %v2599, %v2497
        %v2601 = vand.u32 2147483647, %v2497
        %vm2602 = vcmp.lt.f32.partialorder %v2601, 0.0004427343
        %v2603 = vsel %vm2602, %v2600, %v2597
        %v2604 = vadd.f32 %v2499, 1.0
        %v2605 = vlog2.pop %v2604
        %v2606 = vmul.f32 %v2605, 0.6931472
        %v2607 = vmul.f32 -0.5, %v2499
        %v2608 = vadd.f32 %v2607, 1.0
        %v2609 = vmul.f32 %v2608, %v2499
        %v2610 = vand.u32 2147483647, %v2499
        %vm2611 = vcmp.lt.f32.partialorder %v2610, 0.0004427343
        %v2612 = vsel %vm2611, %v2609, %v2606
        %v2613 = vadd.f32 %v2501, 1.0
        %v2614 = vlog2.pop %v2613
        %v2615 = vmul.f32 %v2614, 0.6931472
        %v2616 = vmul.f32 -0.5, %v2501
        %v2617 = vadd.f32 %v2616, 1.0
        %v2618 = vmul.f32 %v2617, %v2501
        %v2619 = vand.u32 2147483647, %v2501
        %vm2620 = vcmp.lt.f32.partialorder %v2619, 0.0004427343
        %v2621 = vsel %vm2620, %v2618, %v2615
        %v2622 = vadd.f32 %v2503, 1.0
        %v2623 = vlog2.pop %v2622
        %v2624 = vmul.f32 %v2623, 0.6931472
        %v2625 = vmul.f32 -0.5, %v2503
        %v2626 = vadd.f32 %v2625, 1.0
        %v2627 = vmul.f32 %v2626, %v2503
        %v2628 = vand.u32 2147483647, %v2503
        %vm2629 = vcmp.lt.f32.partialorder %v2628, 0.0004427343
        %v2630 = vsel %vm2629, %v2627, %v2624
        %v2631 = vadd.f32 %v2505, 1.0
        %v2632 = vlog2.pop %v2631
        %v2633 = vmul.f32 %v2632, 0.6931472
        %v2634 = vmul.f32 -0.5, %v2505
        %v2635 = vadd.f32 %v2634, 1.0
        %v2636 = vmul.f32 %v2635, %v2505
        %v2637 = vand.u32 2147483647, %v2505
        %vm2638 = vcmp.lt.f32.partialorder %v2637, 0.0004427343
        %v2639 = vsel %vm2638, %v2636, %v2633
        %v2640 = vadd.f32 %v2507, 1.0
        %v2641 = vlog2.pop %v2640
        %v2642 = vmul.f32 %v2641, 0.6931472
        %v2643 = vmul.f32 -0.5, %v2507
        %v2644 = vadd.f32 %v2643, 1.0
        %v2645 = vmul.f32 %v2644, %v2507
        %v2646 = vand.u32 2147483647, %v2507
        %vm2647 = vcmp.lt.f32.partialorder %v2646, 0.0004427343
        %v2648 = vsel %vm2647, %v2645, %v2642
        %v2649 = vadd.f32 %v2509, 1.0
        %v2650 = vlog2.pop %v2649
        %v2651 = vmul.f32 %v2650, 0.6931472
        %v2652 = vmul.f32 -0.5, %v2509
        %v2653 = vadd.f32 %v2652, 1.0
        %v2654 = vmul.f32 %v2653, %v2509
        %v2655 = vand.u32 2147483647, %v2509
        %vm2656 = vcmp.lt.f32.partialorder %v2655, 0.0004427343
        %v2657 = vsel %vm2656, %v2654, %v2651
        %v2658 = vadd.f32 %v2511, 1.0
        %v2659 = vlog2.pop %v2658
        %v2660 = vmul.f32 %v2659, 0.6931472
        %v2661 = vmul.f32 -0.5, %v2511
        %v2662 = vadd.f32 %v2661, 1.0
        %v2663 = vmul.f32 %v2662, %v2511
        %v2664 = vand.u32 2147483647, %v2511
        %vm2665 = vcmp.lt.f32.partialorder %v2664, 0.0004427343
        %v2666 = vsel %vm2665, %v2663, %v2660
        %v2667 = vadd.f32 %v2513, 1.0
        %v2668 = vlog2.pop %v2667
        %v2669 = vmul.f32 %v2668, 0.6931472
        %v2670 = vmul.f32 -0.5, %v2513
        %v2671 = vadd.f32 %v2670, 1.0
        %v2672 = vmul.f32 %v2671, %v2513
        %v2673 = vand.u32 2147483647, %v2513
        %vm2674 = vcmp.lt.f32.partialorder %v2673, 0.0004427343
        %v2675 = vsel %vm2674, %v2672, %v2669
        %v2676 = vadd.f32 %v2515, 1.0
        %v2677 = vlog2.pop %v2676
        %v2678 = vmul.f32 %v2677, 0.6931472
        %v2679 = vmul.f32 -0.5, %v2515
        %v2680 = vadd.f32 %v2679, 1.0
        %v2681 = vmul.f32 %v2680, %v2515
        %v2682 = vand.u32 2147483647, %v2515
        %vm2683 = vcmp.lt.f32.partialorder %v2682, 0.0004427343
        %v2684 = vsel %vm2683, %v2681, %v2678
        %v2685 = vadd.f32 %v2517, 1.0
        %v2686 = vlog2.pop %v2685
        %v2687 = vmul.f32 %v2686, 0.6931472
        %v2688 = vmul.f32 -0.5, %v2517
        %v2689 = vadd.f32 %v2688, 1.0
        %v2690 = vmul.f32 %v2689, %v2517
        %v2691 = vand.u32 2147483647, %v2517
        %vm2692 = vcmp.lt.f32.partialorder %v2691, 0.0004427343
        %v2693 = vsel %vm2692, %v2690, %v2687
        %v2694 = vadd.f32 %v2519, 1.0
        %v2695 = vlog2.pop %v2694
        %v2696 = vmul.f32 %v2695, 0.6931472
        %v2697 = vmul.f32 -0.5, %v2519
        %v2698 = vadd.f32 %v2697, 1.0
        %v2699 = vmul.f32 %v2698, %v2519
        %v2700 = vand.u32 2147483647, %v2519
        %vm2701 = vcmp.lt.f32.partialorder %v2700, 0.0004427343
        %v2702 = vsel %vm2701, %v2699, %v2696
        %v2703 = vadd.f32 %v2521, 1.0
        %v2704 = vlog2.pop %v2703
        %v2705 = vmul.f32 %v2704, 0.6931472
        %v2706 = vmul.f32 -0.5, %v2521
        %v2707 = vadd.f32 %v2706, 1.0
        %v2708 = vmul.f32 %v2707, %v2521
        %v2709 = vand.u32 2147483647, %v2521
        %vm2710 = vcmp.lt.f32.partialorder %v2709, 0.0004427343
        %v2711 = vsel %vm2710, %v2708, %v2705
        %v2712 = vadd.f32 %v2523, 1.0
        %v2713 = vlog2.pop %v2712
        %v2714 = vmul.f32 %v2713, 0.6931472
        %v2715 = vmul.f32 -0.5, %v2523
        %v2716 = vadd.f32 %v2715, 1.0
        %v2717 = vmul.f32 %v2716, %v2523
        %v2718 = vand.u32 2147483647, %v2523
        %vm2719 = vcmp.lt.f32.partialorder %v2718, 0.0004427343
        %v2720 = vsel %vm2719, %v2717, %v2714
        %v2721 = vadd.f32 %v2525, 1.0
        %v2722 = vlog2.pop %v2721
        %v2723 = vmul.f32 %v2722, 0.6931472
        %v2724 = vmul.f32 -0.5, %v2525
        %v2725 = vadd.f32 %v2724, 1.0
        %v2726 = vmul.f32 %v2725, %v2525
        %v2727 = vand.u32 2147483647, %v2525
        %vm2728 = vcmp.lt.f32.partialorder %v2727, 0.0004427343
        %v2729 = vsel %vm2728, %v2726, %v2723
        %v2730 = vadd.f32 %v2527, 1.0
        %v2731 = vlog2.pop %v2730
        %v2732 = vmul.f32 %v2731, 0.6931472
        %v2733 = vmul.f32 -0.5, %v2527
        %v2734 = vadd.f32 %v2733, 1.0
        %v2735 = vmul.f32 %v2734, %v2527
        %v2736 = vand.u32 2147483647, %v2527
        %vm2737 = vcmp.lt.f32.partialorder %v2736, 0.0004427343
        %v2738 = vsel %vm2737, %v2735, %v2732
        %v2739 = vadd.f32 %v2529, 1.0
        %v2740 = vlog2.pop %v2739
        %v2741 = vmul.f32 %v2740, 0.6931472
        %v2742 = vmul.f32 -0.5, %v2529
        %v2743 = vadd.f32 %v2742, 1.0
        %v2744 = vmul.f32 %v2743, %v2529
        %v2745 = vand.u32 2147483647, %v2529
        %vm2746 = vcmp.lt.f32.partialorder %v2745, 0.0004427343
        %v2747 = vsel %vm2746, %v2744, %v2741
        %v2748 = vadd.f32 %v2531, 1.0
        %v2749 = vlog2.pop %v2748
        %v2750 = vmul.f32 %v2749, 0.6931472
        %v2751 = vmul.f32 -0.5, %v2531
        %v2752 = vadd.f32 %v2751, 1.0
        %v2753 = vmul.f32 %v2752, %v2531
        %v2754 = vand.u32 2147483647, %v2531
        %vm2755 = vcmp.lt.f32.partialorder %v2754, 0.0004427343
        %v2756 = vsel %vm2755, %v2753, %v2750
        %v2757 = vadd.f32 %v2533, 1.0
        %v2758 = vlog2.pop %v2757
        %v2759 = vmul.f32 %v2758, 0.6931472
        %v2760 = vmul.f32 -0.5, %v2533
        %v2761 = vadd.f32 %v2760, 1.0
        %v2762 = vmul.f32 %v2761, %v2533
        %v2763 = vand.u32 2147483647, %v2533
        %vm2764 = vcmp.lt.f32.partialorder %v2763, 0.0004427343
        %v2765 = vsel %vm2764, %v2762, %v2759
        %v2766 = vadd.f32 %v2535, 1.0
        %v2767 = vlog2.pop %v2766
        %v2768 = vmul.f32 %v2767, 0.6931472
        %v2769 = vmul.f32 -0.5, %v2535
        %v2770 = vadd.f32 %v2769, 1.0
        %v2771 = vmul.f32 %v2770, %v2535
        %v2772 = vand.u32 2147483647, %v2535
        %vm2773 = vcmp.lt.f32.partialorder %v2772, 0.0004427343
        %v2774 = vsel %vm2773, %v2771, %v2768
        %v2775 = vadd.f32 %v2537, 1.0
        %v2776 = vlog2.pop %v2775
        %v2777 = vmul.f32 %v2776, 0.6931472
        %v2778 = vmul.f32 -0.5, %v2537
        %v2779 = vadd.f32 %v2778, 1.0
        %v2780 = vmul.f32 %v2779, %v2537
        %v2781 = vand.u32 2147483647, %v2537
        %vm2782 = vcmp.lt.f32.partialorder %v2781, 0.0004427343
        %v2783 = vsel %vm2782, %v2780, %v2777
        %v2784 = vadd.f32 %v2539, 1.0
        %v2785 = vlog2.pop %v2784
        %v2786 = vmul.f32 %v2785, 0.6931472
        %v2787 = vmul.f32 -0.5, %v2539
        %v2788 = vadd.f32 %v2787, 1.0
        %v2789 = vmul.f32 %v2788, %v2539
        %v2790 = vand.u32 2147483647, %v2539
        %vm2791 = vcmp.lt.f32.partialorder %v2790, 0.0004427343
        %v2792 = vsel %vm2791, %v2789, %v2786
        %v2793 = vadd.f32 %v2541, 1.0
        %v2794 = vlog2.pop %v2793
        %v2795 = vmul.f32 %v2794, 0.6931472
        %v2796 = vmul.f32 -0.5, %v2541
        %v2797 = vadd.f32 %v2796, 1.0
        %v2798 = vmul.f32 %v2797, %v2541
        %v2799 = vand.u32 2147483647, %v2541
        %vm2800 = vcmp.lt.f32.partialorder %v2799, 0.0004427343
        %v2801 = vsel %vm2800, %v2798, %v2795
        %v2802 = vadd.f32 %v2543, 1.0
        %v2803 = vlog2.pop %v2802
        %v2804 = vmul.f32 %v2803, 0.6931472
        %v2805 = vmul.f32 -0.5, %v2543
        %v2806 = vadd.f32 %v2805, 1.0
        %v2807 = vmul.f32 %v2806, %v2543
        %v2808 = vand.u32 2147483647, %v2543
        %vm2809 = vcmp.lt.f32.partialorder %v2808, 0.0004427343
        %v2810 = vsel %vm2809, %v2807, %v2804
        %v2811 = vadd.f32 %v2545, 1.0
        %v2812 = vlog2.pop %v2811
        %v2813 = vmul.f32 %v2812, 0.6931472
        %v2814 = vmul.f32 -0.5, %v2545
        %v2815 = vadd.f32 %v2814, 1.0
        %v2816 = vmul.f32 %v2815, %v2545
        %v2817 = vand.u32 2147483647, %v2545
        %vm2818 = vcmp.lt.f32.partialorder %v2817, 0.0004427343
        %v2819 = vsel %vm2818, %v2816, %v2813
        %v2820 = vadd.f32 %v2547, 1.0
        %v2821 = vlog2.pop %v2820
        %v2822 = vmul.f32 %v2821, 0.6931472
        %v2823 = vmul.f32 -0.5, %v2547
        %v2824 = vadd.f32 %v2823, 1.0
        %v2825 = vmul.f32 %v2824, %v2547
        %v2826 = vand.u32 2147483647, %v2547
        %vm2827 = vcmp.lt.f32.partialorder %v2826, 0.0004427343
        %v2828 = vsel %vm2827, %v2825, %v2822
        %v2829 = vadd.f32 %v2549, 1.0
        %v2830 = vlog2.pop %v2829
        %v2831 = vmul.f32 %v2830, 0.6931472
        %v2832 = vmul.f32 -0.5, %v2549
        %v2833 = vadd.f32 %v2832, 1.0
        %v2834 = vmul.f32 %v2833, %v2549
        %v2835 = vand.u32 2147483647, %v2549
        %vm2836 = vcmp.lt.f32.partialorder %v2835, 0.0004427343
        %v2837 = vsel %vm2836, %v2834, %v2831
        %v2838 = vadd.f32 %v2326, %v2558
        %v2839 = vadd.f32 %v2327, %v2567
        %v2840 = vadd.f32 %v2328, %v2576
        %v2841 = vadd.f32 %v2329, %v2585
        %v2842 = vadd.f32 %v2330, %v2594
        %v2843 = vadd.f32 %v2331, %v2603
        %v2844 = vadd.f32 %v2332, %v2612
        %v2845 = vadd.f32 %v2333, %v2621
        %v2846 = vadd.f32 %v2334, %v2630
        %v2847 = vadd.f32 %v2335, %v2639
        %v2848 = vadd.f32 %v2336, %v2648
        %v2849 = vadd.f32 %v2337, %v2657
        %v2850 = vadd.f32 %v2338, %v2666
        %v2851 = vadd.f32 %v2339, %v2675
        %v2852 = vadd.f32 %v2340, %v2684
        %v2853 = vadd.f32 %v2341, %v2693
        %v2854 = vadd.f32 %v2342, %v2702
        %v2855 = vadd.f32 %v2343, %v2711
        %v2856 = vadd.f32 %v2344, %v2720
        %v2857 = vadd.f32 %v2345, %v2729
        %v2858 = vadd.f32 %v2346, %v2738
        %v2859 = vadd.f32 %v2347, %v2747
        %v2860 = vadd.f32 %v2348, %v2756
        %v2861 = vadd.f32 %v2349, %v2765
        %v2862 = vadd.f32 %v2350, %v2774
        %v2863 = vadd.f32 %v2351, %v2783
        %v2864 = vadd.f32 %v2352, %v2792
        %v2865 = vadd.f32 %v2353, %v2801
        %v2866 = vadd.f32 %v2354, %v2810
        %v2867 = vadd.f32 %v2355, %v2819
        %v2868 = vadd.f32 %v2356, %v2828
        %v2869 = vadd.f32 %v2357, %v2837
        %v2870 = vsel %vm2358, %v2390, %v2838
        %v2871 = vsel %vm2359, %v2391, %v2839
        %v2872 = vsel %vm2360, %v2392, %v2840
        %v2873 = vsel %vm2361, %v2393, %v2841
        %v2874 = vsel %vm2362, %v2394, %v2842
        %v2875 = vsel %vm2363, %v2395, %v2843
        %v2876 = vsel %vm2364, %v2396, %v2844
        %v2877 = vsel %vm2365, %v2397, %v2845
        %v2878 = vsel %vm2366, %v2398, %v2846
        %v2879 = vsel %vm2367, %v2399, %v2847
        %v2880 = vsel %vm2368, %v2400, %v2848
        %v2881 = vsel %vm2369, %v2401, %v2849
        %v2882 = vsel %vm2370, %v2402, %v2850
        %v2883 = vsel %vm2371, %v2403, %v2851
        %v2884 = vsel %vm2372, %v2404, %v2852
        %v2885 = vsel %vm2373, %v2405, %v2853
        %v2886 = vsel %vm2374, %v2406, %v2854
        %v2887 = vsel %vm2375, %v2407, %v2855
        %v2888 = vsel %vm2376, %v2408, %v2856
        %v2889 = vsel %vm2377, %v2409, %v2857
        %v2890 = vsel %vm2378, %v2410, %v2858
        %v2891 = vsel %vm2379, %v2411, %v2859
        %v2892 = vsel %vm2380, %v2412, %v2860
        %v2893 = vsel %vm2381, %v2413, %v2861
        %v2894 = vsel %vm2382, %v2414, %v2862
        %v2895 = vsel %vm2383, %v2415, %v2863
        %v2896 = vsel %vm2384, %v2416, %v2864
        %v2897 = vsel %vm2385, %v2417, %v2865
        %v2898 = vsel %vm2386, %v2418, %v2866
        %v2899 = vsel %vm2387, %v2419, %v2867
        %v2900 = vsel %vm2388, %v2420, %v2868
        %v2901 = vsel %vm2389, %v2421, %v2869
        %v2902 = vld [vmem:[#allocation10] sm:$0xff]
        %v2903 = vld [vmem:[#allocation10 + $0x8] sm:$0xff]
        %v2904 = vld [vmem:[#allocation10 + $0x10] sm:$0xff]
        %v2905 = vld [vmem:[#allocation10 + $0x18] sm:$0xff]
        %v2906 = vld [vmem:[#allocation10 + $0x20] sm:$0xff]
        %v2907 = vld [vmem:[#allocation10 + $0x28] sm:$0xff]
        %v2908 = vld [vmem:[#allocation10 + $0x30] sm:$0xff]
        %v2909 = vld [vmem:[#allocation10 + $0x38] sm:$0xff]
        %v2910 = vld [vmem:[#allocation10 + $0x40] sm:$0xff]
        %v2911 = vld [vmem:[#allocation10 + $0x48] sm:$0xff]
        %v2912 = vld [vmem:[#allocation10 + $0x50] sm:$0xff]
        %v2913 = vld [vmem:[#allocation10 + $0x58] sm:$0xff]
        %v2914 = vld [vmem:[#allocation10 + $0x60] sm:$0xff]
        %v2915 = vld [vmem:[#allocation10 + $0x68] sm:$0xff]
        %v2916 = vld [vmem:[#allocation10 + $0x70] sm:$0xff]
        %v2917 = vld [vmem:[#allocation10 + $0x78] sm:$0xff]
        %v2918 = vld [vmem:[%s6] sm:$0x1]
        %v2920 = vperm.slane %v2918, 0
        %2922 = vmatpush.msra.mxu0 %v2917
        %2923 = vmatpush.msra.mxu0 %v2916
        %2924 = vmatpush.msra.mxu0 %v2915
        %2925 = vmatpush.msra.mxu0 %v2914
        %2926 = vmatpush.msra.mxu0 %v2913
        %2927 = vmatpush.msra.mxu0 %v2912
        %2928 = vmatpush.msra.mxu0 %v2911
        %2929 = vmatpush.msra.mxu0 %v2910
        %2930 = vmatpush.msra.mxu0 %v2909
        %2931 = vmatpush.msra.mxu0 %v2908
        %2932 = vmatpush.msra.mxu0 %v2907
        %2933 = vmatpush.msra.mxu0 %v2906
        %2934 = vmatpush.msra.mxu0 %v2905
        %2935 = vmatpush.msra.mxu0 %v2904
        %2936 = vmatpush.msra.mxu0 %v2903
        %2937 = vmatpush.msra.mxu0 %v2902
        %2938 = vmatmul.f32.gmra.mxu0 %v2870
        %v2939 = vpop.f32.mrf.mxu0
        %v2940 = vadd.f32 %v2920, %v2939
        %2941 = vmatmul.f32.gmra.mxu0 %v2871
        %v2942 = vpop.f32.mrf.mxu0
        %v2943 = vadd.f32 %v2920, %v2942
        %2944 = vmatmul.f32.gmra.mxu0 %v2872
        %v2945 = vpop.f32.mrf.mxu0
        %v2946 = vadd.f32 %v2920, %v2945
        %2947 = vmatmul.f32.gmra.mxu0 %v2873
        %v2948 = vpop.f32.mrf.mxu0
        %v2949 = vadd.f32 %v2920, %v2948
        %2950 = vmatmul.f32.gmra.mxu0 %v2874
        %v2951 = vpop.f32.mrf.mxu0
        %v2952 = vadd.f32 %v2920, %v2951
        %2953 = vmatmul.f32.gmra.mxu0 %v2875
        %v2954 = vpop.f32.mrf.mxu0
        %v2955 = vadd.f32 %v2920, %v2954
        %2956 = vmatmul.f32.gmra.mxu0 %v2876
        %v2957 = vpop.f32.mrf.mxu0
        %v2958 = vadd.f32 %v2920, %v2957
        %2959 = vmatmul.f32.gmra.mxu0 %v2877
        %v2960 = vpop.f32.mrf.mxu0
        %v2961 = vadd.f32 %v2920, %v2960
        %2962 = vmatmul.f32.gmra.mxu0 %v2878
        %v2963 = vpop.f32.mrf.mxu0
        %v2964 = vadd.f32 %v2920, %v2963
        %2965 = vmatmul.f32.gmra.mxu0 %v2879
        %v2966 = vpop.f32.mrf.mxu0
        %v2967 = vadd.f32 %v2920, %v2966
        %2968 = vmatmul.f32.gmra.mxu0 %v2880
        %v2969 = vpop.f32.mrf.mxu0
        %v2970 = vadd.f32 %v2920, %v2969
        %2971 = vmatmul.f32.gmra.mxu0 %v2881
        %v2972 = vpop.f32.mrf.mxu0
        %v2973 = vadd.f32 %v2920, %v2972
        %2974 = vmatmul.f32.gmra.mxu0 %v2882
        %v2975 = vpop.f32.mrf.mxu0
        %v2976 = vadd.f32 %v2920, %v2975
        %2977 = vmatmul.f32.gmra.mxu0 %v2883
        %v2978 = vpop.f32.mrf.mxu0
        %v2979 = vadd.f32 %v2920, %v2978
        %2980 = vmatmul.f32.gmra.mxu0 %v2884
        %v2981 = vpop.f32.mrf.mxu0
        %v2982 = vadd.f32 %v2920, %v2981
        %2983 = vmatmul.f32.gmra.mxu0 %v2885
        %v2984 = vpop.f32.mrf.mxu0
        %v2985 = vadd.f32 %v2920, %v2984
        %2986 = vmatmul.f32.gmra.mxu0 %v2886
        %v2987 = vpop.f32.mrf.mxu0
        %v2988 = vadd.f32 %v2920, %v2987
        %2989 = vmatmul.f32.gmra.mxu0 %v2887
        %v2990 = vpop.f32.mrf.mxu0
        %v2991 = vadd.f32 %v2920, %v2990
        %2992 = vmatmul.f32.gmra.mxu0 %v2888
        %v2993 = vpop.f32.mrf.mxu0
        %v2994 = vadd.f32 %v2920, %v2993
        %2995 = vmatmul.f32.gmra.mxu0 %v2889
        %v2996 = vpop.f32.mrf.mxu0
        %v2997 = vadd.f32 %v2920, %v2996
        %2998 = vmatmul.f32.gmra.mxu0 %v2890
        %v2999 = vpop.f32.mrf.mxu0
        %v3000 = vadd.f32 %v2920, %v2999
        %3001 = vmatmul.f32.gmra.mxu0 %v2891
        %v3002 = vpop.f32.mrf.mxu0
        %v3003 = vadd.f32 %v2920, %v3002
        %3004 = vmatmul.f32.gmra.mxu0 %v2892
        %v3005 = vpop.f32.mrf.mxu0
        %v3006 = vadd.f32 %v2920, %v3005
        %3007 = vmatmul.f32.gmra.mxu0 %v2893
        %v3008 = vpop.f32.mrf.mxu0
        %v3009 = vadd.f32 %v2920, %v3008
        %3010 = vmatmul.f32.gmra.mxu0 %v2894
        %v3011 = vpop.f32.mrf.mxu0
        %v3012 = vadd.f32 %v2920, %v3011
        %3013 = vmatmul.f32.gmra.mxu0 %v2895
        %v3014 = vpop.f32.mrf.mxu0
        %v3015 = vadd.f32 %v2920, %v3014
        %3016 = vmatmul.f32.gmra.mxu0 %v2896
        %v3017 = vpop.f32.mrf.mxu0
        %v3018 = vadd.f32 %v2920, %v3017
        %3019 = vmatmul.f32.gmra.mxu0 %v2897
        %v3020 = vpop.f32.mrf.mxu0
        %v3021 = vadd.f32 %v2920, %v3020
        %3022 = vmatmul.f32.gmra.mxu0 %v2898
        %v3023 = vpop.f32.mrf.mxu0
        %v3024 = vadd.f32 %v2920, %v3023
        %3025 = vmatmul.f32.gmra.mxu0 %v2899
        %v3026 = vpop.f32.mrf.mxu0
        %v3027 = vadd.f32 %v2920, %v3026
        %3028 = vmatmul.f32.gmra.mxu0 %v2900
        %v3029 = vpop.f32.mrf.mxu0
        %v3030 = vadd.f32 %v2920, %v3029
        %3031 = vmatmul.f32.gmra.mxu0 %v2901
        %v3032 = vpop.f32.mrf.mxu0
        %v3033 = vadd.f32 %v2920, %v3032
        %3034 = vdwg.mxu0
        %v3035 = vld [vmem:[#allocation11] sm:$0xff]
        %v3036 = vld [vmem:[#allocation11 + $0x8] sm:$0xff]
        %v3037 = vld [vmem:[#allocation11 + $0x10] sm:$0xff]
        %v3038 = vld [vmem:[#allocation11 + $0x18] sm:$0xff]
        %v3039 = vld [vmem:[#allocation11 + $0x20] sm:$0xff]
        %v3040 = vld [vmem:[#allocation11 + $0x28] sm:$0xff]
        %v3041 = vld [vmem:[#allocation11 + $0x30] sm:$0xff]
        %v3042 = vld [vmem:[#allocation11 + $0x38] sm:$0xff]
        %v3043 = vld [vmem:[#allocation11 + $0x40] sm:$0xff]
        %v3044 = vld [vmem:[#allocation11 + $0x48] sm:$0xff]
        %v3045 = vld [vmem:[#allocation11 + $0x50] sm:$0xff]
        %v3046 = vld [vmem:[#allocation11 + $0x58] sm:$0xff]
        %v3047 = vld [vmem:[#allocation11 + $0x60] sm:$0xff]
        %v3048 = vld [vmem:[#allocation11 + $0x68] sm:$0xff]
        %v3049 = vld [vmem:[#allocation11 + $0x70] sm:$0xff]
        %v3050 = vld [vmem:[#allocation11 + $0x78] sm:$0xff]
        %v3051 = vld [vmem:[%s8] sm:$0x1]
        %v3053 = vperm.slane %v3051, 0
        %3055 = vmatpush.msra.mxu0 %v3050
        %3056 = vmatpush.msra.mxu0 %v3049
        %3057 = vmatpush.msra.mxu0 %v3048
        %3058 = vmatpush.msra.mxu0 %v3047
        %3059 = vmatpush.msra.mxu0 %v3046
        %3060 = vmatpush.msra.mxu0 %v3045
        %3061 = vmatpush.msra.mxu0 %v3044
        %3062 = vmatpush.msra.mxu0 %v3043
        %3063 = vmatpush.msra.mxu0 %v3042
        %3064 = vmatpush.msra.mxu0 %v3041
        %3065 = vmatpush.msra.mxu0 %v3040
        %3066 = vmatpush.msra.mxu0 %v3039
        %3067 = vmatpush.msra.mxu0 %v3038
        %3068 = vmatpush.msra.mxu0 %v3037
        %3069 = vmatpush.msra.mxu0 %v3036
        %3070 = vmatpush.msra.mxu0 %v3035
        %3071 = vmatmul.f32.gmra.mxu0 %v2940
        %v3072 = vpop.f32.mrf.mxu0
        %v3073 = vadd.f32 %v3053, %v3072
        %3074 = vmatmul.f32.gmra.mxu0 %v2943
        %v3075 = vpop.f32.mrf.mxu0
        %v3076 = vadd.f32 %v3053, %v3075
        %3077 = vmatmul.f32.gmra.mxu0 %v2946
        %v3078 = vpop.f32.mrf.mxu0
        %v3079 = vadd.f32 %v3053, %v3078
        %3080 = vmatmul.f32.gmra.mxu0 %v2949
        %v3081 = vpop.f32.mrf.mxu0
        %v3082 = vadd.f32 %v3053, %v3081
        %3083 = vmatmul.f32.gmra.mxu0 %v2952
        %v3084 = vpop.f32.mrf.mxu0
        %v3085 = vadd.f32 %v3053, %v3084
        %3086 = vmatmul.f32.gmra.mxu0 %v2955
        %v3087 = vpop.f32.mrf.mxu0
        %v3088 = vadd.f32 %v3053, %v3087
        %3089 = vmatmul.f32.gmra.mxu0 %v2958
        %v3090 = vpop.f32.mrf.mxu0
        %v3091 = vadd.f32 %v3053, %v3090
        %3092 = vmatmul.f32.gmra.mxu0 %v2961
        %v3093 = vpop.f32.mrf.mxu0
        %v3094 = vadd.f32 %v3053, %v3093
        %3095 = vmatmul.f32.gmra.mxu0 %v2964
        %v3096 = vpop.f32.mrf.mxu0
        %v3097 = vadd.f32 %v3053, %v3096
        %3098 = vmatmul.f32.gmra.mxu0 %v2967
        %v3099 = vpop.f32.mrf.mxu0
        %v3100 = vadd.f32 %v3053, %v3099
        %3101 = vmatmul.f32.gmra.mxu0 %v2970
        %v3102 = vpop.f32.mrf.mxu0
        %v3103 = vadd.f32 %v3053, %v3102
        %3104 = vmatmul.f32.gmra.mxu0 %v2973
        %v3105 = vpop.f32.mrf.mxu0
        %v3106 = vadd.f32 %v3053, %v3105
        %3107 = vmatmul.f32.gmra.mxu0 %v2976
        %v3108 = vpop.f32.mrf.mxu0
        %v3109 = vadd.f32 %v3053, %v3108
        %3110 = vmatmul.f32.gmra.mxu0 %v2979
        %v3111 = vpop.f32.mrf.mxu0
        %v3112 = vadd.f32 %v3053, %v3111
        %3113 = vmatmul.f32.gmra.mxu0 %v2982
        %v3114 = vpop.f32.mrf.mxu0
        %v3115 = vadd.f32 %v3053, %v3114
        %3116 = vmatmul.f32.gmra.mxu0 %v2985
        %v3117 = vpop.f32.mrf.mxu0
        %v3118 = vadd.f32 %v3053, %v3117
        %3119 = vmatmul.f32.gmra.mxu0 %v2988
        %v3120 = vpop.f32.mrf.mxu0
        %v3121 = vadd.f32 %v3053, %v3120
        %3122 = vmatmul.f32.gmra.mxu0 %v2991
        %v3123 = vpop.f32.mrf.mxu0
        %v3124 = vadd.f32 %v3053, %v3123
        %3125 = vmatmul.f32.gmra.mxu0 %v2994
        %v3126 = vpop.f32.mrf.mxu0
        %v3127 = vadd.f32 %v3053, %v3126
        %3128 = vmatmul.f32.gmra.mxu0 %v2997
        %v3129 = vpop.f32.mrf.mxu0
        %v3130 = vadd.f32 %v3053, %v3129
        %3131 = vmatmul.f32.gmra.mxu0 %v3000
        %v3132 = vpop.f32.mrf.mxu0
        %v3133 = vadd.f32 %v3053, %v3132
        %3134 = vmatmul.f32.gmra.mxu0 %v3003
        %v3135 = vpop.f32.mrf.mxu0
        %v3136 = vadd.f32 %v3053, %v3135
        %3137 = vmatmul.f32.gmra.mxu0 %v3006
        %v3138 = vpop.f32.mrf.mxu0
        %v3139 = vadd.f32 %v3053, %v3138
        %3140 = vmatmul.f32.gmra.mxu0 %v3009
        %v3141 = vpop.f32.mrf.mxu0
        %v3142 = vadd.f32 %v3053, %v3141
        %3143 = vmatmul.f32.gmra.mxu0 %v3012
        %v3144 = vpop.f32.mrf.mxu0
        %v3145 = vadd.f32 %v3053, %v3144
        %3146 = vmatmul.f32.gmra.mxu0 %v3015
        %v3147 = vpop.f32.mrf.mxu0
        %v3148 = vadd.f32 %v3053, %v3147
        %3149 = vmatmul.f32.gmra.mxu0 %v3018
        %v3150 = vpop.f32.mrf.mxu0
        %v3151 = vadd.f32 %v3053, %v3150
        %3152 = vmatmul.f32.gmra.mxu0 %v3021
        %v3153 = vpop.f32.mrf.mxu0
        %v3154 = vadd.f32 %v3053, %v3153
        %3155 = vmatmul.f32.gmra.mxu0 %v3024
        %v3156 = vpop.f32.mrf.mxu0
        %v3157 = vadd.f32 %v3053, %v3156
        %3158 = vmatmul.f32.gmra.mxu0 %v3027
        %v3159 = vpop.f32.mrf.mxu0
        %v3160 = vadd.f32 %v3053, %v3159
        %3161 = vmatmul.f32.gmra.mxu0 %v3030
        %v3162 = vpop.f32.mrf.mxu0
        %v3163 = vadd.f32 %v3053, %v3162
        %3164 = vmatmul.f32.gmra.mxu0 %v3033
        %v3165 = vpop.f32.mrf.mxu0
        %v3166 = vadd.f32 %v3053, %v3165
        %3167 = vdwg.mxu0
        %v3168 = vmax.f32 %v3073, 0.0
        %v3169 = vmax.f32 %v3076, 0.0
        %v3170 = vmax.f32 %v3079, 0.0
        %v3171 = vmax.f32 %v3082, 0.0
        %v3172 = vmax.f32 %v3085, 0.0
        %v3173 = vmax.f32 %v3088, 0.0
        %v3174 = vmax.f32 %v3091, 0.0
        %v3175 = vmax.f32 %v3094, 0.0
        %v3176 = vmax.f32 %v3097, 0.0
        %v3177 = vmax.f32 %v3100, 0.0
        %v3178 = vmax.f32 %v3103, 0.0
        %v3179 = vmax.f32 %v3106, 0.0
        %v3180 = vmax.f32 %v3109, 0.0
        %v3181 = vmax.f32 %v3112, 0.0
        %v3182 = vmax.f32 %v3115, 0.0
        %v3183 = vmax.f32 %v3118, 0.0
        %v3184 = vmax.f32 %v3121, 0.0
        %v3185 = vmax.f32 %v3124, 0.0
        %v3186 = vmax.f32 %v3127, 0.0
        %v3187 = vmax.f32 %v3130, 0.0
        %v3188 = vmax.f32 %v3133, 0.0
        %v3189 = vmax.f32 %v3136, 0.0
        %v3190 = vmax.f32 %v3139, 0.0
        %v3191 = vmax.f32 %v3142, 0.0
        %v3192 = vmax.f32 %v3145, 0.0
        %v3193 = vmax.f32 %v3148, 0.0
        %v3194 = vmax.f32 %v3151, 0.0
        %v3195 = vmax.f32 %v3154, 0.0
        %v3196 = vmax.f32 %v3157, 0.0
        %v3197 = vmax.f32 %v3160, 0.0
        %v3198 = vmax.f32 %v3163, 0.0
        %v3199 = vmax.f32 %v3166, 0.0
        %vm3200 = vcmp.ne.f32.partialorder %v3073, %v3073
        %vm3201 = vcmp.ne.f32.partialorder %v3076, %v3076
        %vm3202 = vcmp.ne.f32.partialorder %v3079, %v3079
        %vm3203 = vcmp.ne.f32.partialorder %v3082, %v3082
        %vm3204 = vcmp.ne.f32.partialorder %v3085, %v3085
        %vm3205 = vcmp.ne.f32.partialorder %v3088, %v3088
        %vm3206 = vcmp.ne.f32.partialorder %v3091, %v3091
        %vm3207 = vcmp.ne.f32.partialorder %v3094, %v3094
        %vm3208 = vcmp.ne.f32.partialorder %v3097, %v3097
        %vm3209 = vcmp.ne.f32.partialorder %v3100, %v3100
        %vm3210 = vcmp.ne.f32.partialorder %v3103, %v3103
        %vm3211 = vcmp.ne.f32.partialorder %v3106, %v3106
        %vm3212 = vcmp.ne.f32.partialorder %v3109, %v3109
        %vm3213 = vcmp.ne.f32.partialorder %v3112, %v3112
        %vm3214 = vcmp.ne.f32.partialorder %v3115, %v3115
        %vm3215 = vcmp.ne.f32.partialorder %v3118, %v3118
        %vm3216 = vcmp.ne.f32.partialorder %v3121, %v3121
        %vm3217 = vcmp.ne.f32.partialorder %v3124, %v3124
        %vm3218 = vcmp.ne.f32.partialorder %v3127, %v3127
        %vm3219 = vcmp.ne.f32.partialorder %v3130, %v3130
        %vm3220 = vcmp.ne.f32.partialorder %v3133, %v3133
        %vm3221 = vcmp.ne.f32.partialorder %v3136, %v3136
        %vm3222 = vcmp.ne.f32.partialorder %v3139, %v3139
        %vm3223 = vcmp.ne.f32.partialorder %v3142, %v3142
        %vm3224 = vcmp.ne.f32.partialorder %v3145, %v3145
        %vm3225 = vcmp.ne.f32.partialorder %v3148, %v3148
        %vm3226 = vcmp.ne.f32.partialorder %v3151, %v3151
        %vm3227 = vcmp.ne.f32.partialorder %v3154, %v3154
        %vm3228 = vcmp.ne.f32.partialorder %v3157, %v3157
        %vm3229 = vcmp.ne.f32.partialorder %v3160, %v3160
        %vm3230 = vcmp.ne.f32.partialorder %v3163, %v3163
        %vm3231 = vcmp.ne.f32.partialorder %v3166, %v3166
        %v3232 = vadd.f32 %v3073, 0.0
        %v3233 = vadd.f32 %v3076, 0.0
        %v3234 = vadd.f32 %v3079, 0.0
        %v3235 = vadd.f32 %v3082, 0.0
        %v3236 = vadd.f32 %v3085, 0.0
        %v3237 = vadd.f32 %v3088, 0.0
        %v3238 = vadd.f32 %v3091, 0.0
        %v3239 = vadd.f32 %v3094, 0.0
        %v3240 = vadd.f32 %v3097, 0.0
        %v3241 = vadd.f32 %v3100, 0.0
        %v3242 = vadd.f32 %v3103, 0.0
        %v3243 = vadd.f32 %v3106, 0.0
        %v3244 = vadd.f32 %v3109, 0.0
        %v3245 = vadd.f32 %v3112, 0.0
        %v3246 = vadd.f32 %v3115, 0.0
        %v3247 = vadd.f32 %v3118, 0.0
        %v3248 = vadd.f32 %v3121, 0.0
        %v3249 = vadd.f32 %v3124, 0.0
        %v3250 = vadd.f32 %v3127, 0.0
        %v3251 = vadd.f32 %v3130, 0.0
        %v3252 = vadd.f32 %v3133, 0.0
        %v3253 = vadd.f32 %v3136, 0.0
        %v3254 = vadd.f32 %v3139, 0.0
        %v3255 = vadd.f32 %v3142, 0.0
        %v3256 = vadd.f32 %v3145, 0.0
        %v3257 = vadd.f32 %v3148, 0.0
        %v3258 = vadd.f32 %v3151, 0.0
        %v3259 = vadd.f32 %v3154, 0.0
        %v3260 = vadd.f32 %v3157, 0.0
        %v3261 = vadd.f32 %v3160, 0.0
        %v3262 = vadd.f32 %v3163, 0.0
        %v3263 = vadd.f32 %v3166, 0.0
        %v3264 = vand.u32 2147483647, %v3073
        %v3265 = vand.u32 2147483647, %v3076
        %v3266 = vand.u32 2147483647, %v3079
        %v3267 = vand.u32 2147483647, %v3082
        %v3268 = vand.u32 2147483647, %v3085
        %v3269 = vand.u32 2147483647, %v3088
        %v3270 = vand.u32 2147483647, %v3091
        %v3271 = vand.u32 2147483647, %v3094
        %v3272 = vand.u32 2147483647, %v3097
        %v3273 = vand.u32 2147483647, %v3100
        %v3274 = vand.u32 2147483647, %v3103
        %v3275 = vand.u32 2147483647, %v3106
        %v3276 = vand.u32 2147483647, %v3109
        %v3277 = vand.u32 2147483647, %v3112
        %v3278 = vand.u32 2147483647, %v3115
        %v3279 = vand.u32 2147483647, %v3118
        %v3280 = vand.u32 2147483647, %v3121
        %v3281 = vand.u32 2147483647, %v3124
        %v3282 = vand.u32 2147483647, %v3127
        %v3283 = vand.u32 2147483647, %v3130
        %v3284 = vand.u32 2147483647, %v3133
        %v3285 = vand.u32 2147483647, %v3136
        %v3286 = vand.u32 2147483647, %v3139
        %v3287 = vand.u32 2147483647, %v3142
        %v3288 = vand.u32 2147483647, %v3145
        %v3289 = vand.u32 2147483647, %v3148
        %v3290 = vand.u32 2147483647, %v3151
        %v3291 = vand.u32 2147483647, %v3154
        %v3292 = vand.u32 2147483647, %v3157
        %v3293 = vand.u32 2147483647, %v3160
        %v3294 = vand.u32 2147483647, %v3163
        %v3295 = vand.u32 2147483647, %v3166
        %v3296 = vsub.f32 0.0, %v3264
        %v3297 = vsub.f32 0.0, %v3265
        %v3298 = vsub.f32 0.0, %v3266
        %v3299 = vsub.f32 0.0, %v3267
        %v3300 = vsub.f32 0.0, %v3268
        %v3301 = vsub.f32 0.0, %v3269
        %v3302 = vsub.f32 0.0, %v3270
        %v3303 = vsub.f32 0.0, %v3271
        %v3304 = vsub.f32 0.0, %v3272
        %v3305 = vsub.f32 0.0, %v3273
        %v3306 = vsub.f32 0.0, %v3274
        %v3307 = vsub.f32 0.0, %v3275
        %v3308 = vsub.f32 0.0, %v3276
        %v3309 = vsub.f32 0.0, %v3277
        %v3310 = vsub.f32 0.0, %v3278
        %v3311 = vsub.f32 0.0, %v3279
        %v3312 = vsub.f32 0.0, %v3280
        %v3313 = vsub.f32 0.0, %v3281
        %v3314 = vsub.f32 0.0, %v3282
        %v3315 = vsub.f32 0.0, %v3283
        %v3316 = vsub.f32 0.0, %v3284
        %v3317 = vsub.f32 0.0, %v3285
        %v3318 = vsub.f32 0.0, %v3286
        %v3319 = vsub.f32 0.0, %v3287
        %v3320 = vsub.f32 0.0, %v3288
        %v3321 = vsub.f32 0.0, %v3289
        %v3322 = vsub.f32 0.0, %v3290
        %v3323 = vsub.f32 0.0, %v3291
        %v3324 = vsub.f32 0.0, %v3292
        %v3325 = vsub.f32 0.0, %v3293
        %v3326 = vsub.f32 0.0, %v3294
        %v3327 = vsub.f32 0.0, %v3295
        %v3328 = vmul.f32 %v3296, 1.442695
        %v3329 = vpow.pop %v3328
        %v3330 = vmul.f32 %v3297, 1.442695
        %v3331 = vpow.pop %v3330
        %v3332 = vmul.f32 %v3298, 1.442695
        %v3333 = vpow.pop %v3332
        %v3334 = vmul.f32 %v3299, 1.442695
        %v3335 = vpow.pop %v3334
        %v3336 = vmul.f32 %v3300, 1.442695
        %v3337 = vpow.pop %v3336
        %v3338 = vmul.f32 %v3301, 1.442695
        %v3339 = vpow.pop %v3338
        %v3340 = vmul.f32 %v3302, 1.442695
        %v3341 = vpow.pop %v3340
        %v3342 = vmul.f32 %v3303, 1.442695
        %v3343 = vpow.pop %v3342
        %v3344 = vmul.f32 %v3304, 1.442695
        %v3345 = vpow.pop %v3344
        %v3346 = vmul.f32 %v3305, 1.442695
        %v3347 = vpow.pop %v3346
        %v3348 = vmul.f32 %v3306, 1.442695
        %v3349 = vpow.pop %v3348
        %v3350 = vmul.f32 %v3307, 1.442695
        %v3351 = vpow.pop %v3350
        %v3352 = vmul.f32 %v3308, 1.442695
        %v3353 = vpow.pop %v3352
        %v3354 = vmul.f32 %v3309, 1.442695
        %v3355 = vpow.pop %v3354
        %v3356 = vmul.f32 %v3310, 1.442695
        %v3357 = vpow.pop %v3356
        %v3358 = vmul.f32 %v3311, 1.442695
        %v3359 = vpow.pop %v3358
        %v3360 = vmul.f32 %v3312, 1.442695
        %v3361 = vpow.pop %v3360
        %v3362 = vmul.f32 %v3313, 1.442695
        %v3363 = vpow.pop %v3362
        %v3364 = vmul.f32 %v3314, 1.442695
        %v3365 = vpow.pop %v3364
        %v3366 = vmul.f32 %v3315, 1.442695
        %v3367 = vpow.pop %v3366
        %v3368 = vmul.f32 %v3316, 1.442695
        %v3369 = vpow.pop %v3368
        %v3370 = vmul.f32 %v3317, 1.442695
        %v3371 = vpow.pop %v3370
        %v3372 = vmul.f32 %v3318, 1.442695
        %v3373 = vpow.pop %v3372
        %v3374 = vmul.f32 %v3319, 1.442695
        %v3375 = vpow.pop %v3374
        %v3376 = vmul.f32 %v3320, 1.442695
        %v3377 = vpow.pop %v3376
        %v3378 = vmul.f32 %v3321, 1.442695
        %v3379 = vpow.pop %v3378
        %v3380 = vmul.f32 %v3322, 1.442695
        %v3381 = vpow.pop %v3380
        %v3382 = vmul.f32 %v3323, 1.442695
        %v3383 = vpow.pop %v3382
        %v3384 = vmul.f32 %v3324, 1.442695
        %v3385 = vpow.pop %v3384
        %v3386 = vmul.f32 %v3325, 1.442695
        %v3387 = vpow.pop %v3386
        %v3388 = vmul.f32 %v3326, 1.442695
        %v3389 = vpow.pop %v3388
        %v3390 = vmul.f32 %v3327, 1.442695
        %v3391 = vpow.pop %v3390
        %v3392 = vadd.f32 %v3329, 1.0
        %v3393 = vlog2.pop %v3392
        %v3394 = vmul.f32 %v3393, 0.6931472
        %v3395 = vmul.f32 -0.5, %v3329
        %v3396 = vadd.f32 %v3395, 1.0
        %v3397 = vmul.f32 %v3396, %v3329
        %v3398 = vand.u32 2147483647, %v3329
        %vm3399 = vcmp.lt.f32.partialorder %v3398, 0.0004427343
        %v3400 = vsel %vm3399, %v3397, %v3394
        %v3401 = vadd.f32 %v3331, 1.0
        %v3402 = vlog2.pop %v3401
        %v3403 = vmul.f32 %v3402, 0.6931472
        %v3404 = vmul.f32 -0.5, %v3331
        %v3405 = vadd.f32 %v3404, 1.0
        %v3406 = vmul.f32 %v3405, %v3331
        %v3407 = vand.u32 2147483647, %v3331
        %vm3408 = vcmp.lt.f32.partialorder %v3407, 0.0004427343
        %v3409 = vsel %vm3408, %v3406, %v3403
        %v3410 = vadd.f32 %v3333, 1.0
        %v3411 = vlog2.pop %v3410
        %v3412 = vmul.f32 %v3411, 0.6931472
        %v3413 = vmul.f32 -0.5, %v3333
        %v3414 = vadd.f32 %v3413, 1.0
        %v3415 = vmul.f32 %v3414, %v3333
        %v3416 = vand.u32 2147483647, %v3333
        %vm3417 = vcmp.lt.f32.partialorder %v3416, 0.0004427343
        %v3418 = vsel %vm3417, %v3415, %v3412
        %v3419 = vadd.f32 %v3335, 1.0
        %v3420 = vlog2.pop %v3419
        %v3421 = vmul.f32 %v3420, 0.6931472
        %v3422 = vmul.f32 -0.5, %v3335
        %v3423 = vadd.f32 %v3422, 1.0
        %v3424 = vmul.f32 %v3423, %v3335
        %v3425 = vand.u32 2147483647, %v3335
        %vm3426 = vcmp.lt.f32.partialorder %v3425, 0.0004427343
        %v3427 = vsel %vm3426, %v3424, %v3421
        %v3428 = vadd.f32 %v3337, 1.0
        %v3429 = vlog2.pop %v3428
        %v3430 = vmul.f32 %v3429, 0.6931472
        %v3431 = vmul.f32 -0.5, %v3337
        %v3432 = vadd.f32 %v3431, 1.0
        %v3433 = vmul.f32 %v3432, %v3337
        %v3434 = vand.u32 2147483647, %v3337
        %vm3435 = vcmp.lt.f32.partialorder %v3434, 0.0004427343
        %v3436 = vsel %vm3435, %v3433, %v3430
        %v3437 = vadd.f32 %v3339, 1.0
        %v3438 = vlog2.pop %v3437
        %v3439 = vmul.f32 %v3438, 0.6931472
        %v3440 = vmul.f32 -0.5, %v3339
        %v3441 = vadd.f32 %v3440, 1.0
        %v3442 = vmul.f32 %v3441, %v3339
        %v3443 = vand.u32 2147483647, %v3339
        %vm3444 = vcmp.lt.f32.partialorder %v3443, 0.0004427343
        %v3445 = vsel %vm3444, %v3442, %v3439
        %v3446 = vadd.f32 %v3341, 1.0
        %v3447 = vlog2.pop %v3446
        %v3448 = vmul.f32 %v3447, 0.6931472
        %v3449 = vmul.f32 -0.5, %v3341
        %v3450 = vadd.f32 %v3449, 1.0
        %v3451 = vmul.f32 %v3450, %v3341
        %v3452 = vand.u32 2147483647, %v3341
        %vm3453 = vcmp.lt.f32.partialorder %v3452, 0.0004427343
        %v3454 = vsel %vm3453, %v3451, %v3448
        %v3455 = vadd.f32 %v3343, 1.0
        %v3456 = vlog2.pop %v3455
        %v3457 = vmul.f32 %v3456, 0.6931472
        %v3458 = vmul.f32 -0.5, %v3343
        %v3459 = vadd.f32 %v3458, 1.0
        %v3460 = vmul.f32 %v3459, %v3343
        %v3461 = vand.u32 2147483647, %v3343
        %vm3462 = vcmp.lt.f32.partialorder %v3461, 0.0004427343
        %v3463 = vsel %vm3462, %v3460, %v3457
        %v3464 = vadd.f32 %v3345, 1.0
        %v3465 = vlog2.pop %v3464
        %v3466 = vmul.f32 %v3465, 0.6931472
        %v3467 = vmul.f32 -0.5, %v3345
        %v3468 = vadd.f32 %v3467, 1.0
        %v3469 = vmul.f32 %v3468, %v3345
        %v3470 = vand.u32 2147483647, %v3345
        %vm3471 = vcmp.lt.f32.partialorder %v3470, 0.0004427343
        %v3472 = vsel %vm3471, %v3469, %v3466
        %v3473 = vadd.f32 %v3347, 1.0
        %v3474 = vlog2.pop %v3473
        %v3475 = vmul.f32 %v3474, 0.6931472
        %v3476 = vmul.f32 -0.5, %v3347
        %v3477 = vadd.f32 %v3476, 1.0
        %v3478 = vmul.f32 %v3477, %v3347
        %v3479 = vand.u32 2147483647, %v3347
        %vm3480 = vcmp.lt.f32.partialorder %v3479, 0.0004427343
        %v3481 = vsel %vm3480, %v3478, %v3475
        %v3482 = vadd.f32 %v3349, 1.0
        %v3483 = vlog2.pop %v3482
        %v3484 = vmul.f32 %v3483, 0.6931472
        %v3485 = vmul.f32 -0.5, %v3349
        %v3486 = vadd.f32 %v3485, 1.0
        %v3487 = vmul.f32 %v3486, %v3349
        %v3488 = vand.u32 2147483647, %v3349
        %vm3489 = vcmp.lt.f32.partialorder %v3488, 0.0004427343
        %v3490 = vsel %vm3489, %v3487, %v3484
        %v3491 = vadd.f32 %v3351, 1.0
        %v3492 = vlog2.pop %v3491
        %v3493 = vmul.f32 %v3492, 0.6931472
        %v3494 = vmul.f32 -0.5, %v3351
        %v3495 = vadd.f32 %v3494, 1.0
        %v3496 = vmul.f32 %v3495, %v3351
        %v3497 = vand.u32 2147483647, %v3351
        %vm3498 = vcmp.lt.f32.partialorder %v3497, 0.0004427343
        %v3499 = vsel %vm3498, %v3496, %v3493
        %v3500 = vadd.f32 %v3353, 1.0
        %v3501 = vlog2.pop %v3500
        %v3502 = vmul.f32 %v3501, 0.6931472
        %v3503 = vmul.f32 -0.5, %v3353
        %v3504 = vadd.f32 %v3503, 1.0
        %v3505 = vmul.f32 %v3504, %v3353
        %v3506 = vand.u32 2147483647, %v3353
        %vm3507 = vcmp.lt.f32.partialorder %v3506, 0.0004427343
        %v3508 = vsel %vm3507, %v3505, %v3502
        %v3509 = vadd.f32 %v3355, 1.0
        %v3510 = vlog2.pop %v3509
        %v3511 = vmul.f32 %v3510, 0.6931472
        %v3512 = vmul.f32 -0.5, %v3355
        %v3513 = vadd.f32 %v3512, 1.0
        %v3514 = vmul.f32 %v3513, %v3355
        %v3515 = vand.u32 2147483647, %v3355
        %vm3516 = vcmp.lt.f32.partialorder %v3515, 0.0004427343
        %v3517 = vsel %vm3516, %v3514, %v3511
        %v3518 = vadd.f32 %v3357, 1.0
        %v3519 = vlog2.pop %v3518
        %v3520 = vmul.f32 %v3519, 0.6931472
        %v3521 = vmul.f32 -0.5, %v3357
        %v3522 = vadd.f32 %v3521, 1.0
        %v3523 = vmul.f32 %v3522, %v3357
        %v3524 = vand.u32 2147483647, %v3357
        %vm3525 = vcmp.lt.f32.partialorder %v3524, 0.0004427343
        %v3526 = vsel %vm3525, %v3523, %v3520
        %v3527 = vadd.f32 %v3359, 1.0
        %v3528 = vlog2.pop %v3527
        %v3529 = vmul.f32 %v3528, 0.6931472
        %v3530 = vmul.f32 -0.5, %v3359
        %v3531 = vadd.f32 %v3530, 1.0
        %v3532 = vmul.f32 %v3531, %v3359
        %v3533 = vand.u32 2147483647, %v3359
        %vm3534 = vcmp.lt.f32.partialorder %v3533, 0.0004427343
        %v3535 = vsel %vm3534, %v3532, %v3529
        %v3536 = vadd.f32 %v3361, 1.0
        %v3537 = vlog2.pop %v3536
        %v3538 = vmul.f32 %v3537, 0.6931472
        %v3539 = vmul.f32 -0.5, %v3361
        %v3540 = vadd.f32 %v3539, 1.0
        %v3541 = vmul.f32 %v3540, %v3361
        %v3542 = vand.u32 2147483647, %v3361
        %vm3543 = vcmp.lt.f32.partialorder %v3542, 0.0004427343
        %v3544 = vsel %vm3543, %v3541, %v3538
        %v3545 = vadd.f32 %v3363, 1.0
        %v3546 = vlog2.pop %v3545
        %v3547 = vmul.f32 %v3546, 0.6931472
        %v3548 = vmul.f32 -0.5, %v3363
        %v3549 = vadd.f32 %v3548, 1.0
        %v3550 = vmul.f32 %v3549, %v3363
        %v3551 = vand.u32 2147483647, %v3363
        %vm3552 = vcmp.lt.f32.partialorder %v3551, 0.0004427343
        %v3553 = vsel %vm3552, %v3550, %v3547
        %v3554 = vadd.f32 %v3365, 1.0
        %v3555 = vlog2.pop %v3554
        %v3556 = vmul.f32 %v3555, 0.6931472
        %v3557 = vmul.f32 -0.5, %v3365
        %v3558 = vadd.f32 %v3557, 1.0
        %v3559 = vmul.f32 %v3558, %v3365
        %v3560 = vand.u32 2147483647, %v3365
        %vm3561 = vcmp.lt.f32.partialorder %v3560, 0.0004427343
        %v3562 = vsel %vm3561, %v3559, %v3556
        %v3563 = vadd.f32 %v3367, 1.0
        %v3564 = vlog2.pop %v3563
        %v3565 = vmul.f32 %v3564, 0.6931472
        %v3566 = vmul.f32 -0.5, %v3367
        %v3567 = vadd.f32 %v3566, 1.0
        %v3568 = vmul.f32 %v3567, %v3367
        %v3569 = vand.u32 2147483647, %v3367
        %vm3570 = vcmp.lt.f32.partialorder %v3569, 0.0004427343
        %v3571 = vsel %vm3570, %v3568, %v3565
        %v3572 = vadd.f32 %v3369, 1.0
        %v3573 = vlog2.pop %v3572
        %v3574 = vmul.f32 %v3573, 0.6931472
        %v3575 = vmul.f32 -0.5, %v3369
        %v3576 = vadd.f32 %v3575, 1.0
        %v3577 = vmul.f32 %v3576, %v3369
        %v3578 = vand.u32 2147483647, %v3369
        %vm3579 = vcmp.lt.f32.partialorder %v3578, 0.0004427343
        %v3580 = vsel %vm3579, %v3577, %v3574
        %v3581 = vadd.f32 %v3371, 1.0
        %v3582 = vlog2.pop %v3581
        %v3583 = vmul.f32 %v3582, 0.6931472
        %v3584 = vmul.f32 -0.5, %v3371
        %v3585 = vadd.f32 %v3584, 1.0
        %v3586 = vmul.f32 %v3585, %v3371
        %v3587 = vand.u32 2147483647, %v3371
        %vm3588 = vcmp.lt.f32.partialorder %v3587, 0.0004427343
        %v3589 = vsel %vm3588, %v3586, %v3583
        %v3590 = vadd.f32 %v3373, 1.0
        %v3591 = vlog2.pop %v3590
        %v3592 = vmul.f32 %v3591, 0.6931472
        %v3593 = vmul.f32 -0.5, %v3373
        %v3594 = vadd.f32 %v3593, 1.0
        %v3595 = vmul.f32 %v3594, %v3373
        %v3596 = vand.u32 2147483647, %v3373
        %vm3597 = vcmp.lt.f32.partialorder %v3596, 0.0004427343
        %v3598 = vsel %vm3597, %v3595, %v3592
        %v3599 = vadd.f32 %v3375, 1.0
        %v3600 = vlog2.pop %v3599
        %v3601 = vmul.f32 %v3600, 0.6931472
        %v3602 = vmul.f32 -0.5, %v3375
        %v3603 = vadd.f32 %v3602, 1.0
        %v3604 = vmul.f32 %v3603, %v3375
        %v3605 = vand.u32 2147483647, %v3375
        %vm3606 = vcmp.lt.f32.partialorder %v3605, 0.0004427343
        %v3607 = vsel %vm3606, %v3604, %v3601
        %v3608 = vadd.f32 %v3377, 1.0
        %v3609 = vlog2.pop %v3608
        %v3610 = vmul.f32 %v3609, 0.6931472
        %v3611 = vmul.f32 -0.5, %v3377
        %v3612 = vadd.f32 %v3611, 1.0
        %v3613 = vmul.f32 %v3612, %v3377
        %v3614 = vand.u32 2147483647, %v3377
        %vm3615 = vcmp.lt.f32.partialorder %v3614, 0.0004427343
        %v3616 = vsel %vm3615, %v3613, %v3610
        %v3617 = vadd.f32 %v3379, 1.0
        %v3618 = vlog2.pop %v3617
        %v3619 = vmul.f32 %v3618, 0.6931472
        %v3620 = vmul.f32 -0.5, %v3379
        %v3621 = vadd.f32 %v3620, 1.0
        %v3622 = vmul.f32 %v3621, %v3379
        %v3623 = vand.u32 2147483647, %v3379
        %vm3624 = vcmp.lt.f32.partialorder %v3623, 0.0004427343
        %v3625 = vsel %vm3624, %v3622, %v3619
        %v3626 = vadd.f32 %v3381, 1.0
        %v3627 = vlog2.pop %v3626
        %v3628 = vmul.f32 %v3627, 0.6931472
        %v3629 = vmul.f32 -0.5, %v3381
        %v3630 = vadd.f32 %v3629, 1.0
        %v3631 = vmul.f32 %v3630, %v3381
        %v3632 = vand.u32 2147483647, %v3381
        %vm3633 = vcmp.lt.f32.partialorder %v3632, 0.0004427343
        %v3634 = vsel %vm3633, %v3631, %v3628
        %v3635 = vadd.f32 %v3383, 1.0
        %v3636 = vlog2.pop %v3635
        %v3637 = vmul.f32 %v3636, 0.6931472
        %v3638 = vmul.f32 -0.5, %v3383
        %v3639 = vadd.f32 %v3638, 1.0
        %v3640 = vmul.f32 %v3639, %v3383
        %v3641 = vand.u32 2147483647, %v3383
        %vm3642 = vcmp.lt.f32.partialorder %v3641, 0.0004427343
        %v3643 = vsel %vm3642, %v3640, %v3637
        %v3644 = vadd.f32 %v3385, 1.0
        %v3645 = vlog2.pop %v3644
        %v3646 = vmul.f32 %v3645, 0.6931472
        %v3647 = vmul.f32 -0.5, %v3385
        %v3648 = vadd.f32 %v3647, 1.0
        %v3649 = vmul.f32 %v3648, %v3385
        %v3650 = vand.u32 2147483647, %v3385
        %vm3651 = vcmp.lt.f32.partialorder %v3650, 0.0004427343
        %v3652 = vsel %vm3651, %v3649, %v3646
        %v3653 = vadd.f32 %v3387, 1.0
        %v3654 = vlog2.pop %v3653
        %v3655 = vmul.f32 %v3654, 0.6931472
        %v3656 = vmul.f32 -0.5, %v3387
        %v3657 = vadd.f32 %v3656, 1.0
        %v3658 = vmul.f32 %v3657, %v3387
        %v3659 = vand.u32 2147483647, %v3387
        %vm3660 = vcmp.lt.f32.partialorder %v3659, 0.0004427343
        %v3661 = vsel %vm3660, %v3658, %v3655
        %v3662 = vadd.f32 %v3389, 1.0
        %v3663 = vlog2.pop %v3662
        %v3664 = vmul.f32 %v3663, 0.6931472
        %v3665 = vmul.f32 -0.5, %v3389
        %v3666 = vadd.f32 %v3665, 1.0
        %v3667 = vmul.f32 %v3666, %v3389
        %v3668 = vand.u32 2147483647, %v3389
        %vm3669 = vcmp.lt.f32.partialorder %v3668, 0.0004427343
        %v3670 = vsel %vm3669, %v3667, %v3664
        %v3671 = vadd.f32 %v3391, 1.0
        %v3672 = vlog2.pop %v3671
        %v3673 = vmul.f32 %v3672, 0.6931472
        %v3674 = vmul.f32 -0.5, %v3391
        %v3675 = vadd.f32 %v3674, 1.0
        %v3676 = vmul.f32 %v3675, %v3391
        %v3677 = vand.u32 2147483647, %v3391
        %vm3678 = vcmp.lt.f32.partialorder %v3677, 0.0004427343
        %v3679 = vsel %vm3678, %v3676, %v3673
        %v3680 = vadd.f32 %v3168, %v3400
        %v3681 = vadd.f32 %v3169, %v3409
        %v3682 = vadd.f32 %v3170, %v3418
        %v3683 = vadd.f32 %v3171, %v3427
        %v3684 = vadd.f32 %v3172, %v3436
        %v3685 = vadd.f32 %v3173, %v3445
        %v3686 = vadd.f32 %v3174, %v3454
        %v3687 = vadd.f32 %v3175, %v3463
        %v3688 = vadd.f32 %v3176, %v3472
        %v3689 = vadd.f32 %v3177, %v3481
        %v3690 = vadd.f32 %v3178, %v3490
        %v3691 = vadd.f32 %v3179, %v3499
        %v3692 = vadd.f32 %v3180, %v3508
        %v3693 = vadd.f32 %v3181, %v3517
        %v3694 = vadd.f32 %v3182, %v3526
        %v3695 = vadd.f32 %v3183, %v3535
        %v3696 = vadd.f32 %v3184, %v3544
        %v3697 = vadd.f32 %v3185, %v3553
        %v3698 = vadd.f32 %v3186, %v3562
        %v3699 = vadd.f32 %v3187, %v3571
        %v3700 = vadd.f32 %v3188, %v3580
        %v3701 = vadd.f32 %v3189, %v3589
        %v3702 = vadd.f32 %v3190, %v3598
        %v3703 = vadd.f32 %v3191, %v3607
        %v3704 = vadd.f32 %v3192, %v3616
        %v3705 = vadd.f32 %v3193, %v3625
        %v3706 = vadd.f32 %v3194, %v3634
        %v3707 = vadd.f32 %v3195, %v3643
        %v3708 = vadd.f32 %v3196, %v3652
        %v3709 = vadd.f32 %v3197, %v3661
        %v3710 = vadd.f32 %v3198, %v3670
        %v3711 = vadd.f32 %v3199, %v3679
        %v3712 = vsel %vm3200, %v3232, %v3680
        %v3713 = vsel %vm3201, %v3233, %v3681
        %v3714 = vsel %vm3202, %v3234, %v3682
        %v3715 = vsel %vm3203, %v3235, %v3683
        %v3716 = vsel %vm3204, %v3236, %v3684
        %v3717 = vsel %vm3205, %v3237, %v3685
        %v3718 = vsel %vm3206, %v3238, %v3686
        %v3719 = vsel %vm3207, %v3239, %v3687
        %v3720 = vsel %vm3208, %v3240, %v3688
        %v3721 = vsel %vm3209, %v3241, %v3689
        %v3722 = vsel %vm3210, %v3242, %v3690
        %v3723 = vsel %vm3211, %v3243, %v3691
        %v3724 = vsel %vm3212, %v3244, %v3692
        %v3725 = vsel %vm3213, %v3245, %v3693
        %v3726 = vsel %vm3214, %v3246, %v3694
        %v3727 = vsel %vm3215, %v3247, %v3695
        %v3728 = vsel %vm3216, %v3248, %v3696
        %v3729 = vsel %vm3217, %v3249, %v3697
        %v3730 = vsel %vm3218, %v3250, %v3698
        %v3731 = vsel %vm3219, %v3251, %v3699
        %v3732 = vsel %vm3220, %v3252, %v3700
        %v3733 = vsel %vm3221, %v3253, %v3701
        %v3734 = vsel %vm3222, %v3254, %v3702
        %v3735 = vsel %vm3223, %v3255, %v3703
        %v3736 = vsel %vm3224, %v3256, %v3704
        %v3737 = vsel %vm3225, %v3257, %v3705
        %v3738 = vsel %vm3226, %v3258, %v3706
        %v3739 = vsel %vm3227, %v3259, %v3707
        %v3740 = vsel %vm3228, %v3260, %v3708
        %v3741 = vsel %vm3229, %v3261, %v3709
        %v3742 = vsel %vm3230, %v3262, %v3710
        %v3743 = vsel %vm3231, %v3263, %v3711
        %v3744 = vld [vmem:[#allocation13] sm:$0xff]
        %v3745 = vld [vmem:[#allocation13 + $0x8] sm:$0xff]
        %v3746 = vld [vmem:[#allocation13 + $0x10] sm:$0xff]
        %v3747 = vld [vmem:[#allocation13 + $0x18] sm:$0xff]
        %v3748 = vld [vmem:[#allocation13 + $0x20] sm:$0xff]
        %v3749 = vld [vmem:[#allocation13 + $0x28] sm:$0xff]
        %v3750 = vld [vmem:[#allocation13 + $0x30] sm:$0xff]
        %v3751 = vld [vmem:[#allocation13 + $0x38] sm:$0xff]
        %v3752 = vld [vmem:[#allocation13 + $0x40] sm:$0xff]
        %v3753 = vld [vmem:[#allocation13 + $0x48] sm:$0xff]
        %v3754 = vld [vmem:[#allocation13 + $0x50] sm:$0xff]
        %v3755 = vld [vmem:[#allocation13 + $0x58] sm:$0xff]
        %v3756 = vld [vmem:[#allocation13 + $0x60] sm:$0xff]
        %v3757 = vld [vmem:[#allocation13 + $0x68] sm:$0xff]
        %v3758 = vld [vmem:[#allocation13 + $0x70] sm:$0xff]
        %v3759 = vld [vmem:[#allocation13 + $0x78] sm:$0xff]
        %v3760 = vld [vmem:[#allocation13 + $0x80] sm:$0xff]
        %v3761 = vld [vmem:[#allocation13 + $0x88] sm:$0xff]
        %v3762 = vld [vmem:[#allocation13 + $0x90] sm:$0xff]
        %v3763 = vld [vmem:[#allocation13 + $0x98] sm:$0xff]
        %v3764 = vld [vmem:[#allocation13 + $0xa0] sm:$0xff]
        %v3765 = vld [vmem:[#allocation13 + $0xa8] sm:$0xff]
        %v3766 = vld [vmem:[#allocation13 + $0xb0] sm:$0xff]
        %v3767 = vld [vmem:[#allocation13 + $0xb8] sm:$0xff]
        %v3768 = vld [vmem:[#allocation13 + $0xc0] sm:$0xff]
        %v3769 = vld [vmem:[#allocation13 + $0xc8] sm:$0xff]
        %v3770 = vld [vmem:[#allocation13 + $0xd0] sm:$0xff]
        %v3771 = vld [vmem:[#allocation13 + $0xd8] sm:$0xff]
        %v3772 = vld [vmem:[#allocation13 + $0xe0] sm:$0xff]
        %v3773 = vld [vmem:[#allocation13 + $0xe8] sm:$0xff]
        %v3774 = vld [vmem:[#allocation13 + $0xf0] sm:$0xff]
        %v3775 = vld [vmem:[#allocation13 + $0xf8] sm:$0xff]
        %v3776 = vld [vmem:[%s10] sm:$0x3]
        %v3778 = vperm.slane %v3776, 0
        %v3779 = vperm.slane %v3776, 1
        %3782 = vmatpush.msra.mxu0 %v3774
        %3783 = vmatpush.msra.mxu0 %v3772
        %3784 = vmatpush.msra.mxu0 %v3770
        %3785 = vmatpush.msra.mxu0 %v3768
        %3786 = vmatpush.msra.mxu0 %v3766
        %3787 = vmatpush.msra.mxu0 %v3764
        %3788 = vmatpush.msra.mxu0 %v3762
        %3789 = vmatpush.msra.mxu0 %v3760
        %3790 = vmatpush.msra.mxu0 %v3758
        %3791 = vmatpush.msra.mxu0 %v3756
        %3792 = vmatpush.msra.mxu0 %v3754
        %3793 = vmatpush.msra.mxu0 %v3752
        %3794 = vmatpush.msra.mxu0 %v3750
        %3795 = vmatpush.msra.mxu0 %v3748
        %3796 = vmatpush.msra.mxu0 %v3746
        %3797 = vmatpush.msra.mxu0 %v3744
        %3798 = vmatmul.f32.gmra.mxu0 %v3712
        %v3799 = vpop.f32.mrf.mxu0
        %v3800 = vadd.f32 %v3778, %v3799
        %3801 = vmatmul.f32.gmra.mxu0 %v3713
        %v3802 = vpop.f32.mrf.mxu0
        %v3803 = vadd.f32 %v3778, %v3802
        %3804 = vmatmul.f32.gmra.mxu0 %v3714
        %v3805 = vpop.f32.mrf.mxu0
        %v3806 = vadd.f32 %v3778, %v3805
        %3807 = vmatmul.f32.gmra.mxu0 %v3715
        %v3808 = vpop.f32.mrf.mxu0
        %v3809 = vadd.f32 %v3778, %v3808
        %3810 = vmatmul.f32.gmra.mxu0 %v3716
        %v3811 = vpop.f32.mrf.mxu0
        %v3812 = vadd.f32 %v3778, %v3811
        %3813 = vmatmul.f32.gmra.mxu0 %v3717
        %v3814 = vpop.f32.mrf.mxu0
        %v3815 = vadd.f32 %v3778, %v3814
        %3816 = vmatmul.f32.gmra.mxu0 %v3718
        %v3817 = vpop.f32.mrf.mxu0
        %v3818 = vadd.f32 %v3778, %v3817
        %3819 = vmatmul.f32.gmra.mxu0 %v3719
        %v3820 = vpop.f32.mrf.mxu0
        %v3821 = vadd.f32 %v3778, %v3820
        %3822 = vmatmul.f32.gmra.mxu0 %v3720
        %v3823 = vpop.f32.mrf.mxu0
        %v3824 = vadd.f32 %v3778, %v3823
        %3825 = vmatmul.f32.gmra.mxu0 %v3721
        %v3826 = vpop.f32.mrf.mxu0
        %v3827 = vadd.f32 %v3778, %v3826
        %3828 = vmatmul.f32.gmra.mxu0 %v3722
        %v3829 = vpop.f32.mrf.mxu0
        %v3830 = vadd.f32 %v3778, %v3829
        %3831 = vmatmul.f32.gmra.mxu0 %v3723
        %v3832 = vpop.f32.mrf.mxu0
        %v3833 = vadd.f32 %v3778, %v3832
        %3834 = vmatmul.f32.gmra.mxu0 %v3724
        %v3835 = vpop.f32.mrf.mxu0
        %v3836 = vadd.f32 %v3778, %v3835
        %3837 = vmatmul.f32.gmra.mxu0 %v3725
        %v3838 = vpop.f32.mrf.mxu0
        %v3839 = vadd.f32 %v3778, %v3838
        %3840 = vmatmul.f32.gmra.mxu0 %v3726
        %v3841 = vpop.f32.mrf.mxu0
        %v3842 = vadd.f32 %v3778, %v3841
        %3843 = vmatmul.f32.gmra.mxu0 %v3727
        %v3844 = vpop.f32.mrf.mxu0
        %v3845 = vadd.f32 %v3778, %v3844
        %3846 = vmatmul.f32.gmra.mxu0 %v3728
        %v3847 = vpop.f32.mrf.mxu0
        %v3848 = vadd.f32 %v3778, %v3847
        %3849 = vmatmul.f32.gmra.mxu0 %v3729
        %v3850 = vpop.f32.mrf.mxu0
        %v3851 = vadd.f32 %v3778, %v3850
        %3852 = vmatmul.f32.gmra.mxu0 %v3730
        %v3853 = vpop.f32.mrf.mxu0
        %v3854 = vadd.f32 %v3778, %v3853
        %3855 = vmatmul.f32.gmra.mxu0 %v3731
        %v3856 = vpop.f32.mrf.mxu0
        %v3857 = vadd.f32 %v3778, %v3856
        %3858 = vmatmul.f32.gmra.mxu0 %v3732
        %v3859 = vpop.f32.mrf.mxu0
        %v3860 = vadd.f32 %v3778, %v3859
        %3861 = vmatmul.f32.gmra.mxu0 %v3733
        %v3862 = vpop.f32.mrf.mxu0
        %v3863 = vadd.f32 %v3778, %v3862
        %3864 = vmatmul.f32.gmra.mxu0 %v3734
        %v3865 = vpop.f32.mrf.mxu0
        %v3866 = vadd.f32 %v3778, %v3865
        %3867 = vmatmul.f32.gmra.mxu0 %v3735
        %v3868 = vpop.f32.mrf.mxu0
        %v3869 = vadd.f32 %v3778, %v3868
        %3870 = vmatmul.f32.gmra.mxu0 %v3736
        %v3871 = vpop.f32.mrf.mxu0
        %v3872 = vadd.f32 %v3778, %v3871
        %3873 = vmatmul.f32.gmra.mxu0 %v3737
        %v3874 = vpop.f32.mrf.mxu0
        %v3875 = vadd.f32 %v3778, %v3874
        %3876 = vmatmul.f32.gmra.mxu0 %v3738
        %v3877 = vpop.f32.mrf.mxu0
        %v3878 = vadd.f32 %v3778, %v3877
        %3879 = vmatmul.f32.gmra.mxu0 %v3739
        %v3880 = vpop.f32.mrf.mxu0
        %v3881 = vadd.f32 %v3778, %v3880
        %3882 = vmatmul.f32.gmra.mxu0 %v3740
        %v3883 = vpop.f32.mrf.mxu0
        %v3884 = vadd.f32 %v3778, %v3883
        %3885 = vmatmul.f32.gmra.mxu0 %v3741
        %v3886 = vpop.f32.mrf.mxu0
        %v3887 = vadd.f32 %v3778, %v3886
        %3888 = vmatmul.f32.gmra.mxu0 %v3742
        %v3889 = vpop.f32.mrf.mxu0
        %v3890 = vadd.f32 %v3778, %v3889
        %3891 = vmatmul.f32.gmra.mxu0 %v3743
        %v3892 = vpop.f32.mrf.mxu0
        %v3893 = vadd.f32 %v3778, %v3892
        %3894 = vdwg.mxu0
        %3895 = vmatpush.msra.mxu0 %v3775
        %3896 = vmatpush.msra.mxu0 %v3773
        %3897 = vmatpush.msra.mxu0 %v3771
        %3898 = vmatpush.msra.mxu0 %v3769
        %3899 = vmatpush.msra.mxu0 %v3767
        %3900 = vmatpush.msra.mxu0 %v3765
        %3901 = vmatpush.msra.mxu0 %v3763
        %3902 = vmatpush.msra.mxu0 %v3761
        %3903 = vmatpush.msra.mxu0 %v3759
        %3904 = vmatpush.msra.mxu0 %v3757
        %3905 = vmatpush.msra.mxu0 %v3755
        %3906 = vmatpush.msra.mxu0 %v3753
        %3907 = vmatpush.msra.mxu0 %v3751
        %3908 = vmatpush.msra.mxu0 %v3749
        %3909 = vmatpush.msra.mxu0 %v3747
        %3910 = vmatpush.msra.mxu0 %v3745
        %3911 = vmatmul.f32.gmra.mxu0 %v3712
        %v3912 = vpop.f32.mrf.mxu0
        %v3913 = vadd.f32 %v3779, %v3912
        %3914 = vmatmul.f32.gmra.mxu0 %v3713
        %v3915 = vpop.f32.mrf.mxu0
        %v3916 = vadd.f32 %v3779, %v3915
        %3917 = vmatmul.f32.gmra.mxu0 %v3714
        %v3918 = vpop.f32.mrf.mxu0
        %v3919 = vadd.f32 %v3779, %v3918
        %3920 = vmatmul.f32.gmra.mxu0 %v3715
        %v3921 = vpop.f32.mrf.mxu0
        %v3922 = vadd.f32 %v3779, %v3921
        %3923 = vmatmul.f32.gmra.mxu0 %v3716
        %v3924 = vpop.f32.mrf.mxu0
        %v3925 = vadd.f32 %v3779, %v3924
        %3926 = vmatmul.f32.gmra.mxu0 %v3717
        %v3927 = vpop.f32.mrf.mxu0
        %v3928 = vadd.f32 %v3779, %v3927
        %3929 = vmatmul.f32.gmra.mxu0 %v3718
        %v3930 = vpop.f32.mrf.mxu0
        %v3931 = vadd.f32 %v3779, %v3930
        %3932 = vmatmul.f32.gmra.mxu0 %v3719
        %v3933 = vpop.f32.mrf.mxu0
        %v3934 = vadd.f32 %v3779, %v3933
        %3935 = vmatmul.f32.gmra.mxu0 %v3720
        %v3936 = vpop.f32.mrf.mxu0
        %v3937 = vadd.f32 %v3779, %v3936
        %3938 = vmatmul.f32.gmra.mxu0 %v3721
        %v3939 = vpop.f32.mrf.mxu0
        %v3940 = vadd.f32 %v3779, %v3939
        %3941 = vmatmul.f32.gmra.mxu0 %v3722
        %v3942 = vpop.f32.mrf.mxu0
        %v3943 = vadd.f32 %v3779, %v3942
        %3944 = vmatmul.f32.gmra.mxu0 %v3723
        %v3945 = vpop.f32.mrf.mxu0
        %v3946 = vadd.f32 %v3779, %v3945
        %3947 = vmatmul.f32.gmra.mxu0 %v3724
        %v3948 = vpop.f32.mrf.mxu0
        %v3949 = vadd.f32 %v3779, %v3948
        %3950 = vmatmul.f32.gmra.mxu0 %v3725
        %v3951 = vpop.f32.mrf.mxu0
        %v3952 = vadd.f32 %v3779, %v3951
        %3953 = vmatmul.f32.gmra.mxu0 %v3726
        %v3954 = vpop.f32.mrf.mxu0
        %v3955 = vadd.f32 %v3779, %v3954
        %3956 = vmatmul.f32.gmra.mxu0 %v3727
        %v3957 = vpop.f32.mrf.mxu0
        %v3958 = vadd.f32 %v3779, %v3957
        %3959 = vmatmul.f32.gmra.mxu0 %v3728
        %v3960 = vpop.f32.mrf.mxu0
        %v3961 = vadd.f32 %v3779, %v3960
        %3962 = vmatmul.f32.gmra.mxu0 %v3729
        %v3963 = vpop.f32.mrf.mxu0
        %v3964 = vadd.f32 %v3779, %v3963
        %3965 = vmatmul.f32.gmra.mxu0 %v3730
        %v3966 = vpop.f32.mrf.mxu0
        %v3967 = vadd.f32 %v3779, %v3966
        %3968 = vmatmul.f32.gmra.mxu0 %v3731
        %v3969 = vpop.f32.mrf.mxu0
        %v3970 = vadd.f32 %v3779, %v3969
        %3971 = vmatmul.f32.gmra.mxu0 %v3732
        %v3972 = vpop.f32.mrf.mxu0
        %v3973 = vadd.f32 %v3779, %v3972
        %3974 = vmatmul.f32.gmra.mxu0 %v3733
        %v3975 = vpop.f32.mrf.mxu0
        %v3976 = vadd.f32 %v3779, %v3975
        %3977 = vmatmul.f32.gmra.mxu0 %v3734
        %v3978 = vpop.f32.mrf.mxu0
        %v3979 = vadd.f32 %v3779, %v3978
        %3980 = vmatmul.f32.gmra.mxu0 %v3735
        %v3981 = vpop.f32.mrf.mxu0
        %v3982 = vadd.f32 %v3779, %v3981
        %3983 = vmatmul.f32.gmra.mxu0 %v3736
        %v3984 = vpop.f32.mrf.mxu0
        %v3985 = vadd.f32 %v3779, %v3984
        %3986 = vmatmul.f32.gmra.mxu0 %v3737
        %v3987 = vpop.f32.mrf.mxu0
        %v3988 = vadd.f32 %v3779, %v3987
        %3989 = vmatmul.f32.gmra.mxu0 %v3738
        %v3990 = vpop.f32.mrf.mxu0
        %v3991 = vadd.f32 %v3779, %v3990
        %3992 = vmatmul.f32.gmra.mxu0 %v3739
        %v3993 = vpop.f32.mrf.mxu0
        %v3994 = vadd.f32 %v3779, %v3993
        %3995 = vmatmul.f32.gmra.mxu0 %v3740
        %v3996 = vpop.f32.mrf.mxu0
        %v3997 = vadd.f32 %v3779, %v3996
        %3998 = vmatmul.f32.gmra.mxu0 %v3741
        %v3999 = vpop.f32.mrf.mxu0
        %v4000 = vadd.f32 %v3779, %v3999
        %4001 = vmatmul.f32.gmra.mxu0 %v3742
        %v4002 = vpop.f32.mrf.mxu0
        %v4003 = vadd.f32 %v3779, %v4002
        %4004 = vmatmul.f32.gmra.mxu0 %v3743
        %v4005 = vpop.f32.mrf.mxu0
        %v4006 = vadd.f32 %v3779, %v4005
        %4007 = vdwg.mxu0
        %v4008 = vmax.f32 %v3800, 0.0
        %v4009 = vmax.f32 %v3913, 0.0
        %v4010 = vmax.f32 %v3803, 0.0
        %v4011 = vmax.f32 %v3916, 0.0
        %v4012 = vmax.f32 %v3806, 0.0
        %v4013 = vmax.f32 %v3919, 0.0
        %v4014 = vmax.f32 %v3809, 0.0
        %v4015 = vmax.f32 %v3922, 0.0
        %v4016 = vmax.f32 %v3812, 0.0
        %v4017 = vmax.f32 %v3925, 0.0
        %v4018 = vmax.f32 %v3815, 0.0
        %v4019 = vmax.f32 %v3928, 0.0
        %v4020 = vmax.f32 %v3818, 0.0
        %v4021 = vmax.f32 %v3931, 0.0
        %v4022 = vmax.f32 %v3821, 0.0
        %v4023 = vmax.f32 %v3934, 0.0
        %v4024 = vmax.f32 %v3824, 0.0
        %v4025 = vmax.f32 %v3937, 0.0
        %v4026 = vmax.f32 %v3827, 0.0
        %v4027 = vmax.f32 %v3940, 0.0
        %v4028 = vmax.f32 %v3830, 0.0
        %v4029 = vmax.f32 %v3943, 0.0
        %v4030 = vmax.f32 %v3833, 0.0
        %v4031 = vmax.f32 %v3946, 0.0
        %v4032 = vmax.f32 %v3836, 0.0
        %v4033 = vmax.f32 %v3949, 0.0
        %v4034 = vmax.f32 %v3839, 0.0
        %v4035 = vmax.f32 %v3952, 0.0
        %v4036 = vmax.f32 %v3842, 0.0
        %v4037 = vmax.f32 %v3955, 0.0
        %v4038 = vmax.f32 %v3845, 0.0
        %v4039 = vmax.f32 %v3958, 0.0
        %v4040 = vmax.f32 %v3848, 0.0
        %v4041 = vmax.f32 %v3961, 0.0
        %v4042 = vmax.f32 %v3851, 0.0
        %v4043 = vmax.f32 %v3964, 0.0
        %v4044 = vmax.f32 %v3854, 0.0
        %v4045 = vmax.f32 %v3967, 0.0
        %v4046 = vmax.f32 %v3857, 0.0
        %v4047 = vmax.f32 %v3970, 0.0
        %v4048 = vmax.f32 %v3860, 0.0
        %v4049 = vmax.f32 %v3973, 0.0
        %v4050 = vmax.f32 %v3863, 0.0
        %v4051 = vmax.f32 %v3976, 0.0
        %v4052 = vmax.f32 %v3866, 0.0
        %v4053 = vmax.f32 %v3979, 0.0
        %v4054 = vmax.f32 %v3869, 0.0
        %v4055 = vmax.f32 %v3982, 0.0
        %v4056 = vmax.f32 %v3872, 0.0
        %v4057 = vmax.f32 %v3985, 0.0
        %v4058 = vmax.f32 %v3875, 0.0
        %v4059 = vmax.f32 %v3988, 0.0
        %v4060 = vmax.f32 %v3878, 0.0
        %v4061 = vmax.f32 %v3991, 0.0
        %v4062 = vmax.f32 %v3881, 0.0
        %v4063 = vmax.f32 %v3994, 0.0
        %v4064 = vmax.f32 %v3884, 0.0
        %v4065 = vmax.f32 %v3997, 0.0
        %v4066 = vmax.f32 %v3887, 0.0
        %v4067 = vmax.f32 %v4000, 0.0
        %v4068 = vmax.f32 %v3890, 0.0
        %v4069 = vmax.f32 %v4003, 0.0
        %v4070 = vmax.f32 %v3893, 0.0
        %v4071 = vmax.f32 %v4006, 0.0
        %vm4072 = vcmp.ne.f32.partialorder %v3800, %v3800
        %vm4073 = vcmp.ne.f32.partialorder %v3913, %v3913
        %vm4074 = vcmp.ne.f32.partialorder %v3803, %v3803
        %vm4075 = vcmp.ne.f32.partialorder %v3916, %v3916
        %vm4076 = vcmp.ne.f32.partialorder %v3806, %v3806
        %vm4077 = vcmp.ne.f32.partialorder %v3919, %v3919
        %vm4078 = vcmp.ne.f32.partialorder %v3809, %v3809
        %vm4079 = vcmp.ne.f32.partialorder %v3922, %v3922
        %vm4080 = vcmp.ne.f32.partialorder %v3812, %v3812
        %vm4081 = vcmp.ne.f32.partialorder %v3925, %v3925
        %vm4082 = vcmp.ne.f32.partialorder %v3815, %v3815
        %vm4083 = vcmp.ne.f32.partialorder %v3928, %v3928
        %vm4084 = vcmp.ne.f32.partialorder %v3818, %v3818
        %vm4085 = vcmp.ne.f32.partialorder %v3931, %v3931
        %vm4086 = vcmp.ne.f32.partialorder %v3821, %v3821
        %vm4087 = vcmp.ne.f32.partialorder %v3934, %v3934
        %vm4088 = vcmp.ne.f32.partialorder %v3824, %v3824
        %vm4089 = vcmp.ne.f32.partialorder %v3937, %v3937
        %vm4090 = vcmp.ne.f32.partialorder %v3827, %v3827
        %vm4091 = vcmp.ne.f32.partialorder %v3940, %v3940
        %vm4092 = vcmp.ne.f32.partialorder %v3830, %v3830
        %vm4093 = vcmp.ne.f32.partialorder %v3943, %v3943
        %vm4094 = vcmp.ne.f32.partialorder %v3833, %v3833
        %vm4095 = vcmp.ne.f32.partialorder %v3946, %v3946
        %vm4096 = vcmp.ne.f32.partialorder %v3836, %v3836
        %vm4097 = vcmp.ne.f32.partialorder %v3949, %v3949
        %vm4098 = vcmp.ne.f32.partialorder %v3839, %v3839
        %vm4099 = vcmp.ne.f32.partialorder %v3952, %v3952
        %vm4100 = vcmp.ne.f32.partialorder %v3842, %v3842
        %vm4101 = vcmp.ne.f32.partialorder %v3955, %v3955
        %vm4102 = vcmp.ne.f32.partialorder %v3845, %v3845
        %vm4103 = vcmp.ne.f32.partialorder %v3958, %v3958
        %vm4104 = vcmp.ne.f32.partialorder %v3848, %v3848
        %vm4105 = vcmp.ne.f32.partialorder %v3961, %v3961
        %vm4106 = vcmp.ne.f32.partialorder %v3851, %v3851
        %vm4107 = vcmp.ne.f32.partialorder %v3964, %v3964
        %vm4108 = vcmp.ne.f32.partialorder %v3854, %v3854
        %vm4109 = vcmp.ne.f32.partialorder %v3967, %v3967
        %vm4110 = vcmp.ne.f32.partialorder %v3857, %v3857
        %vm4111 = vcmp.ne.f32.partialorder %v3970, %v3970
        %vm4112 = vcmp.ne.f32.partialorder %v3860, %v3860
        %vm4113 = vcmp.ne.f32.partialorder %v3973, %v3973
        %vm4114 = vcmp.ne.f32.partialorder %v3863, %v3863
        %vm4115 = vcmp.ne.f32.partialorder %v3976, %v3976
        %vm4116 = vcmp.ne.f32.partialorder %v3866, %v3866
        %vm4117 = vcmp.ne.f32.partialorder %v3979, %v3979
        %vm4118 = vcmp.ne.f32.partialorder %v3869, %v3869
        %vm4119 = vcmp.ne.f32.partialorder %v3982, %v3982
        %vm4120 = vcmp.ne.f32.partialorder %v3872, %v3872
        %vm4121 = vcmp.ne.f32.partialorder %v3985, %v3985
        %vm4122 = vcmp.ne.f32.partialorder %v3875, %v3875
        %vm4123 = vcmp.ne.f32.partialorder %v3988, %v3988
        %vm4124 = vcmp.ne.f32.partialorder %v3878, %v3878
        %vm4125 = vcmp.ne.f32.partialorder %v3991, %v3991
        %vm4126 = vcmp.ne.f32.partialorder %v3881, %v3881
        %vm4127 = vcmp.ne.f32.partialorder %v3994, %v3994
        %vm4128 = vcmp.ne.f32.partialorder %v3884, %v3884
        %vm4129 = vcmp.ne.f32.partialorder %v3997, %v3997
        %vm4130 = vcmp.ne.f32.partialorder %v3887, %v3887
        %vm4131 = vcmp.ne.f32.partialorder %v4000, %v4000
        %vm4132 = vcmp.ne.f32.partialorder %v3890, %v3890
        %vm4133 = vcmp.ne.f32.partialorder %v4003, %v4003
        %vm4134 = vcmp.ne.f32.partialorder %v3893, %v3893
        %vm4135 = vcmp.ne.f32.partialorder %v4006, %v4006
        %v4136 = vadd.f32 %v3800, 0.0
        %v4137 = vadd.f32 %v3913, 0.0
        %v4138 = vadd.f32 %v3803, 0.0
        %v4139 = vadd.f32 %v3916, 0.0
        %v4140 = vadd.f32 %v3806, 0.0
        %v4141 = vadd.f32 %v3919, 0.0
        %v4142 = vadd.f32 %v3809, 0.0
        %v4143 = vadd.f32 %v3922, 0.0
        %v4144 = vadd.f32 %v3812, 0.0
        %v4145 = vadd.f32 %v3925, 0.0
        %v4146 = vadd.f32 %v3815, 0.0
        %v4147 = vadd.f32 %v3928, 0.0
        %v4148 = vadd.f32 %v3818, 0.0
        %v4149 = vadd.f32 %v3931, 0.0
        %v4150 = vadd.f32 %v3821, 0.0
        %v4151 = vadd.f32 %v3934, 0.0
        %v4152 = vadd.f32 %v3824, 0.0
        %v4153 = vadd.f32 %v3937, 0.0
        %v4154 = vadd.f32 %v3827, 0.0
        %v4155 = vadd.f32 %v3940, 0.0
        %v4156 = vadd.f32 %v3830, 0.0
        %v4157 = vadd.f32 %v3943, 0.0
        %v4158 = vadd.f32 %v3833, 0.0
        %v4159 = vadd.f32 %v3946, 0.0
        %v4160 = vadd.f32 %v3836, 0.0
        %v4161 = vadd.f32 %v3949, 0.0
        %v4162 = vadd.f32 %v3839, 0.0
        %v4163 = vadd.f32 %v3952, 0.0
        %v4164 = vadd.f32 %v3842, 0.0
        %v4165 = vadd.f32 %v3955, 0.0
        %v4166 = vadd.f32 %v3845, 0.0
        %v4167 = vadd.f32 %v3958, 0.0
        %v4168 = vadd.f32 %v3848, 0.0
        %v4169 = vadd.f32 %v3961, 0.0
        %v4170 = vadd.f32 %v3851, 0.0
        %v4171 = vadd.f32 %v3964, 0.0
        %v4172 = vadd.f32 %v3854, 0.0
        %v4173 = vadd.f32 %v3967, 0.0
        %v4174 = vadd.f32 %v3857, 0.0
        %v4175 = vadd.f32 %v3970, 0.0
        %v4176 = vadd.f32 %v3860, 0.0
        %v4177 = vadd.f32 %v3973, 0.0
        %v4178 = vadd.f32 %v3863, 0.0
        %v4179 = vadd.f32 %v3976, 0.0
        %v4180 = vadd.f32 %v3866, 0.0
        %v4181 = vadd.f32 %v3979, 0.0
        %v4182 = vadd.f32 %v3869, 0.0
        %v4183 = vadd.f32 %v3982, 0.0
        %v4184 = vadd.f32 %v3872, 0.0
        %v4185 = vadd.f32 %v3985, 0.0
        %v4186 = vadd.f32 %v3875, 0.0
        %v4187 = vadd.f32 %v3988, 0.0
        %v4188 = vadd.f32 %v3878, 0.0
        %v4189 = vadd.f32 %v3991, 0.0
        %v4190 = vadd.f32 %v3881, 0.0
        %v4191 = vadd.f32 %v3994, 0.0
        %v4192 = vadd.f32 %v3884, 0.0
        %v4193 = vadd.f32 %v3997, 0.0
        %v4194 = vadd.f32 %v3887, 0.0
        %v4195 = vadd.f32 %v4000, 0.0
        %v4196 = vadd.f32 %v3890, 0.0
        %v4197 = vadd.f32 %v4003, 0.0
        %v4198 = vadd.f32 %v3893, 0.0
        %v4199 = vadd.f32 %v4006, 0.0
        %v4200 = vand.u32 2147483647, %v3800
        %v4201 = vand.u32 2147483647, %v3913
        %v4202 = vand.u32 2147483647, %v3803
        %v4203 = vand.u32 2147483647, %v3916
        %v4204 = vand.u32 2147483647, %v3806
        %v4205 = vand.u32 2147483647, %v3919
        %v4206 = vand.u32 2147483647, %v3809
        %v4207 = vand.u32 2147483647, %v3922
        %v4208 = vand.u32 2147483647, %v3812
        %v4209 = vand.u32 2147483647, %v3925
        %v4210 = vand.u32 2147483647, %v3815
        %v4211 = vand.u32 2147483647, %v3928
        %v4212 = vand.u32 2147483647, %v3818
        %v4213 = vand.u32 2147483647, %v3931
        %v4214 = vand.u32 2147483647, %v3821
        %v4215 = vand.u32 2147483647, %v3934
        %v4216 = vand.u32 2147483647, %v3824
        %v4217 = vand.u32 2147483647, %v3937
        %v4218 = vand.u32 2147483647, %v3827
        %v4219 = vand.u32 2147483647, %v3940
        %v4220 = vand.u32 2147483647, %v3830
        %v4221 = vand.u32 2147483647, %v3943
        %v4222 = vand.u32 2147483647, %v3833
        %v4223 = vand.u32 2147483647, %v3946
        %v4224 = vand.u32 2147483647, %v3836
        %v4225 = vand.u32 2147483647, %v3949
        %v4226 = vand.u32 2147483647, %v3839
        %v4227 = vand.u32 2147483647, %v3952
        %v4228 = vand.u32 2147483647, %v3842
        %v4229 = vand.u32 2147483647, %v3955
        %v4230 = vand.u32 2147483647, %v3845
        %v4231 = vand.u32 2147483647, %v3958
        %v4232 = vand.u32 2147483647, %v3848
        %v4233 = vand.u32 2147483647, %v3961
        %v4234 = vand.u32 2147483647, %v3851
        %v4235 = vand.u32 2147483647, %v3964
        %v4236 = vand.u32 2147483647, %v3854
        %v4237 = vand.u32 2147483647, %v3967
        %v4238 = vand.u32 2147483647, %v3857
        %v4239 = vand.u32 2147483647, %v3970
        %v4240 = vand.u32 2147483647, %v3860
        %v4241 = vand.u32 2147483647, %v3973
        %v4242 = vand.u32 2147483647, %v3863
        %v4243 = vand.u32 2147483647, %v3976
        %v4244 = vand.u32 2147483647, %v3866
        %v4245 = vand.u32 2147483647, %v3979
        %v4246 = vand.u32 2147483647, %v3869
        %v4247 = vand.u32 2147483647, %v3982
        %v4248 = vand.u32 2147483647, %v3872
        %v4249 = vand.u32 2147483647, %v3985
        %v4250 = vand.u32 2147483647, %v3875
        %v4251 = vand.u32 2147483647, %v3988
        %v4252 = vand.u32 2147483647, %v3878
        %v4253 = vand.u32 2147483647, %v3991
        %v4254 = vand.u32 2147483647, %v3881
        %v4255 = vand.u32 2147483647, %v3994
        %v4256 = vand.u32 2147483647, %v3884
        %v4257 = vand.u32 2147483647, %v3997
        %v4258 = vand.u32 2147483647, %v3887
        %v4259 = vand.u32 2147483647, %v4000
        %v4260 = vand.u32 2147483647, %v3890
        %v4261 = vand.u32 2147483647, %v4003
        %v4262 = vand.u32 2147483647, %v3893
        %v4263 = vand.u32 2147483647, %v4006
        %v4264 = vsub.f32 0.0, %v4200
        %v4265 = vsub.f32 0.0, %v4201
        %v4266 = vsub.f32 0.0, %v4202
        %v4267 = vsub.f32 0.0, %v4203
        %v4268 = vsub.f32 0.0, %v4204
        %v4269 = vsub.f32 0.0, %v4205
        %v4270 = vsub.f32 0.0, %v4206
        %v4271 = vsub.f32 0.0, %v4207
        %v4272 = vsub.f32 0.0, %v4208
        %v4273 = vsub.f32 0.0, %v4209
        %v4274 = vsub.f32 0.0, %v4210
        %v4275 = vsub.f32 0.0, %v4211
        %v4276 = vsub.f32 0.0, %v4212
        %v4277 = vsub.f32 0.0, %v4213
        %v4278 = vsub.f32 0.0, %v4214
        %v4279 = vsub.f32 0.0, %v4215
        %v4280 = vsub.f32 0.0, %v4216
        %v4281 = vsub.f32 0.0, %v4217
        %v4282 = vsub.f32 0.0, %v4218
        %v4283 = vsub.f32 0.0, %v4219
        %v4284 = vsub.f32 0.0, %v4220
        %v4285 = vsub.f32 0.0, %v4221
        %v4286 = vsub.f32 0.0, %v4222
        %v4287 = vsub.f32 0.0, %v4223
        %v4288 = vsub.f32 0.0, %v4224
        %v4289 = vsub.f32 0.0, %v4225
        %v4290 = vsub.f32 0.0, %v4226
        %v4291 = vsub.f32 0.0, %v4227
        %v4292 = vsub.f32 0.0, %v4228
        %v4293 = vsub.f32 0.0, %v4229
        %v4294 = vsub.f32 0.0, %v4230
        %v4295 = vsub.f32 0.0, %v4231
        %v4296 = vsub.f32 0.0, %v4232
        %v4297 = vsub.f32 0.0, %v4233
        %v4298 = vsub.f32 0.0, %v4234
        %v4299 = vsub.f32 0.0, %v4235
        %v4300 = vsub.f32 0.0, %v4236
        %v4301 = vsub.f32 0.0, %v4237
        %v4302 = vsub.f32 0.0, %v4238
        %v4303 = vsub.f32 0.0, %v4239
        %v4304 = vsub.f32 0.0, %v4240
        %v4305 = vsub.f32 0.0, %v4241
        %v4306 = vsub.f32 0.0, %v4242
        %v4307 = vsub.f32 0.0, %v4243
        %v4308 = vsub.f32 0.0, %v4244
        %v4309 = vsub.f32 0.0, %v4245
        %v4310 = vsub.f32 0.0, %v4246
        %v4311 = vsub.f32 0.0, %v4247
        %v4312 = vsub.f32 0.0, %v4248
        %v4313 = vsub.f32 0.0, %v4249
        %v4314 = vsub.f32 0.0, %v4250
        %v4315 = vsub.f32 0.0, %v4251
        %v4316 = vsub.f32 0.0, %v4252
        %v4317 = vsub.f32 0.0, %v4253
        %v4318 = vsub.f32 0.0, %v4254
        %v4319 = vsub.f32 0.0, %v4255
        %v4320 = vsub.f32 0.0, %v4256
        %v4321 = vsub.f32 0.0, %v4257
        %v4322 = vsub.f32 0.0, %v4258
        %v4323 = vsub.f32 0.0, %v4259
        %v4324 = vsub.f32 0.0, %v4260
        %v4325 = vsub.f32 0.0, %v4261
        %v4326 = vsub.f32 0.0, %v4262
        %v4327 = vsub.f32 0.0, %v4263
        %v4328 = vmul.f32 %v4264, 1.442695
        %v4329 = vpow.pop %v4328
        %v4330 = vmul.f32 %v4265, 1.442695
        %v4331 = vpow.pop %v4330
        %v4332 = vmul.f32 %v4266, 1.442695
        %v4333 = vpow.pop %v4332
        %v4334 = vmul.f32 %v4267, 1.442695
        %v4335 = vpow.pop %v4334
        %v4336 = vmul.f32 %v4268, 1.442695
        %v4337 = vpow.pop %v4336
        %v4338 = vmul.f32 %v4269, 1.442695
        %v4339 = vpow.pop %v4338
        %v4340 = vmul.f32 %v4270, 1.442695
        %v4341 = vpow.pop %v4340
        %v4342 = vmul.f32 %v4271, 1.442695
        %v4343 = vpow.pop %v4342
        %v4344 = vmul.f32 %v4272, 1.442695
        %v4345 = vpow.pop %v4344
        %v4346 = vmul.f32 %v4273, 1.442695
        %v4347 = vpow.pop %v4346
        %v4348 = vmul.f32 %v4274, 1.442695
        %v4349 = vpow.pop %v4348
        %v4350 = vmul.f32 %v4275, 1.442695
        %v4351 = vpow.pop %v4350
        %v4352 = vmul.f32 %v4276, 1.442695
        %v4353 = vpow.pop %v4352
        %v4354 = vmul.f32 %v4277, 1.442695
        %v4355 = vpow.pop %v4354
        %v4356 = vmul.f32 %v4278, 1.442695
        %v4357 = vpow.pop %v4356
        %v4358 = vmul.f32 %v4279, 1.442695
        %v4359 = vpow.pop %v4358
        %v4360 = vmul.f32 %v4280, 1.442695
        %v4361 = vpow.pop %v4360
        %v4362 = vmul.f32 %v4281, 1.442695
        %v4363 = vpow.pop %v4362
        %v4364 = vmul.f32 %v4282, 1.442695
        %v4365 = vpow.pop %v4364
        %v4366 = vmul.f32 %v4283, 1.442695
        %v4367 = vpow.pop %v4366
        %v4368 = vmul.f32 %v4284, 1.442695
        %v4369 = vpow.pop %v4368
        %v4370 = vmul.f32 %v4285, 1.442695
        %v4371 = vpow.pop %v4370
        %v4372 = vmul.f32 %v4286, 1.442695
        %v4373 = vpow.pop %v4372
        %v4374 = vmul.f32 %v4287, 1.442695
        %v4375 = vpow.pop %v4374
        %v4376 = vmul.f32 %v4288, 1.442695
        %v4377 = vpow.pop %v4376
        %v4378 = vmul.f32 %v4289, 1.442695
        %v4379 = vpow.pop %v4378
        %v4380 = vmul.f32 %v4290, 1.442695
        %v4381 = vpow.pop %v4380
        %v4382 = vmul.f32 %v4291, 1.442695
        %v4383 = vpow.pop %v4382
        %v4384 = vmul.f32 %v4292, 1.442695
        %v4385 = vpow.pop %v4384
        %v4386 = vmul.f32 %v4293, 1.442695
        %v4387 = vpow.pop %v4386
        %v4388 = vmul.f32 %v4294, 1.442695
        %v4389 = vpow.pop %v4388
        %v4390 = vmul.f32 %v4295, 1.442695
        %v4391 = vpow.pop %v4390
        %v4392 = vmul.f32 %v4296, 1.442695
        %v4393 = vpow.pop %v4392
        %v4394 = vmul.f32 %v4297, 1.442695
        %v4395 = vpow.pop %v4394
        %v4396 = vmul.f32 %v4298, 1.442695
        %v4397 = vpow.pop %v4396
        %v4398 = vmul.f32 %v4299, 1.442695
        %v4399 = vpow.pop %v4398
        %v4400 = vmul.f32 %v4300, 1.442695
        %v4401 = vpow.pop %v4400
        %v4402 = vmul.f32 %v4301, 1.442695
        %v4403 = vpow.pop %v4402
        %v4404 = vmul.f32 %v4302, 1.442695
        %v4405 = vpow.pop %v4404
        %v4406 = vmul.f32 %v4303, 1.442695
        %v4407 = vpow.pop %v4406
        %v4408 = vmul.f32 %v4304, 1.442695
        %v4409 = vpow.pop %v4408
        %v4410 = vmul.f32 %v4305, 1.442695
        %v4411 = vpow.pop %v4410
        %v4412 = vmul.f32 %v4306, 1.442695
        %v4413 = vpow.pop %v4412
        %v4414 = vmul.f32 %v4307, 1.442695
        %v4415 = vpow.pop %v4414
        %v4416 = vmul.f32 %v4308, 1.442695
        %v4417 = vpow.pop %v4416
        %v4418 = vmul.f32 %v4309, 1.442695
        %v4419 = vpow.pop %v4418
        %v4420 = vmul.f32 %v4310, 1.442695
        %v4421 = vpow.pop %v4420
        %v4422 = vmul.f32 %v4311, 1.442695
        %v4423 = vpow.pop %v4422
        %v4424 = vmul.f32 %v4312, 1.442695
        %v4425 = vpow.pop %v4424
        %v4426 = vmul.f32 %v4313, 1.442695
        %v4427 = vpow.pop %v4426
        %v4428 = vmul.f32 %v4314, 1.442695
        %v4429 = vpow.pop %v4428
        %v4430 = vmul.f32 %v4315, 1.442695
        %v4431 = vpow.pop %v4430
        %v4432 = vmul.f32 %v4316, 1.442695
        %v4433 = vpow.pop %v4432
        %v4434 = vmul.f32 %v4317, 1.442695
        %v4435 = vpow.pop %v4434
        %v4436 = vmul.f32 %v4318, 1.442695
        %v4437 = vpow.pop %v4436
        %v4438 = vmul.f32 %v4319, 1.442695
        %v4439 = vpow.pop %v4438
        %v4440 = vmul.f32 %v4320, 1.442695
        %v4441 = vpow.pop %v4440
        %v4442 = vmul.f32 %v4321, 1.442695
        %v4443 = vpow.pop %v4442
        %v4444 = vmul.f32 %v4322, 1.442695
        %v4445 = vpow.pop %v4444
        %v4446 = vmul.f32 %v4323, 1.442695
        %v4447 = vpow.pop %v4446
        %v4448 = vmul.f32 %v4324, 1.442695
        %v4449 = vpow.pop %v4448
        %v4450 = vmul.f32 %v4325, 1.442695
        %v4451 = vpow.pop %v4450
        %v4452 = vmul.f32 %v4326, 1.442695
        %v4453 = vpow.pop %v4452
        %v4454 = vmul.f32 %v4327, 1.442695
        %v4455 = vpow.pop %v4454
        %v4456 = vadd.f32 %v4329, 1.0
        %v4457 = vlog2.pop %v4456
        %v4458 = vmul.f32 %v4457, 0.6931472
        %v4459 = vmul.f32 -0.5, %v4329
        %v4460 = vadd.f32 %v4459, 1.0
        %v4461 = vmul.f32 %v4460, %v4329
        %v4462 = vand.u32 2147483647, %v4329
        %vm4463 = vcmp.lt.f32.partialorder %v4462, 0.0004427343
        %v4464 = vsel %vm4463, %v4461, %v4458
        %v4465 = vadd.f32 %v4331, 1.0
        %v4466 = vlog2.pop %v4465
        %v4467 = vmul.f32 %v4466, 0.6931472
        %v4468 = vmul.f32 -0.5, %v4331
        %v4469 = vadd.f32 %v4468, 1.0
        %v4470 = vmul.f32 %v4469, %v4331
        %v4471 = vand.u32 2147483647, %v4331
        %vm4472 = vcmp.lt.f32.partialorder %v4471, 0.0004427343
        %v4473 = vsel %vm4472, %v4470, %v4467
        %v4474 = vadd.f32 %v4333, 1.0
        %v4475 = vlog2.pop %v4474
        %v4476 = vmul.f32 %v4475, 0.6931472
        %v4477 = vmul.f32 -0.5, %v4333
        %v4478 = vadd.f32 %v4477, 1.0
        %v4479 = vmul.f32 %v4478, %v4333
        %v4480 = vand.u32 2147483647, %v4333
        %vm4481 = vcmp.lt.f32.partialorder %v4480, 0.0004427343
        %v4482 = vsel %vm4481, %v4479, %v4476
        %v4483 = vadd.f32 %v4335, 1.0
        %v4484 = vlog2.pop %v4483
        %v4485 = vmul.f32 %v4484, 0.6931472
        %v4486 = vmul.f32 -0.5, %v4335
        %v4487 = vadd.f32 %v4486, 1.0
        %v4488 = vmul.f32 %v4487, %v4335
        %v4489 = vand.u32 2147483647, %v4335
        %vm4490 = vcmp.lt.f32.partialorder %v4489, 0.0004427343
        %v4491 = vsel %vm4490, %v4488, %v4485
        %v4492 = vadd.f32 %v4337, 1.0
        %v4493 = vlog2.pop %v4492
        %v4494 = vmul.f32 %v4493, 0.6931472
        %v4495 = vmul.f32 -0.5, %v4337
        %v4496 = vadd.f32 %v4495, 1.0
        %v4497 = vmul.f32 %v4496, %v4337
        %v4498 = vand.u32 2147483647, %v4337
        %vm4499 = vcmp.lt.f32.partialorder %v4498, 0.0004427343
        %v4500 = vsel %vm4499, %v4497, %v4494
        %v4501 = vadd.f32 %v4339, 1.0
        %v4502 = vlog2.pop %v4501
        %v4503 = vmul.f32 %v4502, 0.6931472
        %v4504 = vmul.f32 -0.5, %v4339
        %v4505 = vadd.f32 %v4504, 1.0
        %v4506 = vmul.f32 %v4505, %v4339
        %v4507 = vand.u32 2147483647, %v4339
        %vm4508 = vcmp.lt.f32.partialorder %v4507, 0.0004427343
        %v4509 = vsel %vm4508, %v4506, %v4503
        %v4510 = vadd.f32 %v4341, 1.0
        %v4511 = vlog2.pop %v4510
        %v4512 = vmul.f32 %v4511, 0.6931472
        %v4513 = vmul.f32 -0.5, %v4341
        %v4514 = vadd.f32 %v4513, 1.0
        %v4515 = vmul.f32 %v4514, %v4341
        %v4516 = vand.u32 2147483647, %v4341
        %vm4517 = vcmp.lt.f32.partialorder %v4516, 0.0004427343
        %v4518 = vsel %vm4517, %v4515, %v4512
        %v4519 = vadd.f32 %v4343, 1.0
        %v4520 = vlog2.pop %v4519
        %v4521 = vmul.f32 %v4520, 0.6931472
        %v4522 = vmul.f32 -0.5, %v4343
        %v4523 = vadd.f32 %v4522, 1.0
        %v4524 = vmul.f32 %v4523, %v4343
        %v4525 = vand.u32 2147483647, %v4343
        %vm4526 = vcmp.lt.f32.partialorder %v4525, 0.0004427343
        %v4527 = vsel %vm4526, %v4524, %v4521
        %v4528 = vadd.f32 %v4345, 1.0
        %v4529 = vlog2.pop %v4528
        %v4530 = vmul.f32 %v4529, 0.6931472
        %v4531 = vmul.f32 -0.5, %v4345
        %v4532 = vadd.f32 %v4531, 1.0
        %v4533 = vmul.f32 %v4532, %v4345
        %v4534 = vand.u32 2147483647, %v4345
        %vm4535 = vcmp.lt.f32.partialorder %v4534, 0.0004427343
        %v4536 = vsel %vm4535, %v4533, %v4530
        %v4537 = vadd.f32 %v4347, 1.0
        %v4538 = vlog2.pop %v4537
        %v4539 = vmul.f32 %v4538, 0.6931472
        %v4540 = vmul.f32 -0.5, %v4347
        %v4541 = vadd.f32 %v4540, 1.0
        %v4542 = vmul.f32 %v4541, %v4347
        %v4543 = vand.u32 2147483647, %v4347
        %vm4544 = vcmp.lt.f32.partialorder %v4543, 0.0004427343
        %v4545 = vsel %vm4544, %v4542, %v4539
        %v4546 = vadd.f32 %v4349, 1.0
        %v4547 = vlog2.pop %v4546
        %v4548 = vmul.f32 %v4547, 0.6931472
        %v4549 = vmul.f32 -0.5, %v4349
        %v4550 = vadd.f32 %v4549, 1.0
        %v4551 = vmul.f32 %v4550, %v4349
        %v4552 = vand.u32 2147483647, %v4349
        %vm4553 = vcmp.lt.f32.partialorder %v4552, 0.0004427343
        %v4554 = vsel %vm4553, %v4551, %v4548
        %v4555 = vadd.f32 %v4351, 1.0
        %v4556 = vlog2.pop %v4555
        %v4557 = vmul.f32 %v4556, 0.6931472
        %v4558 = vmul.f32 -0.5, %v4351
        %v4559 = vadd.f32 %v4558, 1.0
        %v4560 = vmul.f32 %v4559, %v4351
        %v4561 = vand.u32 2147483647, %v4351
        %vm4562 = vcmp.lt.f32.partialorder %v4561, 0.0004427343
        %v4563 = vsel %vm4562, %v4560, %v4557
        %v4564 = vadd.f32 %v4353, 1.0
        %v4565 = vlog2.pop %v4564
        %v4566 = vmul.f32 %v4565, 0.6931472
        %v4567 = vmul.f32 -0.5, %v4353
        %v4568 = vadd.f32 %v4567, 1.0
        %v4569 = vmul.f32 %v4568, %v4353
        %v4570 = vand.u32 2147483647, %v4353
        %vm4571 = vcmp.lt.f32.partialorder %v4570, 0.0004427343
        %v4572 = vsel %vm4571, %v4569, %v4566
        %v4573 = vadd.f32 %v4355, 1.0
        %v4574 = vlog2.pop %v4573
        %v4575 = vmul.f32 %v4574, 0.6931472
        %v4576 = vmul.f32 -0.5, %v4355
        %v4577 = vadd.f32 %v4576, 1.0
        %v4578 = vmul.f32 %v4577, %v4355
        %v4579 = vand.u32 2147483647, %v4355
        %vm4580 = vcmp.lt.f32.partialorder %v4579, 0.0004427343
        %v4581 = vsel %vm4580, %v4578, %v4575
        %v4582 = vadd.f32 %v4357, 1.0
        %v4583 = vlog2.pop %v4582
        %v4584 = vmul.f32 %v4583, 0.6931472
        %v4585 = vmul.f32 -0.5, %v4357
        %v4586 = vadd.f32 %v4585, 1.0
        %v4587 = vmul.f32 %v4586, %v4357
        %v4588 = vand.u32 2147483647, %v4357
        %vm4589 = vcmp.lt.f32.partialorder %v4588, 0.0004427343
        %v4590 = vsel %vm4589, %v4587, %v4584
        %v4591 = vadd.f32 %v4359, 1.0
        %v4592 = vlog2.pop %v4591
        %v4593 = vmul.f32 %v4592, 0.6931472
        %v4594 = vmul.f32 -0.5, %v4359
        %v4595 = vadd.f32 %v4594, 1.0
        %v4596 = vmul.f32 %v4595, %v4359
        %v4597 = vand.u32 2147483647, %v4359
        %vm4598 = vcmp.lt.f32.partialorder %v4597, 0.0004427343
        %v4599 = vsel %vm4598, %v4596, %v4593
        %v4600 = vadd.f32 %v4361, 1.0
        %v4601 = vlog2.pop %v4600
        %v4602 = vmul.f32 %v4601, 0.6931472
        %v4603 = vmul.f32 -0.5, %v4361
        %v4604 = vadd.f32 %v4603, 1.0
        %v4605 = vmul.f32 %v4604, %v4361
        %v4606 = vand.u32 2147483647, %v4361
        %vm4607 = vcmp.lt.f32.partialorder %v4606, 0.0004427343
        %v4608 = vsel %vm4607, %v4605, %v4602
        %v4609 = vadd.f32 %v4363, 1.0
        %v4610 = vlog2.pop %v4609
        %v4611 = vmul.f32 %v4610, 0.6931472
        %v4612 = vmul.f32 -0.5, %v4363
        %v4613 = vadd.f32 %v4612, 1.0
        %v4614 = vmul.f32 %v4613, %v4363
        %v4615 = vand.u32 2147483647, %v4363
        %vm4616 = vcmp.lt.f32.partialorder %v4615, 0.0004427343
        %v4617 = vsel %vm4616, %v4614, %v4611
        %v4618 = vadd.f32 %v4365, 1.0
        %v4619 = vlog2.pop %v4618
        %v4620 = vmul.f32 %v4619, 0.6931472
        %v4621 = vmul.f32 -0.5, %v4365
        %v4622 = vadd.f32 %v4621, 1.0
        %v4623 = vmul.f32 %v4622, %v4365
        %v4624 = vand.u32 2147483647, %v4365
        %vm4625 = vcmp.lt.f32.partialorder %v4624, 0.0004427343
        %v4626 = vsel %vm4625, %v4623, %v4620
        %v4627 = vadd.f32 %v4367, 1.0
        %v4628 = vlog2.pop %v4627
        %v4629 = vmul.f32 %v4628, 0.6931472
        %v4630 = vmul.f32 -0.5, %v4367
        %v4631 = vadd.f32 %v4630, 1.0
        %v4632 = vmul.f32 %v4631, %v4367
        %v4633 = vand.u32 2147483647, %v4367
        %vm4634 = vcmp.lt.f32.partialorder %v4633, 0.0004427343
        %v4635 = vsel %vm4634, %v4632, %v4629
        %v4636 = vadd.f32 %v4369, 1.0
        %v4637 = vlog2.pop %v4636
        %v4638 = vmul.f32 %v4637, 0.6931472
        %v4639 = vmul.f32 -0.5, %v4369
        %v4640 = vadd.f32 %v4639, 1.0
        %v4641 = vmul.f32 %v4640, %v4369
        %v4642 = vand.u32 2147483647, %v4369
        %vm4643 = vcmp.lt.f32.partialorder %v4642, 0.0004427343
        %v4644 = vsel %vm4643, %v4641, %v4638
        %v4645 = vadd.f32 %v4371, 1.0
        %v4646 = vlog2.pop %v4645
        %v4647 = vmul.f32 %v4646, 0.6931472
        %v4648 = vmul.f32 -0.5, %v4371
        %v4649 = vadd.f32 %v4648, 1.0
        %v4650 = vmul.f32 %v4649, %v4371
        %v4651 = vand.u32 2147483647, %v4371
        %vm4652 = vcmp.lt.f32.partialorder %v4651, 0.0004427343
        %v4653 = vsel %vm4652, %v4650, %v4647
        %v4654 = vadd.f32 %v4373, 1.0
        %v4655 = vlog2.pop %v4654
        %v4656 = vmul.f32 %v4655, 0.6931472
        %v4657 = vmul.f32 -0.5, %v4373
        %v4658 = vadd.f32 %v4657, 1.0
        %v4659 = vmul.f32 %v4658, %v4373
        %v4660 = vand.u32 2147483647, %v4373
        %vm4661 = vcmp.lt.f32.partialorder %v4660, 0.0004427343
        %v4662 = vsel %vm4661, %v4659, %v4656
        %v4663 = vadd.f32 %v4375, 1.0
        %v4664 = vlog2.pop %v4663
        %v4665 = vmul.f32 %v4664, 0.6931472
        %v4666 = vmul.f32 -0.5, %v4375
        %v4667 = vadd.f32 %v4666, 1.0
        %v4668 = vmul.f32 %v4667, %v4375
        %v4669 = vand.u32 2147483647, %v4375
        %vm4670 = vcmp.lt.f32.partialorder %v4669, 0.0004427343
        %v4671 = vsel %vm4670, %v4668, %v4665
        %v4672 = vadd.f32 %v4377, 1.0
        %v4673 = vlog2.pop %v4672
        %v4674 = vmul.f32 %v4673, 0.6931472
        %v4675 = vmul.f32 -0.5, %v4377
        %v4676 = vadd.f32 %v4675, 1.0
        %v4677 = vmul.f32 %v4676, %v4377
        %v4678 = vand.u32 2147483647, %v4377
        %vm4679 = vcmp.lt.f32.partialorder %v4678, 0.0004427343
        %v4680 = vsel %vm4679, %v4677, %v4674
        %v4681 = vadd.f32 %v4379, 1.0
        %v4682 = vlog2.pop %v4681
        %v4683 = vmul.f32 %v4682, 0.6931472
        %v4684 = vmul.f32 -0.5, %v4379
        %v4685 = vadd.f32 %v4684, 1.0
        %v4686 = vmul.f32 %v4685, %v4379
        %v4687 = vand.u32 2147483647, %v4379
        %vm4688 = vcmp.lt.f32.partialorder %v4687, 0.0004427343
        %v4689 = vsel %vm4688, %v4686, %v4683
        %v4690 = vadd.f32 %v4381, 1.0
        %v4691 = vlog2.pop %v4690
        %v4692 = vmul.f32 %v4691, 0.6931472
        %v4693 = vmul.f32 -0.5, %v4381
        %v4694 = vadd.f32 %v4693, 1.0
        %v4695 = vmul.f32 %v4694, %v4381
        %v4696 = vand.u32 2147483647, %v4381
        %vm4697 = vcmp.lt.f32.partialorder %v4696, 0.0004427343
        %v4698 = vsel %vm4697, %v4695, %v4692
        %v4699 = vadd.f32 %v4383, 1.0
        %v4700 = vlog2.pop %v4699
        %v4701 = vmul.f32 %v4700, 0.6931472
        %v4702 = vmul.f32 -0.5, %v4383
        %v4703 = vadd.f32 %v4702, 1.0
        %v4704 = vmul.f32 %v4703, %v4383
        %v4705 = vand.u32 2147483647, %v4383
        %vm4706 = vcmp.lt.f32.partialorder %v4705, 0.0004427343
        %v4707 = vsel %vm4706, %v4704, %v4701
        %v4708 = vadd.f32 %v4385, 1.0
        %v4709 = vlog2.pop %v4708
        %v4710 = vmul.f32 %v4709, 0.6931472
        %v4711 = vmul.f32 -0.5, %v4385
        %v4712 = vadd.f32 %v4711, 1.0
        %v4713 = vmul.f32 %v4712, %v4385
        %v4714 = vand.u32 2147483647, %v4385
        %vm4715 = vcmp.lt.f32.partialorder %v4714, 0.0004427343
        %v4716 = vsel %vm4715, %v4713, %v4710
        %v4717 = vadd.f32 %v4387, 1.0
        %v4718 = vlog2.pop %v4717
        %v4719 = vmul.f32 %v4718, 0.6931472
        %v4720 = vmul.f32 -0.5, %v4387
        %v4721 = vadd.f32 %v4720, 1.0
        %v4722 = vmul.f32 %v4721, %v4387
        %v4723 = vand.u32 2147483647, %v4387
        %vm4724 = vcmp.lt.f32.partialorder %v4723, 0.0004427343
        %v4725 = vsel %vm4724, %v4722, %v4719
        %v4726 = vadd.f32 %v4389, 1.0
        %v4727 = vlog2.pop %v4726
        %v4728 = vmul.f32 %v4727, 0.6931472
        %v4729 = vmul.f32 -0.5, %v4389
        %v4730 = vadd.f32 %v4729, 1.0
        %v4731 = vmul.f32 %v4730, %v4389
        %v4732 = vand.u32 2147483647, %v4389
        %vm4733 = vcmp.lt.f32.partialorder %v4732, 0.0004427343
        %v4734 = vsel %vm4733, %v4731, %v4728
        %v4735 = vadd.f32 %v4391, 1.0
        %v4736 = vlog2.pop %v4735
        %v4737 = vmul.f32 %v4736, 0.6931472
        %v4738 = vmul.f32 -0.5, %v4391
        %v4739 = vadd.f32 %v4738, 1.0
        %v4740 = vmul.f32 %v4739, %v4391
        %v4741 = vand.u32 2147483647, %v4391
        %vm4742 = vcmp.lt.f32.partialorder %v4741, 0.0004427343
        %v4743 = vsel %vm4742, %v4740, %v4737
        %v4744 = vadd.f32 %v4393, 1.0
        %v4745 = vlog2.pop %v4744
        %v4746 = vmul.f32 %v4745, 0.6931472
        %v4747 = vmul.f32 -0.5, %v4393
        %v4748 = vadd.f32 %v4747, 1.0
        %v4749 = vmul.f32 %v4748, %v4393
        %v4750 = vand.u32 2147483647, %v4393
        %vm4751 = vcmp.lt.f32.partialorder %v4750, 0.0004427343
        %v4752 = vsel %vm4751, %v4749, %v4746
        %v4753 = vadd.f32 %v4395, 1.0
        %v4754 = vlog2.pop %v4753
        %v4755 = vmul.f32 %v4754, 0.6931472
        %v4756 = vmul.f32 -0.5, %v4395
        %v4757 = vadd.f32 %v4756, 1.0
        %v4758 = vmul.f32 %v4757, %v4395
        %v4759 = vand.u32 2147483647, %v4395
        %vm4760 = vcmp.lt.f32.partialorder %v4759, 0.0004427343
        %v4761 = vsel %vm4760, %v4758, %v4755
        %v4762 = vadd.f32 %v4397, 1.0
        %v4763 = vlog2.pop %v4762
        %v4764 = vmul.f32 %v4763, 0.6931472
        %v4765 = vmul.f32 -0.5, %v4397
        %v4766 = vadd.f32 %v4765, 1.0
        %v4767 = vmul.f32 %v4766, %v4397
        %v4768 = vand.u32 2147483647, %v4397
        %vm4769 = vcmp.lt.f32.partialorder %v4768, 0.0004427343
        %v4770 = vsel %vm4769, %v4767, %v4764
        %v4771 = vadd.f32 %v4399, 1.0
        %v4772 = vlog2.pop %v4771
        %v4773 = vmul.f32 %v4772, 0.6931472
        %v4774 = vmul.f32 -0.5, %v4399
        %v4775 = vadd.f32 %v4774, 1.0
        %v4776 = vmul.f32 %v4775, %v4399
        %v4777 = vand.u32 2147483647, %v4399
        %vm4778 = vcmp.lt.f32.partialorder %v4777, 0.0004427343
        %v4779 = vsel %vm4778, %v4776, %v4773
        %v4780 = vadd.f32 %v4401, 1.0
        %v4781 = vlog2.pop %v4780
        %v4782 = vmul.f32 %v4781, 0.6931472
        %v4783 = vmul.f32 -0.5, %v4401
        %v4784 = vadd.f32 %v4783, 1.0
        %v4785 = vmul.f32 %v4784, %v4401
        %v4786 = vand.u32 2147483647, %v4401
        %vm4787 = vcmp.lt.f32.partialorder %v4786, 0.0004427343
        %v4788 = vsel %vm4787, %v4785, %v4782
        %v4789 = vadd.f32 %v4403, 1.0
        %v4790 = vlog2.pop %v4789
        %v4791 = vmul.f32 %v4790, 0.6931472
        %v4792 = vmul.f32 -0.5, %v4403
        %v4793 = vadd.f32 %v4792, 1.0
        %v4794 = vmul.f32 %v4793, %v4403
        %v4795 = vand.u32 2147483647, %v4403
        %vm4796 = vcmp.lt.f32.partialorder %v4795, 0.0004427343
        %v4797 = vsel %vm4796, %v4794, %v4791
        %v4798 = vadd.f32 %v4405, 1.0
        %v4799 = vlog2.pop %v4798
        %v4800 = vmul.f32 %v4799, 0.6931472
        %v4801 = vmul.f32 -0.5, %v4405
        %v4802 = vadd.f32 %v4801, 1.0
        %v4803 = vmul.f32 %v4802, %v4405
        %v4804 = vand.u32 2147483647, %v4405
        %vm4805 = vcmp.lt.f32.partialorder %v4804, 0.0004427343
        %v4806 = vsel %vm4805, %v4803, %v4800
        %v4807 = vadd.f32 %v4407, 1.0
        %v4808 = vlog2.pop %v4807
        %v4809 = vmul.f32 %v4808, 0.6931472
        %v4810 = vmul.f32 -0.5, %v4407
        %v4811 = vadd.f32 %v4810, 1.0
        %v4812 = vmul.f32 %v4811, %v4407
        %v4813 = vand.u32 2147483647, %v4407
        %vm4814 = vcmp.lt.f32.partialorder %v4813, 0.0004427343
        %v4815 = vsel %vm4814, %v4812, %v4809
        %v4816 = vadd.f32 %v4409, 1.0
        %v4817 = vlog2.pop %v4816
        %v4818 = vmul.f32 %v4817, 0.6931472
        %v4819 = vmul.f32 -0.5, %v4409
        %v4820 = vadd.f32 %v4819, 1.0
        %v4821 = vmul.f32 %v4820, %v4409
        %v4822 = vand.u32 2147483647, %v4409
        %vm4823 = vcmp.lt.f32.partialorder %v4822, 0.0004427343
        %v4824 = vsel %vm4823, %v4821, %v4818
        %v4825 = vadd.f32 %v4411, 1.0
        %v4826 = vlog2.pop %v4825
        %v4827 = vmul.f32 %v4826, 0.6931472
        %v4828 = vmul.f32 -0.5, %v4411
        %v4829 = vadd.f32 %v4828, 1.0
        %v4830 = vmul.f32 %v4829, %v4411
        %v4831 = vand.u32 2147483647, %v4411
        %vm4832 = vcmp.lt.f32.partialorder %v4831, 0.0004427343
        %v4833 = vsel %vm4832, %v4830, %v4827
        %v4834 = vadd.f32 %v4413, 1.0
        %v4835 = vlog2.pop %v4834
        %v4836 = vmul.f32 %v4835, 0.6931472
        %v4837 = vmul.f32 -0.5, %v4413
        %v4838 = vadd.f32 %v4837, 1.0
        %v4839 = vmul.f32 %v4838, %v4413
        %v4840 = vand.u32 2147483647, %v4413
        %vm4841 = vcmp.lt.f32.partialorder %v4840, 0.0004427343
        %v4842 = vsel %vm4841, %v4839, %v4836
        %v4843 = vadd.f32 %v4415, 1.0
        %v4844 = vlog2.pop %v4843
        %v4845 = vmul.f32 %v4844, 0.6931472
        %v4846 = vmul.f32 -0.5, %v4415
        %v4847 = vadd.f32 %v4846, 1.0
        %v4848 = vmul.f32 %v4847, %v4415
        %v4849 = vand.u32 2147483647, %v4415
        %vm4850 = vcmp.lt.f32.partialorder %v4849, 0.0004427343
        %v4851 = vsel %vm4850, %v4848, %v4845
        %v4852 = vadd.f32 %v4417, 1.0
        %v4853 = vlog2.pop %v4852
        %v4854 = vmul.f32 %v4853, 0.6931472
        %v4855 = vmul.f32 -0.5, %v4417
        %v4856 = vadd.f32 %v4855, 1.0
        %v4857 = vmul.f32 %v4856, %v4417
        %v4858 = vand.u32 2147483647, %v4417
        %vm4859 = vcmp.lt.f32.partialorder %v4858, 0.0004427343
        %v4860 = vsel %vm4859, %v4857, %v4854
        %v4861 = vadd.f32 %v4419, 1.0
        %v4862 = vlog2.pop %v4861
        %v4863 = vmul.f32 %v4862, 0.6931472
        %v4864 = vmul.f32 -0.5, %v4419
        %v4865 = vadd.f32 %v4864, 1.0
        %v4866 = vmul.f32 %v4865, %v4419
        %v4867 = vand.u32 2147483647, %v4419
        %vm4868 = vcmp.lt.f32.partialorder %v4867, 0.0004427343
        %v4869 = vsel %vm4868, %v4866, %v4863
        %v4870 = vadd.f32 %v4421, 1.0
        %v4871 = vlog2.pop %v4870
        %v4872 = vmul.f32 %v4871, 0.6931472
        %v4873 = vmul.f32 -0.5, %v4421
        %v4874 = vadd.f32 %v4873, 1.0
        %v4875 = vmul.f32 %v4874, %v4421
        %v4876 = vand.u32 2147483647, %v4421
        %vm4877 = vcmp.lt.f32.partialorder %v4876, 0.0004427343
        %v4878 = vsel %vm4877, %v4875, %v4872
        %v4879 = vadd.f32 %v4423, 1.0
        %v4880 = vlog2.pop %v4879
        %v4881 = vmul.f32 %v4880, 0.6931472
        %v4882 = vmul.f32 -0.5, %v4423
        %v4883 = vadd.f32 %v4882, 1.0
        %v4884 = vmul.f32 %v4883, %v4423
        %v4885 = vand.u32 2147483647, %v4423
        %vm4886 = vcmp.lt.f32.partialorder %v4885, 0.0004427343
        %v4887 = vsel %vm4886, %v4884, %v4881
        %v4888 = vadd.f32 %v4425, 1.0
        %v4889 = vlog2.pop %v4888
        %v4890 = vmul.f32 %v4889, 0.6931472
        %v4891 = vmul.f32 -0.5, %v4425
        %v4892 = vadd.f32 %v4891, 1.0
        %v4893 = vmul.f32 %v4892, %v4425
        %v4894 = vand.u32 2147483647, %v4425
        %vm4895 = vcmp.lt.f32.partialorder %v4894, 0.0004427343
        %v4896 = vsel %vm4895, %v4893, %v4890
        %v4897 = vadd.f32 %v4427, 1.0
        %v4898 = vlog2.pop %v4897
        %v4899 = vmul.f32 %v4898, 0.6931472
        %v4900 = vmul.f32 -0.5, %v4427
        %v4901 = vadd.f32 %v4900, 1.0
        %v4902 = vmul.f32 %v4901, %v4427
        %v4903 = vand.u32 2147483647, %v4427
        %vm4904 = vcmp.lt.f32.partialorder %v4903, 0.0004427343
        %v4905 = vsel %vm4904, %v4902, %v4899
        %v4906 = vadd.f32 %v4429, 1.0
        %v4907 = vlog2.pop %v4906
        %v4908 = vmul.f32 %v4907, 0.6931472
        %v4909 = vmul.f32 -0.5, %v4429
        %v4910 = vadd.f32 %v4909, 1.0
        %v4911 = vmul.f32 %v4910, %v4429
        %v4912 = vand.u32 2147483647, %v4429
        %vm4913 = vcmp.lt.f32.partialorder %v4912, 0.0004427343
        %v4914 = vsel %vm4913, %v4911, %v4908
        %v4915 = vadd.f32 %v4431, 1.0
        %v4916 = vlog2.pop %v4915
        %v4917 = vmul.f32 %v4916, 0.6931472
        %v4918 = vmul.f32 -0.5, %v4431
        %v4919 = vadd.f32 %v4918, 1.0
        %v4920 = vmul.f32 %v4919, %v4431
        %v4921 = vand.u32 2147483647, %v4431
        %vm4922 = vcmp.lt.f32.partialorder %v4921, 0.0004427343
        %v4923 = vsel %vm4922, %v4920, %v4917
        %v4924 = vadd.f32 %v4433, 1.0
        %v4925 = vlog2.pop %v4924
        %v4926 = vmul.f32 %v4925, 0.6931472
        %v4927 = vmul.f32 -0.5, %v4433
        %v4928 = vadd.f32 %v4927, 1.0
        %v4929 = vmul.f32 %v4928, %v4433
        %v4930 = vand.u32 2147483647, %v4433
        %vm4931 = vcmp.lt.f32.partialorder %v4930, 0.0004427343
        %v4932 = vsel %vm4931, %v4929, %v4926
        %v4933 = vadd.f32 %v4435, 1.0
        %v4934 = vlog2.pop %v4933
        %v4935 = vmul.f32 %v4934, 0.6931472
        %v4936 = vmul.f32 -0.5, %v4435
        %v4937 = vadd.f32 %v4936, 1.0
        %v4938 = vmul.f32 %v4937, %v4435
        %v4939 = vand.u32 2147483647, %v4435
        %vm4940 = vcmp.lt.f32.partialorder %v4939, 0.0004427343
        %v4941 = vsel %vm4940, %v4938, %v4935
        %v4942 = vadd.f32 %v4437, 1.0
        %v4943 = vlog2.pop %v4942
        %v4944 = vmul.f32 %v4943, 0.6931472
        %v4945 = vmul.f32 -0.5, %v4437
        %v4946 = vadd.f32 %v4945, 1.0
        %v4947 = vmul.f32 %v4946, %v4437
        %v4948 = vand.u32 2147483647, %v4437
        %vm4949 = vcmp.lt.f32.partialorder %v4948, 0.0004427343
        %v4950 = vsel %vm4949, %v4947, %v4944
        %v4951 = vadd.f32 %v4439, 1.0
        %v4952 = vlog2.pop %v4951
        %v4953 = vmul.f32 %v4952, 0.6931472
        %v4954 = vmul.f32 -0.5, %v4439
        %v4955 = vadd.f32 %v4954, 1.0
        %v4956 = vmul.f32 %v4955, %v4439
        %v4957 = vand.u32 2147483647, %v4439
        %vm4958 = vcmp.lt.f32.partialorder %v4957, 0.0004427343
        %v4959 = vsel %vm4958, %v4956, %v4953
        %v4960 = vadd.f32 %v4441, 1.0
        %v4961 = vlog2.pop %v4960
        %v4962 = vmul.f32 %v4961, 0.6931472
        %v4963 = vmul.f32 -0.5, %v4441
        %v4964 = vadd.f32 %v4963, 1.0
        %v4965 = vmul.f32 %v4964, %v4441
        %v4966 = vand.u32 2147483647, %v4441
        %vm4967 = vcmp.lt.f32.partialorder %v4966, 0.0004427343
        %v4968 = vsel %vm4967, %v4965, %v4962
        %v4969 = vadd.f32 %v4443, 1.0
        %v4970 = vlog2.pop %v4969
        %v4971 = vmul.f32 %v4970, 0.6931472
        %v4972 = vmul.f32 -0.5, %v4443
        %v4973 = vadd.f32 %v4972, 1.0
        %v4974 = vmul.f32 %v4973, %v4443
        %v4975 = vand.u32 2147483647, %v4443
        %vm4976 = vcmp.lt.f32.partialorder %v4975, 0.0004427343
        %v4977 = vsel %vm4976, %v4974, %v4971
        %v4978 = vadd.f32 %v4445, 1.0
        %v4979 = vlog2.pop %v4978
        %v4980 = vmul.f32 %v4979, 0.6931472
        %v4981 = vmul.f32 -0.5, %v4445
        %v4982 = vadd.f32 %v4981, 1.0
        %v4983 = vmul.f32 %v4982, %v4445
        %v4984 = vand.u32 2147483647, %v4445
        %vm4985 = vcmp.lt.f32.partialorder %v4984, 0.0004427343
        %v4986 = vsel %vm4985, %v4983, %v4980
        %v4987 = vadd.f32 %v4447, 1.0
        %v4988 = vlog2.pop %v4987
        %v4989 = vmul.f32 %v4988, 0.6931472
        %v4990 = vmul.f32 -0.5, %v4447
        %v4991 = vadd.f32 %v4990, 1.0
        %v4992 = vmul.f32 %v4991, %v4447
        %v4993 = vand.u32 2147483647, %v4447
        %vm4994 = vcmp.lt.f32.partialorder %v4993, 0.0004427343
        %v4995 = vsel %vm4994, %v4992, %v4989
        %v4996 = vadd.f32 %v4449, 1.0
        %v4997 = vlog2.pop %v4996
        %v4998 = vmul.f32 %v4997, 0.6931472
        %v4999 = vmul.f32 -0.5, %v4449
        %v5000 = vadd.f32 %v4999, 1.0
        %v5001 = vmul.f32 %v5000, %v4449
        %v5002 = vand.u32 2147483647, %v4449
        %vm5003 = vcmp.lt.f32.partialorder %v5002, 0.0004427343
        %v5004 = vsel %vm5003, %v5001, %v4998
        %v5005 = vadd.f32 %v4451, 1.0
        %v5006 = vlog2.pop %v5005
        %v5007 = vmul.f32 %v5006, 0.6931472
        %v5008 = vmul.f32 -0.5, %v4451
        %v5009 = vadd.f32 %v5008, 1.0
        %v5010 = vmul.f32 %v5009, %v4451
        %v5011 = vand.u32 2147483647, %v4451
        %vm5012 = vcmp.lt.f32.partialorder %v5011, 0.0004427343
        %v5013 = vsel %vm5012, %v5010, %v5007
        %v5014 = vadd.f32 %v4453, 1.0
        %v5015 = vlog2.pop %v5014
        %v5016 = vmul.f32 %v5015, 0.6931472
        %v5017 = vmul.f32 -0.5, %v4453
        %v5018 = vadd.f32 %v5017, 1.0
        %v5019 = vmul.f32 %v5018, %v4453
        %v5020 = vand.u32 2147483647, %v4453
        %vm5021 = vcmp.lt.f32.partialorder %v5020, 0.0004427343
        %v5022 = vsel %vm5021, %v5019, %v5016
        %v5023 = vadd.f32 %v4455, 1.0
        %v5024 = vlog2.pop %v5023
        %v5025 = vmul.f32 %v5024, 0.6931472
        %v5026 = vmul.f32 -0.5, %v4455
        %v5027 = vadd.f32 %v5026, 1.0
        %v5028 = vmul.f32 %v5027, %v4455
        %v5029 = vand.u32 2147483647, %v4455
        %vm5030 = vcmp.lt.f32.partialorder %v5029, 0.0004427343
        %v5031 = vsel %vm5030, %v5028, %v5025
        %v5032 = vadd.f32 %v4008, %v4464
        %v5033 = vadd.f32 %v4009, %v4473
        %v5034 = vadd.f32 %v4010, %v4482
        %v5035 = vadd.f32 %v4011, %v4491
        %v5036 = vadd.f32 %v4012, %v4500
        %v5037 = vadd.f32 %v4013, %v4509
        %v5038 = vadd.f32 %v4014, %v4518
        %v5039 = vadd.f32 %v4015, %v4527
        %v5040 = vadd.f32 %v4016, %v4536
        %v5041 = vadd.f32 %v4017, %v4545
        %v5042 = vadd.f32 %v4018, %v4554
        %v5043 = vadd.f32 %v4019, %v4563
        %v5044 = vadd.f32 %v4020, %v4572
        %v5045 = vadd.f32 %v4021, %v4581
        %v5046 = vadd.f32 %v4022, %v4590
        %v5047 = vadd.f32 %v4023, %v4599
        %v5048 = vadd.f32 %v4024, %v4608
        %v5049 = vadd.f32 %v4025, %v4617
        %v5050 = vadd.f32 %v4026, %v4626
        %v5051 = vadd.f32 %v4027, %v4635
        %v5052 = vadd.f32 %v4028, %v4644
        %v5053 = vadd.f32 %v4029, %v4653
        %v5054 = vadd.f32 %v4030, %v4662
        %v5055 = vadd.f32 %v4031, %v4671
        %v5056 = vadd.f32 %v4032, %v4680
        %v5057 = vadd.f32 %v4033, %v4689
        %v5058 = vadd.f32 %v4034, %v4698
        %v5059 = vadd.f32 %v4035, %v4707
        %v5060 = vadd.f32 %v4036, %v4716
        %v5061 = vadd.f32 %v4037, %v4725
        %v5062 = vadd.f32 %v4038, %v4734
        %v5063 = vadd.f32 %v4039, %v4743
        %v5064 = vadd.f32 %v4040, %v4752
        %v5065 = vadd.f32 %v4041, %v4761
        %v5066 = vadd.f32 %v4042, %v4770
        %v5067 = vadd.f32 %v4043, %v4779
        %v5068 = vadd.f32 %v4044, %v4788
        %v5069 = vadd.f32 %v4045, %v4797
        %v5070 = vadd.f32 %v4046, %v4806
        %v5071 = vadd.f32 %v4047, %v4815
        %v5072 = vadd.f32 %v4048, %v4824
        %v5073 = vadd.f32 %v4049, %v4833
        %v5074 = vadd.f32 %v4050, %v4842
        %v5075 = vadd.f32 %v4051, %v4851
        %v5076 = vadd.f32 %v4052, %v4860
        %v5077 = vadd.f32 %v4053, %v4869
        %v5078 = vadd.f32 %v4054, %v4878
        %v5079 = vadd.f32 %v4055, %v4887
        %v5080 = vadd.f32 %v4056, %v4896
        %v5081 = vadd.f32 %v4057, %v4905
        %v5082 = vadd.f32 %v4058, %v4914
        %v5083 = vadd.f32 %v4059, %v4923
        %v5084 = vadd.f32 %v4060, %v4932
        %v5085 = vadd.f32 %v4061, %v4941
        %v5086 = vadd.f32 %v4062, %v4950
        %v5087 = vadd.f32 %v4063, %v4959
        %v5088 = vadd.f32 %v4064, %v4968
        %v5089 = vadd.f32 %v4065, %v4977
        %v5090 = vadd.f32 %v4066, %v4986
        %v5091 = vadd.f32 %v4067, %v4995
        %v5092 = vadd.f32 %v4068, %v5004
        %v5093 = vadd.f32 %v4069, %v5013
        %v5094 = vadd.f32 %v4070, %v5022
        %v5095 = vadd.f32 %v4071, %v5031
        %v5096 = vsel %vm4072, %v4136, %v5032
        %v5097 = vsel %vm4073, %v4137, %v5033
        %v5098 = vsel %vm4074, %v4138, %v5034
        %v5099 = vsel %vm4075, %v4139, %v5035
        %v5100 = vsel %vm4076, %v4140, %v5036
        %v5101 = vsel %vm4077, %v4141, %v5037
        %v5102 = vsel %vm4078, %v4142, %v5038
        %v5103 = vsel %vm4079, %v4143, %v5039
        %v5104 = vsel %vm4080, %v4144, %v5040
        %v5105 = vsel %vm4081, %v4145, %v5041
        %v5106 = vsel %vm4082, %v4146, %v5042
        %v5107 = vsel %vm4083, %v4147, %v5043
        %v5108 = vsel %vm4084, %v4148, %v5044
        %v5109 = vsel %vm4085, %v4149, %v5045
        %v5110 = vsel %vm4086, %v4150, %v5046
        %v5111 = vsel %vm4087, %v4151, %v5047
        %v5112 = vsel %vm4088, %v4152, %v5048
        %v5113 = vsel %vm4089, %v4153, %v5049
        %v5114 = vsel %vm4090, %v4154, %v5050
        %v5115 = vsel %vm4091, %v4155, %v5051
        %v5116 = vsel %vm4092, %v4156, %v5052
        %v5117 = vsel %vm4093, %v4157, %v5053
        %v5118 = vsel %vm4094, %v4158, %v5054
        %v5119 = vsel %vm4095, %v4159, %v5055
        %v5120 = vsel %vm4096, %v4160, %v5056
        %v5121 = vsel %vm4097, %v4161, %v5057
        %v5122 = vsel %vm4098, %v4162, %v5058
        %v5123 = vsel %vm4099, %v4163, %v5059
        %v5124 = vsel %vm4100, %v4164, %v5060
        %v5125 = vsel %vm4101, %v4165, %v5061
        %v5126 = vsel %vm4102, %v4166, %v5062
        %v5127 = vsel %vm4103, %v4167, %v5063
        %v5128 = vsel %vm4104, %v4168, %v5064
        %v5129 = vsel %vm4105, %v4169, %v5065
        %v5130 = vsel %vm4106, %v4170, %v5066
        %v5131 = vsel %vm4107, %v4171, %v5067
        %v5132 = vsel %vm4108, %v4172, %v5068
        %v5133 = vsel %vm4109, %v4173, %v5069
        %v5134 = vsel %vm4110, %v4174, %v5070
        %v5135 = vsel %vm4111, %v4175, %v5071
        %v5136 = vsel %vm4112, %v4176, %v5072
        %v5137 = vsel %vm4113, %v4177, %v5073
        %v5138 = vsel %vm4114, %v4178, %v5074
        %v5139 = vsel %vm4115, %v4179, %v5075
        %v5140 = vsel %vm4116, %v4180, %v5076
        %v5141 = vsel %vm4117, %v4181, %v5077
        %v5142 = vsel %vm4118, %v4182, %v5078
        %v5143 = vsel %vm4119, %v4183, %v5079
        %v5144 = vsel %vm4120, %v4184, %v5080
        %v5145 = vsel %vm4121, %v4185, %v5081
        %v5146 = vsel %vm4122, %v4186, %v5082
        %v5147 = vsel %vm4123, %v4187, %v5083
        %v5148 = vsel %vm4124, %v4188, %v5084
        %v5149 = vsel %vm4125, %v4189, %v5085
        %v5150 = vsel %vm4126, %v4190, %v5086
        %v5151 = vsel %vm4127, %v4191, %v5087
        %v5152 = vsel %vm4128, %v4192, %v5088
        %v5153 = vsel %vm4129, %v4193, %v5089
        %v5154 = vsel %vm4130, %v4194, %v5090
        %v5155 = vsel %vm4131, %v4195, %v5091
        %v5156 = vsel %vm4132, %v4196, %v5092
        %v5157 = vsel %vm4133, %v4197, %v5093
        %v5158 = vsel %vm4134, %v4198, %v5094
        %v5159 = vsel %vm4135, %v4199, %v5095
        %v5160 = vld [vmem:[#allocation14] sm:$0xff]
        %v5161 = vld [vmem:[#allocation14 + $0x8] sm:$0xff]
        %v5162 = vld [vmem:[#allocation14 + $0x10] sm:$0xff]
        %v5163 = vld [vmem:[#allocation14 + $0x18] sm:$0xff]
        %v5164 = vld [vmem:[#allocation14 + $0x20] sm:$0xff]
        %v5165 = vld [vmem:[#allocation14 + $0x28] sm:$0xff]
        %v5166 = vld [vmem:[#allocation14 + $0x30] sm:$0xff]
        %v5167 = vld [vmem:[#allocation14 + $0x38] sm:$0xff]
        %v5168 = vld [vmem:[#allocation14 + $0x40] sm:$0xff]
        %v5169 = vld [vmem:[#allocation14 + $0x48] sm:$0xff]
        %v5170 = vld [vmem:[#allocation14 + $0x50] sm:$0xff]
        %v5171 = vld [vmem:[#allocation14 + $0x58] sm:$0xff]
        %v5172 = vld [vmem:[#allocation14 + $0x60] sm:$0xff]
        %v5173 = vld [vmem:[#allocation14 + $0x68] sm:$0xff]
        %v5174 = vld [vmem:[#allocation14 + $0x70] sm:$0xff]
        %v5175 = vld [vmem:[#allocation14 + $0x78] sm:$0xff]
        %v5176 = vld [vmem:[#allocation14 + $0x80] sm:$0xff]
        %v5177 = vld [vmem:[#allocation14 + $0x88] sm:$0xff]
        %v5178 = vld [vmem:[#allocation14 + $0x90] sm:$0xff]
        %v5179 = vld [vmem:[#allocation14 + $0x98] sm:$0xff]
        %v5180 = vld [vmem:[#allocation14 + $0xa0] sm:$0xff]
        %v5181 = vld [vmem:[#allocation14 + $0xa8] sm:$0xff]
        %v5182 = vld [vmem:[#allocation14 + $0xb0] sm:$0xff]
        %v5183 = vld [vmem:[#allocation14 + $0xb8] sm:$0xff]
        %v5184 = vld [vmem:[#allocation14 + $0xc0] sm:$0xff]
        %v5185 = vld [vmem:[#allocation14 + $0xc8] sm:$0xff]
        %v5186 = vld [vmem:[#allocation14 + $0xd0] sm:$0xff]
        %v5187 = vld [vmem:[#allocation14 + $0xd8] sm:$0xff]
        %v5188 = vld [vmem:[#allocation14 + $0xe0] sm:$0xff]
        %v5189 = vld [vmem:[#allocation14 + $0xe8] sm:$0xff]
        %v5190 = vld [vmem:[#allocation14 + $0xf0] sm:$0xff]
        %v5191 = vld [vmem:[#allocation14 + $0xf8] sm:$0xff]
        %v5192 = vld [vmem:[%s12] sm:$0x1]
        %v5194 = vperm.slane %v5192, 0
        %5196 = vmatpush.msra.mxu0 %v5175
        %5197 = vmatpush.msra.mxu0 %v5174
        %5198 = vmatpush.msra.mxu0 %v5173
        %5199 = vmatpush.msra.mxu0 %v5172
        %5200 = vmatpush.msra.mxu0 %v5171
        %5201 = vmatpush.msra.mxu0 %v5170
        %5202 = vmatpush.msra.mxu0 %v5169
        %5203 = vmatpush.msra.mxu0 %v5168
        %5204 = vmatpush.msra.mxu0 %v5167
        %5205 = vmatpush.msra.mxu0 %v5166
        %5206 = vmatpush.msra.mxu0 %v5165
        %5207 = vmatpush.msra.mxu0 %v5164
        %5208 = vmatpush.msra.mxu0 %v5163
        %5209 = vmatpush.msra.mxu0 %v5162
        %5210 = vmatpush.msra.mxu0 %v5161
        %5211 = vmatpush.msra.mxu0 %v5160
        %5212 = vmatmul.f32.gmra.mxu0 %v5096
        %v5213 = vpop.f32.mrf.mxu0
        %v5214 = vadd.f32 %v5194, %v5213
        %5215 = vmatmul.f32.gmra.mxu0 %v5098
        %v5216 = vpop.f32.mrf.mxu0
        %v5217 = vadd.f32 %v5194, %v5216
        %5218 = vmatmul.f32.gmra.mxu0 %v5100
        %v5219 = vpop.f32.mrf.mxu0
        %v5220 = vadd.f32 %v5194, %v5219
        %5221 = vmatmul.f32.gmra.mxu0 %v5102
        %v5222 = vpop.f32.mrf.mxu0
        %v5223 = vadd.f32 %v5194, %v5222
        %5224 = vmatmul.f32.gmra.mxu0 %v5104
        %v5225 = vpop.f32.mrf.mxu0
        %v5226 = vadd.f32 %v5194, %v5225
        %5227 = vmatmul.f32.gmra.mxu0 %v5106
        %v5228 = vpop.f32.mrf.mxu0
        %v5229 = vadd.f32 %v5194, %v5228
        %5230 = vmatmul.f32.gmra.mxu0 %v5108
        %v5231 = vpop.f32.mrf.mxu0
        %v5232 = vadd.f32 %v5194, %v5231
        %5233 = vmatmul.f32.gmra.mxu0 %v5110
        %v5234 = vpop.f32.mrf.mxu0
        %v5235 = vadd.f32 %v5194, %v5234
        %5236 = vmatmul.f32.gmra.mxu0 %v5112
        %v5237 = vpop.f32.mrf.mxu0
        %v5238 = vadd.f32 %v5194, %v5237
        %5239 = vmatmul.f32.gmra.mxu0 %v5114
        %v5240 = vpop.f32.mrf.mxu0
        %v5241 = vadd.f32 %v5194, %v5240
        %5242 = vmatmul.f32.gmra.mxu0 %v5116
        %v5243 = vpop.f32.mrf.mxu0
        %v5244 = vadd.f32 %v5194, %v5243
        %5245 = vmatmul.f32.gmra.mxu0 %v5118
        %v5246 = vpop.f32.mrf.mxu0
        %v5247 = vadd.f32 %v5194, %v5246
        %5248 = vmatmul.f32.gmra.mxu0 %v5120
        %v5249 = vpop.f32.mrf.mxu0
        %v5250 = vadd.f32 %v5194, %v5249
        %5251 = vmatmul.f32.gmra.mxu0 %v5122
        %v5252 = vpop.f32.mrf.mxu0
        %v5253 = vadd.f32 %v5194, %v5252
        %5254 = vmatmul.f32.gmra.mxu0 %v5124
        %v5255 = vpop.f32.mrf.mxu0
        %v5256 = vadd.f32 %v5194, %v5255
        %5257 = vmatmul.f32.gmra.mxu0 %v5126
        %v5258 = vpop.f32.mrf.mxu0
        %v5259 = vadd.f32 %v5194, %v5258
        %5260 = vmatmul.f32.gmra.mxu0 %v5128
        %v5261 = vpop.f32.mrf.mxu0
        %v5262 = vadd.f32 %v5194, %v5261
        %5263 = vmatmul.f32.gmra.mxu0 %v5130
        %v5264 = vpop.f32.mrf.mxu0
        %v5265 = vadd.f32 %v5194, %v5264
        %5266 = vmatmul.f32.gmra.mxu0 %v5132
        %v5267 = vpop.f32.mrf.mxu0
        %v5268 = vadd.f32 %v5194, %v5267
        %5269 = vmatmul.f32.gmra.mxu0 %v5134
        %v5270 = vpop.f32.mrf.mxu0
        %v5271 = vadd.f32 %v5194, %v5270
        %5272 = vmatmul.f32.gmra.mxu0 %v5136
        %v5273 = vpop.f32.mrf.mxu0
        %v5274 = vadd.f32 %v5194, %v5273
        %5275 = vmatmul.f32.gmra.mxu0 %v5138
        %v5276 = vpop.f32.mrf.mxu0
        %v5277 = vadd.f32 %v5194, %v5276
        %5278 = vmatmul.f32.gmra.mxu0 %v5140
        %v5279 = vpop.f32.mrf.mxu0
        %v5280 = vadd.f32 %v5194, %v5279
        %5281 = vmatmul.f32.gmra.mxu0 %v5142
        %v5282 = vpop.f32.mrf.mxu0
        %v5283 = vadd.f32 %v5194, %v5282
        %5284 = vmatmul.f32.gmra.mxu0 %v5144
        %v5285 = vpop.f32.mrf.mxu0
        %v5286 = vadd.f32 %v5194, %v5285
        %5287 = vmatmul.f32.gmra.mxu0 %v5146
        %v5288 = vpop.f32.mrf.mxu0
        %v5289 = vadd.f32 %v5194, %v5288
        %5290 = vmatmul.f32.gmra.mxu0 %v5148
        %v5291 = vpop.f32.mrf.mxu0
        %v5292 = vadd.f32 %v5194, %v5291
        %5293 = vmatmul.f32.gmra.mxu0 %v5150
        %v5294 = vpop.f32.mrf.mxu0
        %v5295 = vadd.f32 %v5194, %v5294
        %5296 = vmatmul.f32.gmra.mxu0 %v5152
        %v5297 = vpop.f32.mrf.mxu0
        %v5298 = vadd.f32 %v5194, %v5297
        %5299 = vmatmul.f32.gmra.mxu0 %v5154
        %v5300 = vpop.f32.mrf.mxu0
        %v5301 = vadd.f32 %v5194, %v5300
        %5302 = vmatmul.f32.gmra.mxu0 %v5156
        %v5303 = vpop.f32.mrf.mxu0
        %v5304 = vadd.f32 %v5194, %v5303
        %5305 = vmatmul.f32.gmra.mxu0 %v5158
        %v5306 = vpop.f32.mrf.mxu0
        %v5307 = vadd.f32 %v5194, %v5306
        %5308 = vdwg.mxu0
        %5309 = vmatpush.msra.mxu0 %v5191
        %5310 = vmatpush.msra.mxu0 %v5190
        %5311 = vmatpush.msra.mxu0 %v5189
        %5312 = vmatpush.msra.mxu0 %v5188
        %5313 = vmatpush.msra.mxu0 %v5187
        %5314 = vmatpush.msra.mxu0 %v5186
        %5315 = vmatpush.msra.mxu0 %v5185
        %5316 = vmatpush.msra.mxu0 %v5184
        %5317 = vmatpush.msra.mxu0 %v5183
        %5318 = vmatpush.msra.mxu0 %v5182
        %5319 = vmatpush.msra.mxu0 %v5181
        %5320 = vmatpush.msra.mxu0 %v5180
        %5321 = vmatpush.msra.mxu0 %v5179
        %5322 = vmatpush.msra.mxu0 %v5178
        %5323 = vmatpush.msra.mxu0 %v5177
        %5324 = vmatpush.msra.mxu0 %v5176
        %5325 = vmatmul.f32.gmra.mxu0 %v5097
        %v5326 = vpop.f32.mrf.mxu0
        %v5327 = vadd.f32 %v5214, %v5326
        %5328 = vmatmul.f32.gmra.mxu0 %v5099
        %v5329 = vpop.f32.mrf.mxu0
        %v5330 = vadd.f32 %v5217, %v5329
        %5331 = vmatmul.f32.gmra.mxu0 %v5101
        %v5332 = vpop.f32.mrf.mxu0
        %v5333 = vadd.f32 %v5220, %v5332
        %5334 = vmatmul.f32.gmra.mxu0 %v5103
        %v5335 = vpop.f32.mrf.mxu0
        %v5336 = vadd.f32 %v5223, %v5335
        %5337 = vmatmul.f32.gmra.mxu0 %v5105
        %v5338 = vpop.f32.mrf.mxu0
        %v5339 = vadd.f32 %v5226, %v5338
        %5340 = vmatmul.f32.gmra.mxu0 %v5107
        %v5341 = vpop.f32.mrf.mxu0
        %v5342 = vadd.f32 %v5229, %v5341
        %5343 = vmatmul.f32.gmra.mxu0 %v5109
        %v5344 = vpop.f32.mrf.mxu0
        %v5345 = vadd.f32 %v5232, %v5344
        %5346 = vmatmul.f32.gmra.mxu0 %v5111
        %v5347 = vpop.f32.mrf.mxu0
        %v5348 = vadd.f32 %v5235, %v5347
        %5349 = vmatmul.f32.gmra.mxu0 %v5113
        %v5350 = vpop.f32.mrf.mxu0
        %v5351 = vadd.f32 %v5238, %v5350
        %5352 = vmatmul.f32.gmra.mxu0 %v5115
        %v5353 = vpop.f32.mrf.mxu0
        %v5354 = vadd.f32 %v5241, %v5353
        %5355 = vmatmul.f32.gmra.mxu0 %v5117
        %v5356 = vpop.f32.mrf.mxu0
        %v5357 = vadd.f32 %v5244, %v5356
        %5358 = vmatmul.f32.gmra.mxu0 %v5119
        %v5359 = vpop.f32.mrf.mxu0
        %v5360 = vadd.f32 %v5247, %v5359
        %5361 = vmatmul.f32.gmra.mxu0 %v5121
        %v5362 = vpop.f32.mrf.mxu0
        %v5363 = vadd.f32 %v5250, %v5362
        %5364 = vmatmul.f32.gmra.mxu0 %v5123
        %v5365 = vpop.f32.mrf.mxu0
        %v5366 = vadd.f32 %v5253, %v5365
        %5367 = vmatmul.f32.gmra.mxu0 %v5125
        %v5368 = vpop.f32.mrf.mxu0
        %v5369 = vadd.f32 %v5256, %v5368
        %5370 = vmatmul.f32.gmra.mxu0 %v5127
        %v5371 = vpop.f32.mrf.mxu0
        %v5372 = vadd.f32 %v5259, %v5371
        %5373 = vmatmul.f32.gmra.mxu0 %v5129
        %v5374 = vpop.f32.mrf.mxu0
        %v5375 = vadd.f32 %v5262, %v5374
        %5376 = vmatmul.f32.gmra.mxu0 %v5131
        %v5377 = vpop.f32.mrf.mxu0
        %v5378 = vadd.f32 %v5265, %v5377
        %5379 = vmatmul.f32.gmra.mxu0 %v5133
        %v5380 = vpop.f32.mrf.mxu0
        %v5381 = vadd.f32 %v5268, %v5380
        %5382 = vmatmul.f32.gmra.mxu0 %v5135
        %v5383 = vpop.f32.mrf.mxu0
        %v5384 = vadd.f32 %v5271, %v5383
        %5385 = vmatmul.f32.gmra.mxu0 %v5137
        %v5386 = vpop.f32.mrf.mxu0
        %v5387 = vadd.f32 %v5274, %v5386
        %5388 = vmatmul.f32.gmra.mxu0 %v5139
        %v5389 = vpop.f32.mrf.mxu0
        %v5390 = vadd.f32 %v5277, %v5389
        %5391 = vmatmul.f32.gmra.mxu0 %v5141
        %v5392 = vpop.f32.mrf.mxu0
        %v5393 = vadd.f32 %v5280, %v5392
        %5394 = vmatmul.f32.gmra.mxu0 %v5143
        %v5395 = vpop.f32.mrf.mxu0
        %v5396 = vadd.f32 %v5283, %v5395
        %5397 = vmatmul.f32.gmra.mxu0 %v5145
        %v5398 = vpop.f32.mrf.mxu0
        %v5399 = vadd.f32 %v5286, %v5398
        %5400 = vmatmul.f32.gmra.mxu0 %v5147
        %v5401 = vpop.f32.mrf.mxu0
        %v5402 = vadd.f32 %v5289, %v5401
        %5403 = vmatmul.f32.gmra.mxu0 %v5149
        %v5404 = vpop.f32.mrf.mxu0
        %v5405 = vadd.f32 %v5292, %v5404
        %5406 = vmatmul.f32.gmra.mxu0 %v5151
        %v5407 = vpop.f32.mrf.mxu0
        %v5408 = vadd.f32 %v5295, %v5407
        %5409 = vmatmul.f32.gmra.mxu0 %v5153
        %v5410 = vpop.f32.mrf.mxu0
        %v5411 = vadd.f32 %v5298, %v5410
        %5412 = vmatmul.f32.gmra.mxu0 %v5155
        %v5413 = vpop.f32.mrf.mxu0
        %v5414 = vadd.f32 %v5301, %v5413
        %5415 = vmatmul.f32.gmra.mxu0 %v5157
        %v5416 = vpop.f32.mrf.mxu0
        %v5417 = vadd.f32 %v5304, %v5416
        %5418 = vmatmul.f32.gmra.mxu0 %v5159
        %v5419 = vpop.f32.mrf.mxu0
        %v5420 = vadd.f32 %v5307, %v5419
        %5421 = vdwg.mxu0
        %5422 = vst [vmem:[%s605] sm:$0xff] %v5327
        %5423 = vst [vmem:[%s605 + $0x8] sm:$0xff] %v5330
        %5424 = vst [vmem:[%s605 + $0x10] sm:$0xff] %v5333
        %5425 = vst [vmem:[%s605 + $0x18] sm:$0xff] %v5336
        %5426 = vst [vmem:[%s605 + $0x20] sm:$0xff] %v5339
        %5427 = vst [vmem:[%s605 + $0x28] sm:$0xff] %v5342
        %5428 = vst [vmem:[%s605 + $0x30] sm:$0xff] %v5345
        %5429 = vst [vmem:[%s605 + $0x38] sm:$0xff] %v5348
        %5430 = vst [vmem:[%s605 + $0x40] sm:$0xff] %v5351
        %5431 = vst [vmem:[%s605 + $0x48] sm:$0xff] %v5354
        %5432 = vst [vmem:[%s605 + $0x50] sm:$0xff] %v5357
        %5433 = vst [vmem:[%s605 + $0x58] sm:$0xff] %v5360
        %5434 = vst [vmem:[%s605 + $0x60] sm:$0xff] %v5363
        %5435 = vst [vmem:[%s605 + $0x68] sm:$0xff] %v5366
        %5436 = vst [vmem:[%s605 + $0x70] sm:$0xff] %v5369
        %5437 = vst [vmem:[%s605 + $0x78] sm:$0xff] %v5372
        %5438 = vst [vmem:[%s605 + $0x80] sm:$0xff] %v5375
        %5439 = vst [vmem:[%s605 + $0x88] sm:$0xff] %v5378
        %5440 = vst [vmem:[%s605 + $0x90] sm:$0xff] %v5381
        %5441 = vst [vmem:[%s605 + $0x98] sm:$0xff] %v5384
        %5442 = vst [vmem:[%s605 + $0xa0] sm:$0xff] %v5387
        %5443 = vst [vmem:[%s605 + $0xa8] sm:$0xff] %v5390
        %5444 = vst [vmem:[%s605 + $0xb0] sm:$0xff] %v5393
        %5445 = vst [vmem:[%s605 + $0xb8] sm:$0xff] %v5396
        %5446 = vst [vmem:[%s605 + $0xc0] sm:$0xff] %v5399
        %5447 = vst [vmem:[%s605 + $0xc8] sm:$0xff] %v5402
        %5448 = vst [vmem:[%s605 + $0xd0] sm:$0xff] %v5405
        %5449 = vst [vmem:[%s605 + $0xd8] sm:$0xff] %v5408
        %5450 = vst [vmem:[%s605 + $0xe0] sm:$0xff] %v5411
        %5451 = vst [vmem:[%s605 + $0xe8] sm:$0xff] %v5414
        %5452 = vst [vmem:[%s605 + $0xf0] sm:$0xff] %v5417
        %5453 = vst [vmem:[%s605 + $0xf8] sm:$0xff] %v5420
        %5454 = vst [vmem:[%s612] sm:$0xff] %v2940
        %5455 = vst [vmem:[%s612 + $0x8] sm:$0xff] %v2943
        %5456 = vst [vmem:[%s612 + $0x10] sm:$0xff] %v2946
        %5457 = vst [vmem:[%s612 + $0x18] sm:$0xff] %v2949
        %5458 = vst [vmem:[%s612 + $0x20] sm:$0xff] %v2952
        %5459 = vst [vmem:[%s612 + $0x28] sm:$0xff] %v2955
        %5460 = vst [vmem:[%s612 + $0x30] sm:$0xff] %v2958
        %5461 = vst [vmem:[%s612 + $0x38] sm:$0xff] %v2961
        %5462 = vst [vmem:[%s612 + $0x40] sm:$0xff] %v2964
        %5463 = vst [vmem:[%s612 + $0x48] sm:$0xff] %v2967
        %5464 = vst [vmem:[%s612 + $0x50] sm:$0xff] %v2970
        %5465 = vst [vmem:[%s612 + $0x58] sm:$0xff] %v2973
        %5466 = vst [vmem:[%s612 + $0x60] sm:$0xff] %v2976
        %5467 = vst [vmem:[%s612 + $0x68] sm:$0xff] %v2979
        %5468 = vst [vmem:[%s612 + $0x70] sm:$0xff] %v2982
        %5469 = vst [vmem:[%s612 + $0x78] sm:$0xff] %v2985
        %5470 = vst [vmem:[%s612 + $0x80] sm:$0xff] %v2988
        %5471 = vst [vmem:[%s612 + $0x88] sm:$0xff] %v2991
        %5472 = vst [vmem:[%s612 + $0x90] sm:$0xff] %v2994
        %5473 = vst [vmem:[%s612 + $0x98] sm:$0xff] %v2997
        %5474 = vst [vmem:[%s612 + $0xa0] sm:$0xff] %v3000
        %5475 = vst [vmem:[%s612 + $0xa8] sm:$0xff] %v3003
        %5476 = vst [vmem:[%s612 + $0xb0] sm:$0xff] %v3006
        %5477 = vst [vmem:[%s612 + $0xb8] sm:$0xff] %v3009
        %5478 = vst [vmem:[%s612 + $0xc0] sm:$0xff] %v3012
        %5479 = vst [vmem:[%s612 + $0xc8] sm:$0xff] %v3015
        %5480 = vst [vmem:[%s612 + $0xd0] sm:$0xff] %v3018
        %5481 = vst [vmem:[%s612 + $0xd8] sm:$0xff] %v3021
        %5482 = vst [vmem:[%s612 + $0xe0] sm:$0xff] %v3024
        %5483 = vst [vmem:[%s612 + $0xe8] sm:$0xff] %v3027
        %5484 = vst [vmem:[%s612 + $0xf0] sm:$0xff] %v3030
        %5485 = vst [vmem:[%s612 + $0xf8] sm:$0xff] %v3033
        %s5486 = sand.u32 %s325, 1
        %s5487 = scalar_lea.sflag [#allocation4], %s5486
        %s5488 = sand.u32 %s325, 1
        %s5489 = smul.addr %s5488, 256
        %s5490 = scalar_lea.vmem [#allocation16], %s5489
        %s5491 = sand.u32 %s351, 1
        %s5492 = scalar_lea.sflag [#allocation18], %s5491
        %s5493 = sand.u32 %s351, 1
        %s5494 = smul.addr %s5493, 256
        %s5495 = scalar_lea.vmem [#allocation17], %s5494
        // Predicated region
        $region105: #{tpu_custom_call.1} parent=71 // pred_check
          %p5496 = pneg %p335
        $region106: #{tpu_custom_call.1} parent=71 // pred_check_branch
          %5498 = sbr.rel (%p5496) target = $region108
        $region107: #{tpu_custom_call.1} parent=71 // pred_region
          %s5499 = smul.u32 32, %s39
          %5501 = vsyncadd %s5487, 0
          %s5502 = smul.addr %s5499, 8
          %s5503 = scalar_lea.hbm %s13, %s5502
          %s5504 = sshll.u32 %s5490, 4
          %s5505 = int_to_ptr.vmem [resolvable:$true] %s5504
          %s5506 = sshll.u32 %s5503, 4
          %s5507 = int_to_ptr.hbm [resolvable:$true] %s5506
          %5512 = dma.vmem_to_hbm [thread:$0]  %s5505, 4096, %s5507, %s5487, 128, 128, 8
        $region108: #{tpu_custom_call.1} parent=71 // pred_fallthru
          _
        // Predicated region
        $region109: #{tpu_custom_call.1} parent=71 // pred_check
          %p5513 = pneg %p361
        $region110: #{tpu_custom_call.1} parent=71 // pred_check_branch
          %5515 = sbr.rel (%p5513) target = $region112
        $region111: #{tpu_custom_call.1} parent=71 // pred_region
          %s5516 = smul.u32 32, %s39
          %5518 = vsyncadd %s5492, 0
          %s5519 = smul.addr %s5516, 8
          %s5520 = scalar_lea.hbm %s14, %s5519
          %s5521 = sshll.u32 %s5495, 4
          %s5522 = int_to_ptr.vmem [resolvable:$true] %s5521
          %s5523 = sshll.u32 %s5520, 4
          %s5524 = int_to_ptr.hbm [resolvable:$true] %s5523
          %5529 = dma.vmem_to_hbm [thread:$0]  %s5522, 4096, %s5524, %s5492, 128, 128, 8
        $region112: #{tpu_custom_call.1} parent=71 // pred_fallthru
          _
      $region72: #{tpu_custom_call.1} parent=5 // pred_fallthru
        _
      %p5530 = scmp.le.s32.totalorder 2, %s34
      // Predicated region
      $region113: #{tpu_custom_call.1} parent=5 // pred_check
        %p5531 = pneg %p5530
      $region114: #{tpu_custom_call.1} parent=5 // pred_check_branch
        %5533 = sbr.rel (%p5531) target = $region116
      $region115: #{tpu_custom_call.1} parent=5 // pred_region
        %s5534 = ssub.s32 %s34, 2
        // Predicated region
        $region117: #{tpu_custom_call.1} parent=115 // pred_check
          %p5535 = pneg %p341
        $region118: #{tpu_custom_call.1} parent=115 // pred_check_branch
          %5537 = sbr.rel (%p5535) target = $region120
        $region119: #{tpu_custom_call.1} parent=115 // pred_region
          %s5538 = sand.u32 %s326, 1
          %s5539 = scalar_lea.sflag [#allocation4], %s5538
          %s5540 = sand.u32 %s326, 1
          %s5541 = smul.addr %s5540, 256
          %s5542 = scalar_lea.vmem [#allocation16], %s5541
          %5544 = dma.done %s5539, 4096
        $region120: #{tpu_custom_call.1} parent=115 // pred_fallthru
          _
        // Predicated region
        $region121: #{tpu_custom_call.1} parent=115 // pred_check
          %p5545 = pneg %p367
        $region122: #{tpu_custom_call.1} parent=115 // pred_check_branch
          %5547 = sbr.rel (%p5545) target = $region124
        $region123: #{tpu_custom_call.1} parent=115 // pred_region
          %s5548 = sand.u32 %s352, 1
          %s5549 = scalar_lea.sflag [#allocation18], %s5548
          %s5550 = sand.u32 %s352, 1
          %s5551 = smul.addr %s5550, 256
          %s5552 = scalar_lea.vmem [#allocation17], %s5551
          %5554 = dma.done %s5549, 4096
        $region124: #{tpu_custom_call.1} parent=115 // pred_fallthru
          _
      $region116: #{tpu_custom_call.1} parent=5 // pred_fallthru
        _
    $region6: #{tpu_custom_call.1} parent=1 // loop_footer
      %s38 = sadd.s32 1, %s34
    $region7: #{tpu_custom_call.1} parent=1 // loop_footer_branch
      %33 = sbr.rel target = $region3
    $region8: #{tpu_custom_call.1} parent=1 // loop_exit
      _
    %5555 = vsyncpa [#allocation3], 1
    %s5556 = scalar_lea.sflag [#allocation3], 1
    %5557 = vsyncpa %s5556, 1
    %5558 = vsyncpa [#allocation6], 1
    %5559 = vsyncpa [#allocation9], 1
    %5560 = vsyncpa [#allocation12], 1
    %5561 = vsyncpa [#allocation15], 1
    %5562 = vsyncpa [#allocation4], 1
    %s5563 = scalar_lea.sflag [#allocation4], 1
    %5564 = vsyncpa %s5563, 1
    %5565 = vsyncpa [#allocation18], 1
    %s5566 = scalar_lea.sflag [#allocation18], 1
    %5567 = vsyncpa %s5566, 1

</llo_original>
